<compile_context>
chip_gen: v7x
topology: tpu7x:2x2x1
jax: 0.10.0
libtpu: 0.0.40
codegen_flags: <defaults>
</compile_context>

<pallas_src>
import functools
import math

import jax
import jax.numpy as jnp
import numpy as np
from jax.experimental import pallas as pl
from jax.experimental.pallas import tpu as pltpu

_BN_EPS = 1e-5

# Gather-form taps of ConvTranspose2d(k=4, s=2, p=1) with bilinear weights
# [0.25, 0.75, 0.75, 0.25] (IDAUp.fill_upconv_weights):
#   out[2m]   = 0.75*in[m] + 0.25*in[m-1]
#   out[2m+1] = 0.75*in[m] + 0.25*in[m+1]
_UP_TAPS = (((0, 0.75), (-1, 0.25)),   # output parity 0
            ((0, 0.75), (1, 0.25)))    # output parity 1


# --------------------------------- kernel ------------------------------------

def _ida_stage_kernel(cur_ref, prev_ref, wp_ref, g0_ref, gm_ref, gp_ref,
                      psc_ref, pbi_ref, nsc_ref, nbi_ref, o_ref,
                      xe_ref, xcol_ref, pe_ref, s_ref, *, H, W, Cin, C):
    """Fused IDAUp stage for one batch element.

    cur_ref : (1, H*W, Cin)        bf16  flattened NHWC input of this level
    prev_ref: (1, 2H*W, 2C)        bf16  prev level, lanes = [col s=0 | col s=1]
    wp_ref  : (9*Cin, C)           bf16  proj conv weight (im2col / tap-major)
    g0_ref  : (3, 4C, 2C)          bf16  node weights, coarse-col shift a=0
    gm_ref  : (3, 2C, C)           bf16  node weights, a=-1 (even output cols)
    gp_ref  : (3, 2C, C)           bf16  node weights, a=+1 (odd  output cols)
    o_ref   : (1, 2H*W, 2C)        bf16  row-major equal to (2H, 2W, C)
    """
    f32 = jnp.float32
    HW = H * W
    HW2 = 2 * HW          # rows of the column-parity-factored fine image
    P = W + 1             # flat-row zero pad on each side of extended images

    # --------- proj: 3x3 conv (single im2col matmul, K = 9*Cin) + BN + ReLU ----
    xe_ref[0:P, :] = jnp.zeros((P, Cin), xe_ref.dtype)
    xe_ref[P + HW:, :] = jnp.zeros((P, Cin), xe_ref.dtype)
    xe_ref[P:P + HW, :] = cur_ref[0]

    col = jax.lax.broadcasted_iota(jnp.int32, (HW, 1), 0) % W
    mask_l = col == 0
    mask_r = col == W - 1

    t = 0
    for di in (-1, 0, 1):
        for dj in (-1, 0, 1):
            base = P + di * W + dj
            sl = xe_ref[base:base + HW, :]
            if dj == -1:
                sl = jnp.where(mask_l, 0.0, sl)
            elif dj == 1:
                sl = jnp.where(mask_r, 0.0, sl)
            xcol_ref[:, t * Cin:(t + 1) * Cin] = sl
            t += 1
    p = jnp.dot(xcol_ref[...], wp_ref[...], preferred_element_type=f32)
    p = jnp.maximum(p * psc_ref[...] + pbi_ref[...], 0.0)           # (HW, C) f32

    # --------- bilinear 2x upsample: 4 parity planes straight from pe_ref ------
    pe_ref[0:P, :] = jnp.zeros((P, C), f32)
    pe_ref[P + HW:, :] = jnp.zeros((P, C), f32)
    pe_ref[P:P + HW, :] = p

    planes = {}
    for r in (0, 1):
        for s in (0, 1):
            acc = jnp.zeros((HW, C), f32)
            for a, wa in _UP_TAPS[r]:
                for b, wb in _UP_TAPS[s]:
                    base = P + a * W + b
                    sl = pe_ref[base:base + HW, :]
                    if b == -1:
                        sl = jnp.where(mask_l, 0.0, sl)
                    elif b == 1:
                        sl = jnp.where(mask_r, 0.0, sl)
                    acc = acc + (wa * wb) * sl
            planes[(r, s)] = acc

    # --------- build the node-conv input scratch (column-parity factored) ------
    # s_ref rows  : zero pad (P) | fine-row-major x coarse-col interior | pad (P)
    # s_ref lanes : [s=0: prev C, u C | s=1: prev C, u C]
    s_ref[0:P, :] = jnp.zeros((P, 4 * C), s_ref.dtype)
    s_ref[P + HW2:, :] = jnp.zeros((P, 4 * C), s_ref.dtype)
    pv = prev_ref[0]                                   # (HW2, 2C) bf16
    s_ref[P:P + HW2, 0:C] = pv[:, 0:C]                 # prev, col parity 0
    s_ref[P:P + HW2, 2 * C:3 * C] = pv[:, C:2 * C]     # prev, col parity 1
    for s in (0, 1):
        a0 = planes[(0, s)].reshape(H, W, C)
        a1 = planes[(1, s)].reshape(H, W, C)
        v = jnp.stack([a0, a1], axis=1).reshape(HW2, C)        # row interleave
        lane0 = (1 + 2 * s) * C                                # s=0 -> C, s=1 -> 3C
        s_ref[P:P + HW2, lane0:lane0 + C] = v.astype(s_ref.dtype)

    # --------- node conv: per row shift di, 1 matmul K=4C + 2 matmuls K=2C -----
    coln = jax.lax.broadcasted_iota(jnp.int32, (HW2, 1), 0) % W
    nmask_l = coln == 0
    nmask_r = coln == W - 1

    acc0 = jnp.zeros((HW2, C), f32)      # even output columns
    acc1 = jnp.zeros((HW2, C), f32)      # odd  output columns
    for i, di in enumerate((-1, 0, 1)):
        base = P + di * W
        both = jnp.dot(s_ref[base:base + HW2, :], g0_ref[i],
                       preferred_element_type=f32)
        acc0 = acc0 + both[:, 0:C]
        acc1 = acc1 + both[:, C:2 * C]
        left = jnp.where(nmask_l, 0.0,
                         s_ref[base - 1:base - 1 + HW2, 2 * C:4 * C])
        acc0 = acc0 + jnp.dot(left, gm_ref[i], preferred_element_type=f32)
        right = jnp.where(nmask_r, 0.0,
                          s_ref[base + 1:base + 1 + HW2, 0:2 * C])
        acc1 = acc1 + jnp.dot(right, gp_ref[i], preferred_element_type=f32)

    y0 = jnp.maximum(acc0 * nsc_ref[...] + nbi_ref[...], 0.0)
    y1 = jnp.maximum(acc1 * nsc_ref[...] + nbi_ref[...], 0.0)
    o_ref[0] = jnp.concatenate([y0, y1], axis=-1).astype(o_ref.dtype)


# -------------------------------- wrapper ------------------------------------

def ida_stage_fused(prev, cur, p):
    """prev: (B, 2H, 2W, C), cur: (B, H, W, Cin) -> (B, 2H, 2W, C) bf16."""
    prev = prev.astype(jnp.bfloat16)
    cur = cur.astype(jnp.bfloat16)
    B, H, W, Cin = cur.shape
    Bp, H2, W2, C = prev.shape
    assert Bp == B and H2 == 2 * H and W2 == 2 * W
    HW, HW2 = H * W, H2 * W

    wp = p["proj"]["w"].reshape(9 * Cin, C).astype(jnp.bfloat16)
    wn = p["node"]["w"].astype(jnp.float32)          # (3, 3, 2C, C) HWIO
    g0 = jnp.stack([
        jnp.concatenate([
            jnp.concatenate([wn[ki, 1], wn[ki, 0]], axis=-1),
            jnp.concatenate([wn[ki, 2], wn[ki, 1]], axis=-1)], axis=0)
        for ki in range(3)], axis=0).astype(jnp.bfloat16)        # (3, 4C, 2C)
    gm = wn[:, 0].astype(jnp.bfloat16)                           # (3, 2C, C)
    gp = wn[:, 2].astype(jnp.bfloat16)                           # (3, 2C, C)
    psc, pbi = p["proj"]["scale"], p["proj"]["bias"]
    nsc, nbi = p["node"]["scale"], p["node"]["bias"]

    cur2 = cur.reshape(B, HW, Cin)                   # free row-major reshapes
    prev2 = prev.reshape(B, HW2, 2 * C)

    kernel = functools.partial(_ida_stage_kernel, H=H, W=W, Cin=Cin, C=C)

    flops = B * (2 * HW * 9 * Cin * C + 32 * HW * C + 2 * 72 * HW * C * C)
    bytes_accessed = 2 * (cur2.size + prev2.size + B * HW2 * 2 * C
                          + wp.size + g0.size + gm.size + gp.size) + 16 * C

    ext = 2 * W + 2
    vmem_est = (2 * 2 * HW * Cin + 2 * 2 * HW2 * 2 * C + 2 * 2 * HW2 * 2 * C
                + 2 * (wp.size + g0.size + gm.size + gp.size)
                + 2 * (HW + ext) * Cin + 2 * HW * 9 * Cin
                + 4 * (HW + ext) * C + 2 * (HW2 + ext) * 4 * C)
    vmem_limit = int(min(max(4 * vmem_est, 32 * 2**20), 64 * 2**20))

    out = pl.pallas_call(
        kernel,
        out_shape=jax.ShapeDtypeStruct((B, HW2, 2 * C), jnp.bfloat16),
        grid=(B,),
        in_specs=[
            pl.BlockSpec((1, HW, Cin), lambda b: (b, 0, 0)),
            pl.BlockSpec((1, HW2, 2 * C), lambda b: (b, 0, 0)),
            pl.BlockSpec((9 * Cin, C), lambda b: (0, 0)),
            pl.BlockSpec((3, 4 * C, 2 * C), lambda b: (0, 0, 0)),
            pl.BlockSpec((3, 2 * C, C), lambda b: (0, 0, 0)),
            pl.BlockSpec((3, 2 * C, C), lambda b: (0, 0, 0)),
            pl.BlockSpec((1, C), lambda b: (0, 0)),
            pl.BlockSpec((1, C), lambda b: (0, 0)),
            pl.BlockSpec((1, C), lambda b: (0, 0)),
            pl.BlockSpec((1, C), lambda b: (0, 0)),
        ],
        out_specs=pl.BlockSpec((1, HW2, 2 * C), lambda b: (b, 0, 0)),
        scratch_shapes=[
            pltpu.VMEM((HW + ext, Cin), jnp.bfloat16),      # zero-extended cur
            pltpu.VMEM((HW, 9 * Cin), jnp.bfloat16),        # proj im2col
            pltpu.VMEM((HW + ext, C), jnp.float32),         # zero-extended proj out
            pltpu.VMEM((HW2 + ext, 4 * C), jnp.bfloat16),   # node concat (factored)
        ],
        compiler_params=pltpu.CompilerParams(
            dimension_semantics=("parallel",),
            vmem_limit_bytes=vmem_limit),
        cost_estimate=pl.CostEstimate(flops=flops, transcendentals=0,
                                      bytes_accessed=bytes_accessed),
    )(cur2, prev2, wp, g0, gm, gp, psc, pbi, nsc, nbi)
    # (B, 2H*W, 2C) row-major == (B, 2H, 2W, C): free reinterpretation.
    return out.reshape(B, H2, W2, C)


# -------------------------- parameter construction ---------------------------

def _make_conv_block_params(key, cin, cout):
    # Conv2dBlock: 3x3 conv (bias=False, normal(0, sqrt(2/(k*k*out)))) + BN + ReLU
    std = math.sqrt(2.0 / (3 * 3 * cout))
    w = std * jax.random.normal(key, (3, 3, cin, cout), jnp.float32)   # HWIO
    scale = jnp.full((1, cout), 1.0 / math.sqrt(1.0 + _BN_EPS), jnp.float32)
    bias = jnp.zeros((1, cout), jnp.float32)
    return {"w": w, "scale": scale, "bias": bias}


def _make_ida_params(key, in_channels_list, up_factors_list, out_channels):
    params = {}
    keys = jax.random.split(key, 2 * len(in_channels_list))
    for i in range(1, len(in_channels_list)):
        assert int(up_factors_list[i]) == 2, "DLAUp only constructs 2x up stages"
        params[i] = {
            "proj": _make_conv_block_params(keys[2 * i], in_channels_list[i], out_channels),
            "node": _make_conv_block_params(keys[2 * i + 1], 2 * out_channels, out_channels),
        }
    return params


def make_dlaup(key, in_channels_list=(64, 128, 256, 512),
               scales_list=(1, 2, 4, 8), start_level=2):
    """Replicates DLAUp.__init__ bookkeeping (channel/scale rewriting)."""
    in_ch = list(in_channels_list)
    scales = np.array(scales_list, dtype=int)
    keys = jax.random.split(key, len(in_ch))
    idas = {}
    for i in range(len(in_ch) - 1):
        j = -i - 2
        idas[i] = _make_ida_params(keys[i], tuple(in_ch[j:]),
                                   (scales[j:] // scales[j]).tolist(), in_ch[j])
        scales[j + 1:] = scales[j]
        in_ch[j + 1:] = [in_ch[j] for _ in in_ch[j + 1:]]
    return {"idas": idas, "start_level": start_level}


# ---------------------------------- forward ----------------------------------

def ida_forward(params, layers, stage_fn):
    layers = list(layers)
    for i in range(1, len(layers)):
        layers[i] = stage_fn(layers[i - 1], layers[i], params[i])
    return layers


def dlaup_forward(model, layers, stage_fn=ida_stage_fused):
    layers = list(layers[model["start_level"]:])
    assert len(layers) > 1
    for i in range(len(layers) - 1):
        layers[-i - 2:] = ida_forward(model["idas"][i], layers[-i - 2:], stage_fn)
    return [layers[-1]]


# ----------------------------- pure-JAX reference -----------------------------

def _conv3x3_bn_relu_ref(x, w, scale, bias):
    xb = x.astype(jnp.bfloat16).astype(jnp.float32)
    wb = w.astype(jnp.bfloat16).astype(jnp.float32)
    y = jax.lax.conv_general_dilated(
        xb, wb, window_strides=(1, 1), padding="SAME",
        dimension_numbers=("NHWC", "HWIO", "NHWC"),
        precision=jax.lax.Precision.HIGHEST)
    y = y * scale.reshape(1, 1, 1, -1) + bias.reshape(1, 1, 1, -1)
    return jnp.maximum(y, 0.0)


def _bilinear_up2_ref(x):
    B, H, W, C = x.shape
    k, f = 4, 2
    c = (2 * f - 1 - f % 2) / (2.0 * f)
    w1d = jnp.array([1.0 - abs(i / f - c) for i in range(k)], jnp.float32)
    w2d = jnp.outer(w1d, w1d)
    w = jnp.tile(w2d[:, :, None, None], (1, 1, 1, C))
    return jax.lax.conv_general_dilated(
        x, w, window_strides=(1, 1), padding=((2, 2), (2, 2)),
        lhs_dilation=(2, 2),
        dimension_numbers=("NHWC", "HWIO", "NHWC"),
        feature_group_count=C,
        precision=jax.lax.Precision.HIGHEST)


def ida_stage_ref(prev, cur, p):
    x = _conv3x3_bn_relu_ref(cur.astype(jnp.float32), p["proj"]["w"],
                             p["proj"]["scale"], p["proj"]["bias"])
    x = _bilinear_up2_ref(x)
    z = jnp.concatenate([prev.astype(jnp.float32), x], axis=-1)
    y = _conv3x3_bn_relu_ref(z, p["node"]["w"], p["node"]["scale"], p["node"]["bias"])
    return y.astype(jnp.bfloat16)


# ----------------------------------- main -------------------------------------

if __name__ == "__main__":
    key = jax.random.PRNGKey(0)
    kparam, kdata = jax.random.split(key)

    # Small 4-level pyramid consistent with the module (scales 1,2,4,8).
    in_channels = [8, 16, 32, 64]
    scales = (1, 2, 4, 8)
    B, base = 2, 64
    start_level = 1          # exercises two IDAUp modules / three fused stages

    model = make_dlaup(kparam, in_channels_list=list(in_channels),
                       scales_list=scales, start_level=start_level)

    dkeys = jax.random.split(kdata, len(in_channels))
    layers_nhwc = []
    for lvl, (ch, sc) in enumerate(zip(in_channels, scales)):
        h = base // sc
        x = jax.random.normal(dkeys[lvl], (B, h, h, ch), jnp.float32)
        layers_nhwc.append(x.astype(jnp.bfloat16))

    outs = dlaup_forward(model, layers_nhwc)
    out = jax.block_until_ready(outs[0])

    # correctness check against a pure-JAX reference with the same rounding points
    refs = dlaup_forward(model, layers_nhwc, stage_fn=ida_stage_ref)
    ref = jax.block_until_ready(refs[0])
    np.testing.assert_allclose(np.asarray(jnp.asarray(out, jnp.float32)),
                               np.asarray(jnp.asarray(ref, jnp.float32)),
                               rtol=1e-2, atol=1e-2)

    out_nchw = jnp.transpose(out, (0, 3, 1, 2))   # PyTorch NCHW convention
    expected_hw = base // scales[start_level]
    assert out_nchw.shape == (B, in_channels[start_level], expected_hw, expected_hw)
    print("KERNEL_OK")
</pallas_src>

<mosaic_0001>
module attributes {stable_mosaic.version = 11 : i64} {
  func.func @_ida_stage_kernel(%arg0: i32, %arg1: memref<1x64x64xbf16, #tpu.memory_space<vmem>>, %arg2: memref<1x128x64xbf16, #tpu.memory_space<vmem>>, %arg3: memref<576x32xbf16, #tpu.memory_space<vmem>>, %arg4: memref<3x128x64xbf16, #tpu.memory_space<vmem>>, %arg5: memref<3x64x32xbf16, #tpu.memory_space<vmem>>, %arg6: memref<3x64x32xbf16, #tpu.memory_space<vmem>>, %arg7: memref<1x32xf32, #tpu.memory_space<vmem>>, %arg8: memref<1x32xf32, #tpu.memory_space<vmem>>, %arg9: memref<1x32xf32, #tpu.memory_space<vmem>>, %arg10: memref<1x32xf32, #tpu.memory_space<vmem>>, %arg11: memref<1x128x64xbf16, #tpu.memory_space<vmem>>, %arg12: memref<82x64xbf16, #tpu.memory_space<vmem>>, %arg13: memref<64x576xbf16, #tpu.memory_space<vmem>>, %arg14: memref<82x32xf32, #tpu.memory_space<vmem>>, %arg15: memref<146x128xbf16, #tpu.memory_space<vmem>>) attributes {dimension_semantics = [#tpu.dimension_semantics<parallel>], iteration_bounds = array<i64: 2>, scalar_prefetch = 0 : i64, scratch_operands = 4 : i64, tpu.core_type = #tpu.core_type<tc>, window_params = [{transform_indices = @transform_0, window_bounds = array<i64: 1, 64, 64>}, {transform_indices = @transform_1, window_bounds = array<i64: 1, 128, 64>}, {pipeline_mode = #tpu.pipeline_mode<synchronous>, transform_indices = @transform_2, window_bounds = array<i64: 576, 32>}, {pipeline_mode = #tpu.pipeline_mode<synchronous>, transform_indices = @transform_3, window_bounds = array<i64: 3, 128, 64>}, {pipeline_mode = #tpu.pipeline_mode<synchronous>, transform_indices = @transform_4, window_bounds = array<i64: 3, 64, 32>}, {pipeline_mode = #tpu.pipeline_mode<synchronous>, transform_indices = @transform_5, window_bounds = array<i64: 3, 64, 32>}, {pipeline_mode = #tpu.pipeline_mode<synchronous>, transform_indices = @transform_6, window_bounds = array<i64: 1, 32>}, {pipeline_mode = #tpu.pipeline_mode<synchronous>, transform_indices = @transform_7, window_bounds = array<i64: 1, 32>}, {pipeline_mode = #tpu.pipeline_mode<synchronous>, transform_indices = @transform_8, window_bounds = array<i64: 1, 32>}, {pipeline_mode = #tpu.pipeline_mode<synchronous>, transform_indices = @transform_9, window_bounds = array<i64: 1, 32>}, {transform_indices = @transform_10, window_bounds = array<i64: 1, 128, 64>}]} {
    %cst = arith.constant 0.000000e+00 : bf16
    %0 = vector.broadcast %cst : bf16 to vector<9x64xbf16>
    %c0 = arith.constant 0 : index
    %c0_0 = arith.constant 0 : index
    %1 = vector.load %arg12[%c0, %c0_0] : memref<82x64xbf16, #tpu.memory_space<vmem>>, vector<9x64xbf16>
    tpu.vector_store %arg12[%c0, %c0_0], %0 {strides = array<i32>} : memref<82x64xbf16, #tpu.memory_space<vmem>>, vector<9x64xbf16>,
    %cst_1 = arith.constant 0.000000e+00 : bf16
    %2 = vector.broadcast %cst_1 : bf16 to vector<9x64xbf16>
    %c73 = arith.constant 73 : index
    %c0_2 = arith.constant 0 : index
    %3 = vector.load %arg12[%c73, %c0_2] : memref<82x64xbf16, #tpu.memory_space<vmem>>, vector<9x64xbf16>
    tpu.vector_store %arg12[%c73, %c0_2], %2 {strides = array<i32>} : memref<82x64xbf16, #tpu.memory_space<vmem>>, vector<9x64xbf16>,
    %c0_3 = arith.constant 0 : index
    %c0_4 = arith.constant 0 : index
    %c0_5 = arith.constant 0 : index
    %4 = vector.load %arg1[%c0_3, %c0_4, %c0_5] : memref<1x64x64xbf16, #tpu.memory_space<vmem>>, vector<1x64x64xbf16>
    %5 = vector.shape_cast %4 : vector<1x64x64xbf16> to vector<64x64xbf16>
    %c9 = arith.constant 9 : index
    %c0_6 = arith.constant 0 : index
    %6 = vector.load %arg12[%c9, %c0_6] : memref<82x64xbf16, #tpu.memory_space<vmem>>, vector<64x64xbf16>
    tpu.vector_store %arg12[%c9, %c0_6], %5 {strides = array<i32>} : memref<82x64xbf16, #tpu.memory_space<vmem>>, vector<64x64xbf16>,
    %7 = tpu.iota {dimensions = array<i32: 0>} : vector<64x1xi32>
    %c8_i32 = arith.constant 8 : i32
    %c0_i32 = arith.constant 0 : i32
    %8 = arith.cmpi eq, %c8_i32, %c0_i32 : i32
    %c1_i32 = arith.constant 1 : i32
    %9 = arith.select %8, %c1_i32, %c8_i32 : i32
    %10 = vector.broadcast %9 : i32 to vector<64x1xi32>
    %11 = arith.remsi %7, %10 : vector<64x1xi32>
    %c0_i32_7 = arith.constant 0 : i32
    %12 = vector.broadcast %c0_i32_7 : i32 to vector<64x1xi32>
    %13 = arith.cmpi ne, %11, %12 : vector<64x1xi32>
    %c0_i32_8 = arith.constant 0 : i32
    %14 = vector.broadcast %c0_i32_8 : i32 to vector<64x1xi32>
    %15 = arith.cmpi slt, %11, %14 : vector<64x1xi32>
    %c0_i32_9 = arith.constant 0 : i32
    %16 = arith.cmpi slt, %9, %c0_i32_9 : i32
    %17 = vector.broadcast %16 : i1 to vector<64x1xi1>
    %18 = vector.broadcast %17 : vector<64x1xi1> to vector<64x1xi1>
    %19 = arith.xori %15, %18 : vector<64x1xi1>
    %20 = arith.andi %19, %13 : vector<64x1xi1>
    %21 = vector.broadcast %9 : i32 to vector<64x1xi32>
    %22 = arith.addi %11, %21 : vector<64x1xi32>
    %23 = arith.select %20, %22, %11 : vector<64x1xi1>, vector<64x1xi32>
    %c0_i32_10 = arith.constant 0 : i32
    %24 = vector.broadcast %c0_i32_10 : i32 to vector<64x1xi32>
    %25 = arith.cmpi eq, %23, %24 : vector<64x1xi32>
    %c7_i32 = arith.constant 7 : i32
    %26 = vector.broadcast %c7_i32 : i32 to vector<64x1xi32>
    %27 = arith.cmpi eq, %23, %26 : vector<64x1xi32>
    %c0_11 = arith.constant 0 : index
    %c0_12 = arith.constant 0 : index
    %28 = vector.load %arg12[%c0_11, %c0_12] : memref<82x64xbf16, #tpu.memory_space<vmem>>, vector<64x64xbf16>
    %cst_13 = arith.constant 0.000000e+00 : f32
    %29 = arith.truncf %cst_13 : f32 to bf16
    %30 = vector.shape_cast %25 : vector<64x1xi1> to vector<64x1xi1>
    %31 = vector.broadcast %30 : vector<64x1xi1> to vector<64x64xi1>
    %32 = vector.broadcast %29 : bf16 to vector<64x64xbf16>
    %33 = arith.select %31, %32, %28 : vector<64x64xi1>, vector<64x64xbf16>
    %c0_14 = arith.constant 0 : index
    %c0_15 = arith.constant 0 : index
    %34 = vector.load %arg13[%c0_14, %c0_15] : memref<64x576xbf16, #tpu.memory_space<vmem>>, vector<64x64xbf16>
    tpu.vector_store %arg13[%c0_14, %c0_15], %33 {strides = array<i32>} : memref<64x576xbf16, #tpu.memory_space<vmem>>, vector<64x64xbf16>,
    %c1 = arith.constant 1 : index
    %c0_16 = arith.constant 0 : index
    %35 = vector.load %arg12[%c1, %c0_16] : memref<82x64xbf16, #tpu.memory_space<vmem>>, vector<64x64xbf16>
    %c0_17 = arith.constant 0 : index
    %c64 = arith.constant 64 : index
    %36 = vector.load %arg13[%c0_17, %c64] : memref<64x576xbf16, #tpu.memory_space<vmem>>, vector<64x64xbf16>
    tpu.vector_store %arg13[%c0_17, %c64], %35 {strides = array<i32>} : memref<64x576xbf16, #tpu.memory_space<vmem>>, vector<64x64xbf16>,
    %c2 = arith.constant 2 : index
    %c0_18 = arith.constant 0 : index
    %37 = vector.load %arg12[%c2, %c0_18] : memref<82x64xbf16, #tpu.memory_space<vmem>>, vector<64x64xbf16>
    %cst_19 = arith.constant 0.000000e+00 : f32
    %38 = arith.truncf %cst_19 : f32 to bf16
    %39 = vector.shape_cast %27 : vector<64x1xi1> to vector<64x1xi1>
    %40 = vector.broadcast %39 : vector<64x1xi1> to vector<64x64xi1>
    %41 = vector.broadcast %38 : bf16 to vector<64x64xbf16>
    %42 = arith.select %40, %41, %37 : vector<64x64xi1>, vector<64x64xbf16>
    %c0_20 = arith.constant 0 : index
    %c128 = arith.constant 128 : index
    %43 = vector.load %arg13[%c0_20, %c128] : memref<64x576xbf16, #tpu.memory_space<vmem>>, vector<64x64xbf16>
    tpu.vector_store %arg13[%c0_20, %c128], %42 {strides = array<i32>} : memref<64x576xbf16, #tpu.memory_space<vmem>>, vector<64x64xbf16>,
    %c8 = arith.constant 8 : index
    %c0_21 = arith.constant 0 : index
    %44 = vector.load %arg12[%c8, %c0_21] : memref<82x64xbf16, #tpu.memory_space<vmem>>, vector<64x64xbf16>
    %cst_22 = arith.constant 0.000000e+00 : f32
    %45 = arith.truncf %cst_22 : f32 to bf16
    %46 = vector.shape_cast %25 : vector<64x1xi1> to vector<64x1xi1>
    %47 = vector.broadcast %46 : vector<64x1xi1> to vector<64x64xi1>
    %48 = vector.broadcast %45 : bf16 to vector<64x64xbf16>
    %49 = arith.select %47, %48, %44 : vector<64x64xi1>, vector<64x64xbf16>
    %c0_23 = arith.constant 0 : index
    %c192 = arith.constant 192 : index
    %50 = vector.load %arg13[%c0_23, %c192] : memref<64x576xbf16, #tpu.memory_space<vmem>>, vector<64x64xbf16>
    tpu.vector_store %arg13[%c0_23, %c192], %49 {strides = array<i32>} : memref<64x576xbf16, #tpu.memory_space<vmem>>, vector<64x64xbf16>,
    %c9_24 = arith.constant 9 : index
    %c0_25 = arith.constant 0 : index
    %51 = vector.load %arg12[%c9_24, %c0_25] : memref<82x64xbf16, #tpu.memory_space<vmem>>, vector<64x64xbf16>
    %c0_26 = arith.constant 0 : index
    %c256 = arith.constant 256 : index
    %52 = vector.load %arg13[%c0_26, %c256] : memref<64x576xbf16, #tpu.memory_space<vmem>>, vector<64x64xbf16>
    tpu.vector_store %arg13[%c0_26, %c256], %51 {strides = array<i32>} : memref<64x576xbf16, #tpu.memory_space<vmem>>, vector<64x64xbf16>,
    %c10 = arith.constant 10 : index
    %c0_27 = arith.constant 0 : index
    %53 = vector.load %arg12[%c10, %c0_27] : memref<82x64xbf16, #tpu.memory_space<vmem>>, vector<64x64xbf16>
    %cst_28 = arith.constant 0.000000e+00 : f32
    %54 = arith.truncf %cst_28 : f32 to bf16
    %55 = vector.shape_cast %27 : vector<64x1xi1> to vector<64x1xi1>
    %56 = vector.broadcast %55 : vector<64x1xi1> to vector<64x64xi1>
    %57 = vector.broadcast %54 : bf16 to vector<64x64xbf16>
    %58 = arith.select %56, %57, %53 : vector<64x64xi1>, vector<64x64xbf16>
    %c0_29 = arith.constant 0 : index
    %c320 = arith.constant 320 : index
    %59 = vector.load %arg13[%c0_29, %c320] : memref<64x576xbf16, #tpu.memory_space<vmem>>, vector<64x64xbf16>
    tpu.vector_store %arg13[%c0_29, %c320], %58 {strides = array<i32>} : memref<64x576xbf16, #tpu.memory_space<vmem>>, vector<64x64xbf16>,
    %c16 = arith.constant 16 : index
    %c0_30 = arith.constant 0 : index
    %60 = vector.load %arg12[%c16, %c0_30] : memref<82x64xbf16, #tpu.memory_space<vmem>>, vector<64x64xbf16>
    %cst_31 = arith.constant 0.000000e+00 : f32
    %61 = arith.truncf %cst_31 : f32 to bf16
    %62 = vector.shape_cast %25 : vector<64x1xi1> to vector<64x1xi1>
    %63 = vector.broadcast %62 : vector<64x1xi1> to vector<64x64xi1>
    %64 = vector.broadcast %61 : bf16 to vector<64x64xbf16>
    %65 = arith.select %63, %64, %60 : vector<64x64xi1>, vector<64x64xbf16>
    %c0_32 = arith.constant 0 : index
    %c384 = arith.constant 384 : index
    %66 = vector.load %arg13[%c0_32, %c384] : memref<64x576xbf16, #tpu.memory_space<vmem>>, vector<64x64xbf16>
    tpu.vector_store %arg13[%c0_32, %c384], %65 {strides = array<i32>} : memref<64x576xbf16, #tpu.memory_space<vmem>>, vector<64x64xbf16>,
    %c17 = arith.constant 17 : index
    %c0_33 = arith.constant 0 : index
    %67 = vector.load %arg12[%c17, %c0_33] : memref<82x64xbf16, #tpu.memory_space<vmem>>, vector<64x64xbf16>
    %c0_34 = arith.constant 0 : index
    %c448 = arith.constant 448 : index
    %68 = vector.load %arg13[%c0_34, %c448] : memref<64x576xbf16, #tpu.memory_space<vmem>>, vector<64x64xbf16>
    tpu.vector_store %arg13[%c0_34, %c448], %67 {strides = array<i32>} : memref<64x576xbf16, #tpu.memory_space<vmem>>, vector<64x64xbf16>,
    %c18 = arith.constant 18 : index
    %c0_35 = arith.constant 0 : index
    %69 = vector.load %arg12[%c18, %c0_35] : memref<82x64xbf16, #tpu.memory_space<vmem>>, vector<64x64xbf16>
    %cst_36 = arith.constant 0.000000e+00 : f32
    %70 = arith.truncf %cst_36 : f32 to bf16
    %71 = vector.shape_cast %27 : vector<64x1xi1> to vector<64x1xi1>
    %72 = vector.broadcast %71 : vector<64x1xi1> to vector<64x64xi1>
    %73 = vector.broadcast %70 : bf16 to vector<64x64xbf16>
    %74 = arith.select %72, %73, %69 : vector<64x64xi1>, vector<64x64xbf16>
    %c0_37 = arith.constant 0 : index
    %c512 = arith.constant 512 : index
    %75 = vector.load %arg13[%c0_37, %c512] : memref<64x576xbf16, #tpu.memory_space<vmem>>, vector<64x64xbf16>
    tpu.vector_store %arg13[%c0_37, %c512], %74 {strides = array<i32>} : memref<64x576xbf16, #tpu.memory_space<vmem>>, vector<64x64xbf16>,
    %c0_38 = arith.constant 0 : index
    %c0_39 = arith.constant 0 : index
    %76 = vector.load %arg13[%c0_38, %c0_39] : memref<64x576xbf16, #tpu.memory_space<vmem>>, vector<64x576xbf16>
    %c0_40 = arith.constant 0 : index
    %c0_41 = arith.constant 0 : index
    %77 = vector.load %arg3[%c0_40, %c0_41] : memref<576x32xbf16, #tpu.memory_space<vmem>>, vector<576x32xbf16>
    %cst_42 = arith.constant dense<0.000000e+00> : vector<64x32xf32>
    %78 = tpu.matmul %76, %77, %cst_42 {dimension_numbers = #tpu.dot_dimension_numbers<[1], [0], [0], [1], [0, 0, 1, 1], [], []>} : vector<64x576xbf16>, vector<576x32xbf16>, vector<64x32xf32> -> vector<64x32xf32>
    %c0_43 = arith.constant 0 : index
    %c0_44 = arith.constant 0 : index
    %79 = vector.load %arg7[%c0_43, %c0_44] : memref<1x32xf32, #tpu.memory_space<vmem>>, vector<1x32xf32>
    %80 = vector.broadcast %79 : vector<1x32xf32> to vector<64x32xf32>
    %81 = arith.mulf %78, %80 : vector<64x32xf32>
    %c0_45 = arith.constant 0 : index
    %c0_46 = arith.constant 0 : index
    %82 = vector.load %arg8[%c0_45, %c0_46] : memref<1x32xf32, #tpu.memory_space<vmem>>, vector<1x32xf32>
    %83 = vector.broadcast %82 : vector<1x32xf32> to vector<64x32xf32>
    %84 = arith.addf %81, %83 : vector<64x32xf32>
    %cst_47 = arith.constant 0.000000e+00 : f32
    %85 = vector.broadcast %cst_47 : f32 to vector<64x32xf32>
    %86 = arith.maximumf %84, %85 : vector<64x32xf32>
    %cst_48 = arith.constant 0.000000e+00 : f32
    %87 = vector.broadcast %cst_48 : f32 to vector<9x32xf32>
    %c0_49 = arith.constant 0 : index
    %c0_50 = arith.constant 0 : index
    %88 = vector.load %arg14[%c0_49, %c0_50] : memref<82x32xf32, #tpu.memory_space<vmem>>, vector<9x32xf32>
    tpu.vector_store %arg14[%c0_49, %c0_50], %87 {strides = array<i32>} : memref<82x32xf32, #tpu.memory_space<vmem>>, vector<9x32xf32>,
    %cst_51 = arith.constant 0.000000e+00 : f32
    %89 = vector.broadcast %cst_51 : f32 to vector<9x32xf32>
    %c73_52 = arith.constant 73 : index
    %c0_53 = arith.constant 0 : index
    %90 = vector.load %arg14[%c73_52, %c0_53] : memref<82x32xf32, #tpu.memory_space<vmem>>, vector<9x32xf32>
    tpu.vector_store %arg14[%c73_52, %c0_53], %89 {strides = array<i32>} : memref<82x32xf32, #tpu.memory_space<vmem>>, vector<9x32xf32>,
    %c9_54 = arith.constant 9 : index
    %c0_55 = arith.constant 0 : index
    %91 = vector.load %arg14[%c9_54, %c0_55] : memref<82x32xf32, #tpu.memory_space<vmem>>, vector<64x32xf32>
    tpu.vector_store %arg14[%c9_54, %c0_55], %86 {strides = array<i32>} : memref<82x32xf32, #tpu.memory_space<vmem>>, vector<64x32xf32>,
    %cst_56 = arith.constant 0.000000e+00 : f32
    %92 = vector.broadcast %cst_56 : f32 to vector<64x32xf32>
    %c9_57 = arith.constant 9 : index
    %c0_58 = arith.constant 0 : index
    %93 = vector.load %arg14[%c9_57, %c0_58] : memref<82x32xf32, #tpu.memory_space<vmem>>, vector<64x32xf32>
    %cst_59 = arith.constant 5.625000e-01 : f32
    %94 = vector.broadcast %cst_59 : f32 to vector<64x32xf32>
    %95 = arith.mulf %94, %93 : vector<64x32xf32>
    %96 = arith.addf %92, %95 : vector<64x32xf32>
    %c8_60 = arith.constant 8 : index
    %c0_61 = arith.constant 0 : index
    %97 = vector.load %arg14[%c8_60, %c0_61] : memref<82x32xf32, #tpu.memory_space<vmem>>, vector<64x32xf32>
    %cst_62 = arith.constant 0.000000e+00 : f32
    %98 = vector.shape_cast %25 : vector<64x1xi1> to vector<64x1xi1>
    %99 = vector.broadcast %98 : vector<64x1xi1> to vector<64x32xi1>
    %100 = vector.broadcast %cst_62 : f32 to vector<64x32xf32>
    %101 = arith.select %99, %100, %97 : vector<64x32xi1>, vector<64x32xf32>
    %cst_63 = arith.constant 1.875000e-01 : f32
    %102 = vector.broadcast %cst_63 : f32 to vector<64x32xf32>
    %103 = arith.mulf %102, %101 : vector<64x32xf32>
    %104 = arith.addf %96, %103 : vector<64x32xf32>
    %c1_64 = arith.constant 1 : index
    %c0_65 = arith.constant 0 : index
    %105 = vector.load %arg14[%c1_64, %c0_65] : memref<82x32xf32, #tpu.memory_space<vmem>>, vector<64x32xf32>
    %cst_66 = arith.constant 1.875000e-01 : f32
    %106 = vector.broadcast %cst_66 : f32 to vector<64x32xf32>
    %107 = arith.mulf %106, %105 : vector<64x32xf32>
    %108 = arith.addf %104, %107 : vector<64x32xf32>
    %c0_67 = arith.constant 0 : index
    %c0_68 = arith.constant 0 : index
    %109 = vector.load %arg14[%c0_67, %c0_68] : memref<82x32xf32, #tpu.memory_space<vmem>>, vector<64x32xf32>
    %cst_69 = arith.constant 0.000000e+00 : f32
    %110 = vector.shape_cast %25 : vector<64x1xi1> to vector<64x1xi1>
    %111 = vector.broadcast %110 : vector<64x1xi1> to vector<64x32xi1>
    %112 = vector.broadcast %cst_69 : f32 to vector<64x32xf32>
    %113 = arith.select %111, %112, %109 : vector<64x32xi1>, vector<64x32xf32>
    %cst_70 = arith.constant 6.250000e-02 : f32
    %114 = vector.broadcast %cst_70 : f32 to vector<64x32xf32>
    %115 = arith.mulf %114, %113 : vector<64x32xf32>
    %116 = arith.addf %108, %115 : vector<64x32xf32>
    %cst_71 = arith.constant 0.000000e+00 : f32
    %117 = vector.broadcast %cst_71 : f32 to vector<64x32xf32>
    %c9_72 = arith.constant 9 : index
    %c0_73 = arith.constant 0 : index
    %118 = vector.load %arg14[%c9_72, %c0_73] : memref<82x32xf32, #tpu.memory_space<vmem>>, vector<64x32xf32>
    %cst_74 = arith.constant 5.625000e-01 : f32
    %119 = vector.broadcast %cst_74 : f32 to vector<64x32xf32>
    %120 = arith.mulf %119, %118 : vector<64x32xf32>
    %121 = arith.addf %117, %120 : vector<64x32xf32>
    %c10_75 = arith.constant 10 : index
    %c0_76 = arith.constant 0 : index
    %122 = vector.load %arg14[%c10_75, %c0_76] : memref<82x32xf32, #tpu.memory_space<vmem>>, vector<64x32xf32>
    %cst_77 = arith.constant 0.000000e+00 : f32
    %123 = vector.shape_cast %27 : vector<64x1xi1> to vector<64x1xi1>
    %124 = vector.broadcast %123 : vector<64x1xi1> to vector<64x32xi1>
    %125 = vector.broadcast %cst_77 : f32 to vector<64x32xf32>
    %126 = arith.select %124, %125, %122 : vector<64x32xi1>, vector<64x32xf32>
    %cst_78 = arith.constant 1.875000e-01 : f32
    %127 = vector.broadcast %cst_78 : f32 to vector<64x32xf32>
    %128 = arith.mulf %127, %126 : vector<64x32xf32>
    %129 = arith.addf %121, %128 : vector<64x32xf32>
    %c1_79 = arith.constant 1 : index
    %c0_80 = arith.constant 0 : index
    %130 = vector.load %arg14[%c1_79, %c0_80] : memref<82x32xf32, #tpu.memory_space<vmem>>, vector<64x32xf32>
    %cst_81 = arith.constant 1.875000e-01 : f32
    %131 = vector.broadcast %cst_81 : f32 to vector<64x32xf32>
    %132 = arith.mulf %131, %130 : vector<64x32xf32>
    %133 = arith.addf %129, %132 : vector<64x32xf32>
    %c2_82 = arith.constant 2 : index
    %c0_83 = arith.constant 0 : index
    %134 = vector.load %arg14[%c2_82, %c0_83] : memref<82x32xf32, #tpu.memory_space<vmem>>, vector<64x32xf32>
    %cst_84 = arith.constant 0.000000e+00 : f32
    %135 = vector.shape_cast %27 : vector<64x1xi1> to vector<64x1xi1>
    %136 = vector.broadcast %135 : vector<64x1xi1> to vector<64x32xi1>
    %137 = vector.broadcast %cst_84 : f32 to vector<64x32xf32>
    %138 = arith.select %136, %137, %134 : vector<64x32xi1>, vector<64x32xf32>
    %cst_85 = arith.constant 6.250000e-02 : f32
    %139 = vector.broadcast %cst_85 : f32 to vector<64x32xf32>
    %140 = arith.mulf %139, %138 : vector<64x32xf32>
    %141 = arith.addf %133, %140 : vector<64x32xf32>
    %cst_86 = arith.constant 0.000000e+00 : f32
    %142 = vector.broadcast %cst_86 : f32 to vector<64x32xf32>
    %c9_87 = arith.constant 9 : index
    %c0_88 = arith.constant 0 : index
    %143 = vector.load %arg14[%c9_87, %c0_88] : memref<82x32xf32, #tpu.memory_space<vmem>>, vector<64x32xf32>
    %cst_89 = arith.constant 5.625000e-01 : f32
    %144 = vector.broadcast %cst_89 : f32 to vector<64x32xf32>
    %145 = arith.mulf %144, %143 : vector<64x32xf32>
    %146 = arith.addf %142, %145 : vector<64x32xf32>
    %c8_90 = arith.constant 8 : index
    %c0_91 = arith.constant 0 : index
    %147 = vector.load %arg14[%c8_90, %c0_91] : memref<82x32xf32, #tpu.memory_space<vmem>>, vector<64x32xf32>
    %cst_92 = arith.constant 0.000000e+00 : f32
    %148 = vector.shape_cast %25 : vector<64x1xi1> to vector<64x1xi1>
    %149 = vector.broadcast %148 : vector<64x1xi1> to vector<64x32xi1>
    %150 = vector.broadcast %cst_92 : f32 to vector<64x32xf32>
    %151 = arith.select %149, %150, %147 : vector<64x32xi1>, vector<64x32xf32>
    %cst_93 = arith.constant 1.875000e-01 : f32
    %152 = vector.broadcast %cst_93 : f32 to vector<64x32xf32>
    %153 = arith.mulf %152, %151 : vector<64x32xf32>
    %154 = arith.addf %146, %153 : vector<64x32xf32>
    %c17_94 = arith.constant 17 : index
    %c0_95 = arith.constant 0 : index
    %155 = vector.load %arg14[%c17_94, %c0_95] : memref<82x32xf32, #tpu.memory_space<vmem>>, vector<64x32xf32>
    %cst_96 = arith.constant 1.875000e-01 : f32
    %156 = vector.broadcast %cst_96 : f32 to vector<64x32xf32>
    %157 = arith.mulf %156, %155 : vector<64x32xf32>
    %158 = arith.addf %154, %157 : vector<64x32xf32>
    %c16_97 = arith.constant 16 : index
    %c0_98 = arith.constant 0 : index
    %159 = vector.load %arg14[%c16_97, %c0_98] : memref<82x32xf32, #tpu.memory_space<vmem>>, vector<64x32xf32>
    %cst_99 = arith.constant 0.000000e+00 : f32
    %160 = vector.shape_cast %25 : vector<64x1xi1> to vector<64x1xi1>
    %161 = vector.broadcast %160 : vector<64x1xi1> to vector<64x32xi1>
    %162 = vector.broadcast %cst_99 : f32 to vector<64x32xf32>
    %163 = arith.select %161, %162, %159 : vector<64x32xi1>, vector<64x32xf32>
    %cst_100 = arith.constant 6.250000e-02 : f32
    %164 = vector.broadcast %cst_100 : f32 to vector<64x32xf32>
    %165 = arith.mulf %164, %163 : vector<64x32xf32>
    %166 = arith.addf %158, %165 : vector<64x32xf32>
    %cst_101 = arith.constant 0.000000e+00 : f32
    %167 = vector.broadcast %cst_101 : f32 to vector<64x32xf32>
    %c9_102 = arith.constant 9 : index
    %c0_103 = arith.constant 0 : index
    %168 = vector.load %arg14[%c9_102, %c0_103] : memref<82x32xf32, #tpu.memory_space<vmem>>, vector<64x32xf32>
    %cst_104 = arith.constant 5.625000e-01 : f32
    %169 = vector.broadcast %cst_104 : f32 to vector<64x32xf32>
    %170 = arith.mulf %169, %168 : vector<64x32xf32>
    %171 = arith.addf %167, %170 : vector<64x32xf32>
    %c10_105 = arith.constant 10 : index
    %c0_106 = arith.constant 0 : index
    %172 = vector.load %arg14[%c10_105, %c0_106] : memref<82x32xf32, #tpu.memory_space<vmem>>, vector<64x32xf32>
    %cst_107 = arith.constant 0.000000e+00 : f32
    %173 = vector.shape_cast %27 : vector<64x1xi1> to vector<64x1xi1>
    %174 = vector.broadcast %173 : vector<64x1xi1> to vector<64x32xi1>
    %175 = vector.broadcast %cst_107 : f32 to vector<64x32xf32>
    %176 = arith.select %174, %175, %172 : vector<64x32xi1>, vector<64x32xf32>
    %cst_108 = arith.constant 1.875000e-01 : f32
    %177 = vector.broadcast %cst_108 : f32 to vector<64x32xf32>
    %178 = arith.mulf %177, %176 : vector<64x32xf32>
    %179 = arith.addf %171, %178 : vector<64x32xf32>
    %c17_109 = arith.constant 17 : index
    %c0_110 = arith.constant 0 : index
    %180 = vector.load %arg14[%c17_109, %c0_110] : memref<82x32xf32, #tpu.memory_space<vmem>>, vector<64x32xf32>
    %cst_111 = arith.constant 1.875000e-01 : f32
    %181 = vector.broadcast %cst_111 : f32 to vector<64x32xf32>
    %182 = arith.mulf %181, %180 : vector<64x32xf32>
    %183 = arith.addf %179, %182 : vector<64x32xf32>
    %c18_112 = arith.constant 18 : index
    %c0_113 = arith.constant 0 : index
    %184 = vector.load %arg14[%c18_112, %c0_113] : memref<82x32xf32, #tpu.memory_space<vmem>>, vector<64x32xf32>
    %cst_114 = arith.constant 0.000000e+00 : f32
    %185 = vector.shape_cast %27 : vector<64x1xi1> to vector<64x1xi1>
    %186 = vector.broadcast %185 : vector<64x1xi1> to vector<64x32xi1>
    %187 = vector.broadcast %cst_114 : f32 to vector<64x32xf32>
    %188 = arith.select %186, %187, %184 : vector<64x32xi1>, vector<64x32xf32>
    %cst_115 = arith.constant 6.250000e-02 : f32
    %189 = vector.broadcast %cst_115 : f32 to vector<64x32xf32>
    %190 = arith.mulf %189, %188 : vector<64x32xf32>
    %191 = arith.addf %183, %190 : vector<64x32xf32>
    %cst_116 = arith.constant 0.000000e+00 : bf16
    %192 = vector.broadcast %cst_116 : bf16 to vector<9x128xbf16>
    %c0_117 = arith.constant 0 : index
    %c0_118 = arith.constant 0 : index
    %193 = vector.load %arg15[%c0_117, %c0_118] : memref<146x128xbf16, #tpu.memory_space<vmem>>, vector<9x128xbf16>
    tpu.vector_store %arg15[%c0_117, %c0_118], %192 {strides = array<i32>} : memref<146x128xbf16, #tpu.memory_space<vmem>>, vector<9x128xbf16>,
    %cst_119 = arith.constant 0.000000e+00 : bf16
    %194 = vector.broadcast %cst_119 : bf16 to vector<9x128xbf16>
    %c137 = arith.constant 137 : index
    %c0_120 = arith.constant 0 : index
    %195 = vector.load %arg15[%c137, %c0_120] : memref<146x128xbf16, #tpu.memory_space<vmem>>, vector<9x128xbf16>
    tpu.vector_store %arg15[%c137, %c0_120], %194 {strides = array<i32>} : memref<146x128xbf16, #tpu.memory_space<vmem>>, vector<9x128xbf16>,
    %c0_121 = arith.constant 0 : index
    %c0_122 = arith.constant 0 : index
    %c0_123 = arith.constant 0 : index
    %196 = vector.load %arg2[%c0_121, %c0_122, %c0_123] : memref<1x128x64xbf16, #tpu.memory_space<vmem>>, vector<1x128x64xbf16>
    %197 = vector.shape_cast %196 : vector<1x128x64xbf16> to vector<128x64xbf16>
    %198 = vector.extract_strided_slice %197 {offsets = [0, 0], sizes = [128, 32], strides = [1, 1]} : vector<128x64xbf16> to vector<128x32xbf16>
    %c9_124 = arith.constant 9 : index
    %c0_125 = arith.constant 0 : index
    %199 = vector.load %arg15[%c9_124, %c0_125] : memref<146x128xbf16, #tpu.memory_space<vmem>>, vector<128x32xbf16>
    tpu.vector_store %arg15[%c9_124, %c0_125], %198 {strides = array<i32>} : memref<146x128xbf16, #tpu.memory_space<vmem>>, vector<128x32xbf16>,
    %200 = vector.extract_strided_slice %197 {offsets = [0, 32], sizes = [128, 32], strides = [1, 1]} : vector<128x64xbf16> to vector<128x32xbf16>
    %c9_126 = arith.constant 9 : index
    %c64_127 = arith.constant 64 : index
    %201 = vector.load %arg15[%c9_126, %c64_127] : memref<146x128xbf16, #tpu.memory_space<vmem>>, vector<128x32xbf16>
    tpu.vector_store %arg15[%c9_126, %c64_127], %200 {strides = array<i32>} : memref<146x128xbf16, #tpu.memory_space<vmem>>, vector<128x32xbf16>,
    %202 = vector.shape_cast %116 : vector<64x32xf32> to vector<8x8x32xf32>
    %203 = vector.shape_cast %166 : vector<64x32xf32> to vector<8x8x32xf32>
    %204 = vector.shape_cast %202 : vector<8x8x32xf32> to vector<8x1x8x32xf32>
    %205 = vector.shape_cast %203 : vector<8x8x32xf32> to vector<8x1x8x32xf32>
    %206 = tpu.concatenate %204, %205 in 1 : vector<8x1x8x32xf32>, vector<8x1x8x32xf32> -> vector<8x2x8x32xf32>
    %207 = vector.shape_cast %206 : vector<8x2x8x32xf32> to vector<128x32xf32>
    %208 = arith.truncf %207 : vector<128x32xf32> to vector<128x32xbf16>
    %c9_128 = arith.constant 9 : index
    %c32 = arith.constant 32 : index
    %209 = vector.load %arg15[%c9_128, %c32] : memref<146x128xbf16, #tpu.memory_space<vmem>>, vector<128x32xbf16>
    tpu.vector_store %arg15[%c9_128, %c32], %208 {strides = array<i32>} : memref<146x128xbf16, #tpu.memory_space<vmem>>, vector<128x32xbf16>,
    %210 = vector.shape_cast %141 : vector<64x32xf32> to vector<8x8x32xf32>
    %211 = vector.shape_cast %191 : vector<64x32xf32> to vector<8x8x32xf32>
    %212 = vector.shape_cast %210 : vector<8x8x32xf32> to vector<8x1x8x32xf32>
    %213 = vector.shape_cast %211 : vector<8x8x32xf32> to vector<8x1x8x32xf32>
    %214 = tpu.concatenate %212, %213 in 1 : vector<8x1x8x32xf32>, vector<8x1x8x32xf32> -> vector<8x2x8x32xf32>
    %215 = vector.shape_cast %214 : vector<8x2x8x32xf32> to vector<128x32xf32>
    %216 = arith.truncf %215 : vector<128x32xf32> to vector<128x32xbf16>
    %c9_129 = arith.constant 9 : index
    %c96 = arith.constant 96 : index
    %217 = vector.load %arg15[%c9_129, %c96] : memref<146x128xbf16, #tpu.memory_space<vmem>>, vector<128x32xbf16>
    tpu.vector_store %arg15[%c9_129, %c96], %216 {strides = array<i32>} : memref<146x128xbf16, #tpu.memory_space<vmem>>, vector<128x32xbf16>,
    %218 = tpu.iota {dimensions = array<i32: 0>} : vector<128x1xi32>
    %c8_i32_130 = arith.constant 8 : i32
    %c0_i32_131 = arith.constant 0 : i32
    %219 = arith.cmpi eq, %c8_i32_130, %c0_i32_131 : i32
    %c1_i32_132 = arith.constant 1 : i32
    %220 = arith.select %219, %c1_i32_132, %c8_i32_130 : i32
    %221 = vector.broadcast %220 : i32 to vector<128x1xi32>
    %222 = arith.remsi %218, %221 : vector<128x1xi32>
    %c0_i32_133 = arith.constant 0 : i32
    %223 = vector.broadcast %c0_i32_133 : i32 to vector<128x1xi32>
    %224 = arith.cmpi ne, %222, %223 : vector<128x1xi32>
    %c0_i32_134 = arith.constant 0 : i32
    %225 = vector.broadcast %c0_i32_134 : i32 to vector<128x1xi32>
    %226 = arith.cmpi slt, %222, %225 : vector<128x1xi32>
    %c0_i32_135 = arith.constant 0 : i32
    %227 = arith.cmpi slt, %220, %c0_i32_135 : i32
    %228 = vector.broadcast %227 : i1 to vector<128x1xi1>
    %229 = vector.broadcast %228 : vector<128x1xi1> to vector<128x1xi1>
    %230 = arith.xori %226, %229 : vector<128x1xi1>
    %231 = arith.andi %230, %224 : vector<128x1xi1>
    %232 = vector.broadcast %220 : i32 to vector<128x1xi32>
    %233 = arith.addi %222, %232 : vector<128x1xi32>
    %234 = arith.select %231, %233, %222 : vector<128x1xi1>, vector<128x1xi32>
    %c0_i32_136 = arith.constant 0 : i32
    %235 = vector.broadcast %c0_i32_136 : i32 to vector<128x1xi32>
    %236 = arith.cmpi eq, %234, %235 : vector<128x1xi32>
    %c7_i32_137 = arith.constant 7 : i32
    %237 = vector.broadcast %c7_i32_137 : i32 to vector<128x1xi32>
    %238 = arith.cmpi eq, %234, %237 : vector<128x1xi32>
    %cst_138 = arith.constant 0.000000e+00 : f32
    %239 = vector.broadcast %cst_138 : f32 to vector<128x32xf32>
    %cst_139 = arith.constant 0.000000e+00 : f32
    %240 = vector.broadcast %cst_139 : f32 to vector<128x32xf32>
    %c1_140 = arith.constant 1 : index
    %c0_141 = arith.constant 0 : index
    %241 = vector.load %arg15[%c1_140, %c0_141] : memref<146x128xbf16, #tpu.memory_space<vmem>>, vector<128x128xbf16>
    %c0_142 = arith.constant 0 : index
    %c0_143 = arith.constant 0 : index
    %c0_144 = arith.constant 0 : index
    %242 = vector.load %arg4[%c0_142, %c0_143, %c0_144] : memref<3x128x64xbf16, #tpu.memory_space<vmem>>, vector<1x128x64xbf16>
    %243 = vector.shape_cast %242 : vector<1x128x64xbf16> to vector<128x64xbf16>
    %cst_145 = arith.constant dense<0.000000e+00> : vector<128x64xf32>
    %244 = tpu.matmul %241, %243, %cst_145 {dimension_numbers = #tpu.dot_dimension_numbers<[1], [0], [0], [1], [0, 0, 1, 1], [], []>} : vector<128x128xbf16>, vector<128x64xbf16>, vector<128x64xf32> -> vector<128x64xf32>
    %245 = vector.extract_strided_slice %244 {offsets = [0, 0], sizes = [128, 32], strides = [1, 1]} : vector<128x64xf32> to vector<128x32xf32>
    %246 = arith.addf %239, %245 : vector<128x32xf32>
    %247 = vector.extract_strided_slice %244 {offsets = [0, 32], sizes = [128, 32], strides = [1, 1]} : vector<128x64xf32> to vector<128x32xf32>
    %248 = arith.addf %240, %247 : vector<128x32xf32>
    %c0_146 = arith.constant 0 : index
    %c64_147 = arith.constant 64 : index
    %249 = vector.load %arg15[%c0_146, %c64_147] : memref<146x128xbf16, #tpu.memory_space<vmem>>, vector<128x64xbf16>
    %cst_148 = arith.constant 0.000000e+00 : f32
    %250 = arith.truncf %cst_148 : f32 to bf16
    %251 = vector.shape_cast %236 : vector<128x1xi1> to vector<128x1xi1>
    %252 = vector.broadcast %251 : vector<128x1xi1> to vector<128x64xi1>
    %253 = vector.broadcast %250 : bf16 to vector<128x64xbf16>
    %254 = arith.select %252, %253, %249 : vector<128x64xi1>, vector<128x64xbf16>
    %c0_149 = arith.constant 0 : index
    %c0_150 = arith.constant 0 : index
    %c0_151 = arith.constant 0 : index
    %255 = vector.load %arg5[%c0_149, %c0_150, %c0_151] : memref<3x64x32xbf16, #tpu.memory_space<vmem>>, vector<1x64x32xbf16>
    %256 = vector.shape_cast %255 : vector<1x64x32xbf16> to vector<64x32xbf16>
    %cst_152 = arith.constant dense<0.000000e+00> : vector<128x32xf32>
    %257 = tpu.matmul %254, %256, %cst_152 {dimension_numbers = #tpu.dot_dimension_numbers<[1], [0], [0], [1], [0, 0, 1, 1], [], []>} : vector<128x64xbf16>, vector<64x32xbf16>, vector<128x32xf32> -> vector<128x32xf32>
    %258 = arith.addf %246, %257 : vector<128x32xf32>
    %c2_153 = arith.constant 2 : index
    %c0_154 = arith.constant 0 : index
    %259 = vector.load %arg15[%c2_153, %c0_154] : memref<146x128xbf16, #tpu.memory_space<vmem>>, vector<128x64xbf16>
    %cst_155 = arith.constant 0.000000e+00 : f32
    %260 = arith.truncf %cst_155 : f32 to bf16
    %261 = vector.shape_cast %238 : vector<128x1xi1> to vector<128x1xi1>
    %262 = vector.broadcast %261 : vector<128x1xi1> to vector<128x64xi1>
    %263 = vector.broadcast %260 : bf16 to vector<128x64xbf16>
    %264 = arith.select %262, %263, %259 : vector<128x64xi1>, vector<128x64xbf16>
    %c0_156 = arith.constant 0 : index
    %c0_157 = arith.constant 0 : index
    %c0_158 = arith.constant 0 : index
    %265 = vector.load %arg6[%c0_156, %c0_157, %c0_158] : memref<3x64x32xbf16, #tpu.memory_space<vmem>>, vector<1x64x32xbf16>
    %266 = vector.shape_cast %265 : vector<1x64x32xbf16> to vector<64x32xbf16>
    %cst_159 = arith.constant dense<0.000000e+00> : vector<128x32xf32>
    %267 = tpu.matmul %264, %266, %cst_159 {dimension_numbers = #tpu.dot_dimension_numbers<[1], [0], [0], [1], [0, 0, 1, 1], [], []>} : vector<128x64xbf16>, vector<64x32xbf16>, vector<128x32xf32> -> vector<128x32xf32>
    %268 = arith.addf %248, %267 : vector<128x32xf32>
    %c9_160 = arith.constant 9 : index
    %c0_161 = arith.constant 0 : index
    %269 = vector.load %arg15[%c9_160, %c0_161] : memref<146x128xbf16, #tpu.memory_space<vmem>>, vector<128x128xbf16>
    %c1_162 = arith.constant 1 : index
    %c0_163 = arith.constant 0 : index
    %c0_164 = arith.constant 0 : index
    %270 = vector.load %arg4[%c1_162, %c0_163, %c0_164] : memref<3x128x64xbf16, #tpu.memory_space<vmem>>, vector<1x128x64xbf16>
    %271 = vector.shape_cast %270 : vector<1x128x64xbf16> to vector<128x64xbf16>
    %cst_165 = arith.constant dense<0.000000e+00> : vector<128x64xf32>
    %272 = tpu.matmul %269, %271, %cst_165 {dimension_numbers = #tpu.dot_dimension_numbers<[1], [0], [0], [1], [0, 0, 1, 1], [], []>} : vector<128x128xbf16>, vector<128x64xbf16>, vector<128x64xf32> -> vector<128x64xf32>
    %273 = vector.extract_strided_slice %272 {offsets = [0, 0], sizes = [128, 32], strides = [1, 1]} : vector<128x64xf32> to vector<128x32xf32>
    %274 = arith.addf %258, %273 : vector<128x32xf32>
    %275 = vector.extract_strided_slice %272 {offsets = [0, 32], sizes = [128, 32], strides = [1, 1]} : vector<128x64xf32> to vector<128x32xf32>
    %276 = arith.addf %268, %275 : vector<128x32xf32>
    %c8_166 = arith.constant 8 : index
    %c64_167 = arith.constant 64 : index
    %277 = vector.load %arg15[%c8_166, %c64_167] : memref<146x128xbf16, #tpu.memory_space<vmem>>, vector<128x64xbf16>
    %cst_168 = arith.constant 0.000000e+00 : f32
    %278 = arith.truncf %cst_168 : f32 to bf16
    %279 = vector.shape_cast %236 : vector<128x1xi1> to vector<128x1xi1>
    %280 = vector.broadcast %279 : vector<128x1xi1> to vector<128x64xi1>
    %281 = vector.broadcast %278 : bf16 to vector<128x64xbf16>
    %282 = arith.select %280, %281, %277 : vector<128x64xi1>, vector<128x64xbf16>
    %c1_169 = arith.constant 1 : index
    %c0_170 = arith.constant 0 : index
    %c0_171 = arith.constant 0 : index
    %283 = vector.load %arg5[%c1_169, %c0_170, %c0_171] : memref<3x64x32xbf16, #tpu.memory_space<vmem>>, vector<1x64x32xbf16>
    %284 = vector.shape_cast %283 : vector<1x64x32xbf16> to vector<64x32xbf16>
    %cst_172 = arith.constant dense<0.000000e+00> : vector<128x32xf32>
    %285 = tpu.matmul %282, %284, %cst_172 {dimension_numbers = #tpu.dot_dimension_numbers<[1], [0], [0], [1], [0, 0, 1, 1], [], []>} : vector<128x64xbf16>, vector<64x32xbf16>, vector<128x32xf32> -> vector<128x32xf32>
    %286 = arith.addf %274, %285 : vector<128x32xf32>
    %c10_173 = arith.constant 10 : index
    %c0_174 = arith.constant 0 : index
    %287 = vector.load %arg15[%c10_173, %c0_174] : memref<146x128xbf16, #tpu.memory_space<vmem>>, vector<128x64xbf16>
    %cst_175 = arith.constant 0.000000e+00 : f32
    %288 = arith.truncf %cst_175 : f32 to bf16
    %289 = vector.shape_cast %238 : vector<128x1xi1> to vector<128x1xi1>
    %290 = vector.broadcast %289 : vector<128x1xi1> to vector<128x64xi1>
    %291 = vector.broadcast %288 : bf16 to vector<128x64xbf16>
    %292 = arith.select %290, %291, %287 : vector<128x64xi1>, vector<128x64xbf16>
    %c1_176 = arith.constant 1 : index
    %c0_177 = arith.constant 0 : index
    %c0_178 = arith.constant 0 : index
    %293 = vector.load %arg6[%c1_176, %c0_177, %c0_178] : memref<3x64x32xbf16, #tpu.memory_space<vmem>>, vector<1x64x32xbf16>
    %294 = vector.shape_cast %293 : vector<1x64x32xbf16> to vector<64x32xbf16>
    %cst_179 = arith.constant dense<0.000000e+00> : vector<128x32xf32>
    %295 = tpu.matmul %292, %294, %cst_179 {dimension_numbers = #tpu.dot_dimension_numbers<[1], [0], [0], [1], [0, 0, 1, 1], [], []>} : vector<128x64xbf16>, vector<64x32xbf16>, vector<128x32xf32> -> vector<128x32xf32>
    %296 = arith.addf %276, %295 : vector<128x32xf32>
    %c17_180 = arith.constant 17 : index
    %c0_181 = arith.constant 0 : index
    %297 = vector.load %arg15[%c17_180, %c0_181] : memref<146x128xbf16, #tpu.memory_space<vmem>>, vector<128x128xbf16>
    %c2_182 = arith.constant 2 : index
    %c0_183 = arith.constant 0 : index
    %c0_184 = arith.constant 0 : index
    %298 = vector.load %arg4[%c2_182, %c0_183, %c0_184] : memref<3x128x64xbf16, #tpu.memory_space<vmem>>, vector<1x128x64xbf16>
    %299 = vector.shape_cast %298 : vector<1x128x64xbf16> to vector<128x64xbf16>
    %cst_185 = arith.constant dense<0.000000e+00> : vector<128x64xf32>
    %300 = tpu.matmul %297, %299, %cst_185 {dimension_numbers = #tpu.dot_dimension_numbers<[1], [0], [0], [1], [0, 0, 1, 1], [], []>} : vector<128x128xbf16>, vector<128x64xbf16>, vector<128x64xf32> -> vector<128x64xf32>
    %301 = vector.extract_strided_slice %300 {offsets = [0, 0], sizes = [128, 32], strides = [1, 1]} : vector<128x64xf32> to vector<128x32xf32>
    %302 = arith.addf %286, %301 : vector<128x32xf32>
    %303 = vector.extract_strided_slice %300 {offsets = [0, 32], sizes = [128, 32], strides = [1, 1]} : vector<128x64xf32> to vector<128x32xf32>
    %304 = arith.addf %296, %303 : vector<128x32xf32>
    %c16_186 = arith.constant 16 : index
    %c64_187 = arith.constant 64 : index
    %305 = vector.load %arg15[%c16_186, %c64_187] : memref<146x128xbf16, #tpu.memory_space<vmem>>, vector<128x64xbf16>
    %cst_188 = arith.constant 0.000000e+00 : f32
    %306 = arith.truncf %cst_188 : f32 to bf16
    %307 = vector.shape_cast %236 : vector<128x1xi1> to vector<128x1xi1>
    %308 = vector.broadcast %307 : vector<128x1xi1> to vector<128x64xi1>
    %309 = vector.broadcast %306 : bf16 to vector<128x64xbf16>
    %310 = arith.select %308, %309, %305 : vector<128x64xi1>, vector<128x64xbf16>
    %c2_189 = arith.constant 2 : index
    %c0_190 = arith.constant 0 : index
    %c0_191 = arith.constant 0 : index
    %311 = vector.load %arg5[%c2_189, %c0_190, %c0_191] : memref<3x64x32xbf16, #tpu.memory_space<vmem>>, vector<1x64x32xbf16>
    %312 = vector.shape_cast %311 : vector<1x64x32xbf16> to vector<64x32xbf16>
    %cst_192 = arith.constant dense<0.000000e+00> : vector<128x32xf32>
    %313 = tpu.matmul %310, %312, %cst_192 {dimension_numbers = #tpu.dot_dimension_numbers<[1], [0], [0], [1], [0, 0, 1, 1], [], []>} : vector<128x64xbf16>, vector<64x32xbf16>, vector<128x32xf32> -> vector<128x32xf32>
    %314 = arith.addf %302, %313 : vector<128x32xf32>
    %c18_193 = arith.constant 18 : index
    %c0_194 = arith.constant 0 : index
    %315 = vector.load %arg15[%c18_193, %c0_194] : memref<146x128xbf16, #tpu.memory_space<vmem>>, vector<128x64xbf16>
    %cst_195 = arith.constant 0.000000e+00 : f32
    %316 = arith.truncf %cst_195 : f32 to bf16
    %317 = vector.shape_cast %238 : vector<128x1xi1> to vector<128x1xi1>
    %318 = vector.broadcast %317 : vector<128x1xi1> to vector<128x64xi1>
    %319 = vector.broadcast %316 : bf16 to vector<128x64xbf16>
    %320 = arith.select %318, %319, %315 : vector<128x64xi1>, vector<128x64xbf16>
    %c2_196 = arith.constant 2 : index
    %c0_197 = arith.constant 0 : index
    %c0_198 = arith.constant 0 : index
    %321 = vector.load %arg6[%c2_196, %c0_197, %c0_198] : memref<3x64x32xbf16, #tpu.memory_space<vmem>>, vector<1x64x32xbf16>
    %322 = vector.shape_cast %321 : vector<1x64x32xbf16> to vector<64x32xbf16>
    %cst_199 = arith.constant dense<0.000000e+00> : vector<128x32xf32>
    %323 = tpu.matmul %320, %322, %cst_199 {dimension_numbers = #tpu.dot_dimension_numbers<[1], [0], [0], [1], [0, 0, 1, 1], [], []>} : vector<128x64xbf16>, vector<64x32xbf16>, vector<128x32xf32> -> vector<128x32xf32>
    %324 = arith.addf %304, %323 : vector<128x32xf32>
    %c0_200 = arith.constant 0 : index
    %c0_201 = arith.constant 0 : index
    %325 = vector.load %arg9[%c0_200, %c0_201] : memref<1x32xf32, #tpu.memory_space<vmem>>, vector<1x32xf32>
    %326 = vector.broadcast %325 : vector<1x32xf32> to vector<128x32xf32>
    %327 = arith.mulf %314, %326 : vector<128x32xf32>
    %c0_202 = arith.constant 0 : index
    %c0_203 = arith.constant 0 : index
    %328 = vector.load %arg10[%c0_202, %c0_203] : memref<1x32xf32, #tpu.memory_space<vmem>>, vector<1x32xf32>
    %329 = vector.broadcast %328 : vector<1x32xf32> to vector<128x32xf32>
    %330 = arith.addf %327, %329 : vector<128x32xf32>
    %cst_204 = arith.constant 0.000000e+00 : f32
    %331 = vector.broadcast %cst_204 : f32 to vector<128x32xf32>
    %332 = arith.maximumf %330, %331 : vector<128x32xf32>
    %c0_205 = arith.constant 0 : index
    %c0_206 = arith.constant 0 : index
    %333 = vector.load %arg9[%c0_205, %c0_206] : memref<1x32xf32, #tpu.memory_space<vmem>>, vector<1x32xf32>
    %334 = vector.broadcast %333 : vector<1x32xf32> to vector<128x32xf32>
    %335 = arith.mulf %324, %334 : vector<128x32xf32>
    %c0_207 = arith.constant 0 : index
    %c0_208 = arith.constant 0 : index
    %336 = vector.load %arg10[%c0_207, %c0_208] : memref<1x32xf32, #tpu.memory_space<vmem>>, vector<1x32xf32>
    %337 = vector.broadcast %336 : vector<1x32xf32> to vector<128x32xf32>
    %338 = arith.addf %335, %337 : vector<128x32xf32>
    %cst_209 = arith.constant 0.000000e+00 : f32
    %339 = vector.broadcast %cst_209 : f32 to vector<128x32xf32>
    %340 = arith.maximumf %338, %339 : vector<128x32xf32>
    %341 = tpu.concatenate %332, %340 in 1 : vector<128x32xf32>, vector<128x32xf32> -> vector<128x64xf32>
    %342 = arith.truncf %341 : vector<128x64xf32> to vector<128x64xbf16>
    %c0_210 = arith.constant 0 : index
    %c0_211 = arith.constant 0 : index
    %c0_212 = arith.constant 0 : index
    %343 = vector.load %arg11[%c0_210, %c0_211, %c0_212] : memref<1x128x64xbf16, #tpu.memory_space<vmem>>, vector<1x128x64xbf16>
    %344 = vector.shape_cast %343 : vector<1x128x64xbf16> to vector<128x64xbf16>
    %345 = vector.shape_cast %342 : vector<128x64xbf16> to vector<1x128x64xbf16>
    tpu.vector_store %arg11[%c0_210, %c0_211, %c0_212], %345 {strides = array<i32>} : memref<1x128x64xbf16, #tpu.memory_space<vmem>>, vector<1x128x64xbf16>,
    return
  }
  func.func @transform_0(%arg0: i32) -> (i32, i32, i32) {
    %c0_i32 = arith.constant 0 : i32
    %c0_i32_0 = arith.constant 0 : i32
    %c0_i32_1 = arith.constant 0 : i32
    return %arg0, %c0_i32, %c0_i32_0 : i32, i32, i32
  }
  func.func @transform_1(%arg0: i32) -> (i32, i32, i32) {
    %c0_i32 = arith.constant 0 : i32
    %c0_i32_0 = arith.constant 0 : i32
    %c0_i32_1 = arith.constant 0 : i32
    return %arg0, %c0_i32, %c0_i32_0 : i32, i32, i32
  }
  func.func @transform_2(%arg0: i32) -> (i32, i32) {
    %c0_i32 = arith.constant 0 : i32
    %c0_i32_0 = arith.constant 0 : i32
    %c0_i32_1 = arith.constant 0 : i32
    return %c0_i32, %c0_i32_0 : i32, i32
  }
  func.func @transform_3(%arg0: i32) -> (i32, i32, i32) {
    %c0_i32 = arith.constant 0 : i32
    %c0_i32_0 = arith.constant 0 : i32
    %c0_i32_1 = arith.constant 0 : i32
    %c0_i32_2 = arith.constant 0 : i32
    return %c0_i32, %c0_i32_0, %c0_i32_1 : i32, i32, i32
  }
  func.func @transform_4(%arg0: i32) -> (i32, i32, i32) {
    %c0_i32 = arith.constant 0 : i32
    %c0_i32_0 = arith.constant 0 : i32
    %c0_i32_1 = arith.constant 0 : i32
    %c0_i32_2 = arith.constant 0 : i32
    return %c0_i32, %c0_i32_0, %c0_i32_1 : i32, i32, i32
  }
  func.func @transform_5(%arg0: i32) -> (i32, i32, i32) {
    %c0_i32 = arith.constant 0 : i32
    %c0_i32_0 = arith.constant 0 : i32
    %c0_i32_1 = arith.constant 0 : i32
    %c0_i32_2 = arith.constant 0 : i32
    return %c0_i32, %c0_i32_0, %c0_i32_1 : i32, i32, i32
  }
  func.func @transform_6(%arg0: i32) -> (i32, i32) {
    %c0_i32 = arith.constant 0 : i32
    %c0_i32_0 = arith.constant 0 : i32
    %c0_i32_1 = arith.constant 0 : i32
    return %c0_i32, %c0_i32_0 : i32, i32
  }
  func.func @transform_7(%arg0: i32) -> (i32, i32) {
    %c0_i32 = arith.constant 0 : i32
    %c0_i32_0 = arith.constant 0 : i32
    %c0_i32_1 = arith.constant 0 : i32
    return %c0_i32, %c0_i32_0 : i32, i32
  }
  func.func @transform_8(%arg0: i32) -> (i32, i32) {
    %c0_i32 = arith.constant 0 : i32
    %c0_i32_0 = arith.constant 0 : i32
    %c0_i32_1 = arith.constant 0 : i32
    return %c0_i32, %c0_i32_0 : i32, i32
  }
  func.func @transform_9(%arg0: i32) -> (i32, i32) {
    %c0_i32 = arith.constant 0 : i32
    %c0_i32_0 = arith.constant 0 : i32
    %c0_i32_1 = arith.constant 0 : i32
    return %c0_i32, %c0_i32_0 : i32, i32
  }
  func.func @transform_10(%arg0: i32) -> (i32, i32, i32) {
    %c0_i32 = arith.constant 0 : i32
    %c0_i32_0 = arith.constant 0 : i32
    %c0_i32_1 = arith.constant 0 : i32
    return %arg0, %c0_i32, %c0_i32_0 : i32, i32, i32
  }
}

</mosaic_0001>

<llo_original>
// kernel: tpu_custom_call.1
$region0: #{tpu_custom_call.1}
  #allocation0 [shape = 'u32[]', space=smem, size = 0x4, offset = 0x4, fixed_abs, tag = 'smem constant byte address 0x4 - core index']
  #allocation1 [shape = 'u32[144,128]{1,0:T(1,128)}', space=vmem, size = 0x12000, scoped, tag = 'internal scratch']
  #allocation2 [shape = 'bf16[82,64]{1,0:T(8,128)(2,1)}', space=vmem, size = 0x5800, scoped, tag = 'scratch operand']
  #allocation3 [shape = 'bf16[64,576]{1,0:T(16,128)(2,1)}', space=vmem, size = 0x14000, scoped, tag = 'scratch operand']
  #allocation4 [shape = 'f32[82,32]{1,0:T(8,128)}', space=vmem, size = 0xb000, scoped, tag = 'scratch operand']
  #allocation5 [shape = 'bf16[146,128]{1,0:T(8,128)(2,1)}', space=vmem, size = 0x9800, scoped, tag = 'scratch operand']
  %s0 = inlined_call_operand.vmem [shape: bf16[2,64,64], index: 0, kind: input, shape index: {}]
  %s1 = inlined_call_operand.vmem [shape: bf16[2,128,64], index: 1, kind: input, shape index: {}]
  %s2 = inlined_call_operand.vmem [shape: bf16[576,32], index: 2, kind: input, shape index: {}]
  %s3 = inlined_call_operand.vmem [shape: bf16[3,128,64], index: 3, kind: input, shape index: {}]
  %s4 = inlined_call_operand.vmem [shape: bf16[3,64,32], index: 4, kind: input, shape index: {}]
  %s5 = inlined_call_operand.vmem [shape: bf16[3,64,32], index: 5, kind: input, shape index: {}]
  %s6 = inlined_call_operand.vmem [shape: f32[1,32], index: 6, kind: input, shape index: {}]
  %s7 = inlined_call_operand.vmem [shape: f32[1,32], index: 7, kind: input, shape index: {}]
  %s8 = inlined_call_operand.vmem [shape: f32[1,32], index: 8, kind: input, shape index: {}]
  %s9 = inlined_call_operand.vmem [shape: f32[1,32], index: 9, kind: input, shape index: {}]
  %s10 = inlined_call_operand.vmem [shape: bf16[2,128,64], index: 10, kind: output, shape index: {}]
  %s11 = sld [smem:[#allocation0]]
  $region73: #{tpu_custom_call.1} parent=0
    _
  %s13 = ssub.s32 1, %s11
  %s14 = scalar_select 0, %s13, %s11
  loop: start=0, step=1, limit=4
  $region2: #{tpu_custom_call.1} parent=0 // loop_pre_header
    _
  $region3: #{tpu_custom_call.1} parent=0 // loop_header
    %s16 = sphi 0, %s20
    %p17 = scmp.ge.s32.totalorder %s16, 4
    %s26 = sphi 0, %s28
    %s29 = sphi 0, %s26
    %s30 = sphi 0, %s29
    %s46 = sphi 0, %s30
    %s52 = sphi 0, %s54
    %s55 = sphi 0, %s52
    %s56 = sphi 0, %s55
    %s72 = sphi 0, %s56
    %s76 = sphi 0, %s76
    %s78 = sphi 0, %s76
    %s79 = sphi 0, %s78
    %s93 = sphi 0, %s79
    %s97 = sphi 0, %s97
    %s99 = sphi 0, %s97
    %s100 = sphi 0, %s99
    %s114 = sphi 0, %s100
    %s118 = sphi 0, %s118
    %s120 = sphi 0, %s118
    %s121 = sphi 0, %s120
    %s135 = sphi 0, %s121
    %s139 = sphi 0, %s139
    %s141 = sphi 0, %s139
    %s142 = sphi 0, %s141
    %s156 = sphi 0, %s142
    %s160 = sphi 0, %s160
    %s162 = sphi 0, %s160
    %s163 = sphi 0, %s162
    %s177 = sphi 0, %s163
    %s181 = sphi 0, %s181
    %s183 = sphi 0, %s181
    %s184 = sphi 0, %s183
    %s198 = sphi 0, %s184
    %s202 = sphi 0, %s202
    %s204 = sphi 0, %s202
    %s205 = sphi 0, %s204
    %s219 = sphi 0, %s205
    %s223 = sphi 0, %s223
    %s225 = sphi 0, %s223
    %s226 = sphi 0, %s225
    %s240 = sphi 0, %s226
    %s246 = sphi 0, %s248
    %s249 = sphi 0, %s246
    %s250 = sphi 0, %s249
    %s266 = sphi 0, %s250
  $region4: #{tpu_custom_call.1} parent=0 // loop_header_branch
    %19 = sbr.rel (%p17) target = $region8
  $region5: #{tpu_custom_call.1} parent=0 // loop_body
    %s21 = ssub.s32 %s16, 1
    %s22 = ssub.s32 %s16, 2
    %s23 = sadd.s32 %s16, 1
    %s24 = ssub.s32 %s16, %s23
    %p25 = scmp.eq.s32.totalorder %s24, 0
    %s27 = sadd.s32 %s26, 1
    %s28 = scalar_select %p25, %s26, %s27
    %p31 = pneg %p25
    %p32 = scmp.eq.s32.totalorder %s16, 1
    %p33 = por %p31, %p32
    %p34 = scmp.ne.s32.totalorder %s26, %s29
    %p35 = scmp.eq.s32.totalorder %s16, 0
    %p36 = por %p34, %p35
    %p37 = scmp.ne.s32.totalorder %s26, %s29
    %p38 = scmp.eq.s32.totalorder %s21, 1
    %p39 = por %p37, %p38
    %p40 = scmp.ne.s32.totalorder %s29, %s30
    %p41 = scmp.eq.s32.totalorder %s21, 0
    %p42 = por %p40, %p41
    %p43 = scmp.ne.s32.totalorder %s29, %s30
    %p44 = scmp.eq.s32.totalorder %s22, 1
    %p45 = por %p43, %p44
    %p47 = scmp.ne.s32.totalorder %s30, %s46
    %p48 = scmp.eq.s32.totalorder %s22, 0
    %p49 = por %p47, %p48
    %s50 = ssub.s32 %s16, %s23
    %p51 = scmp.eq.s32.totalorder %s50, 0
    %s53 = sadd.s32 %s52, 1
    %s54 = scalar_select %p51, %s52, %s53
    %p57 = pneg %p51
    %p58 = scmp.eq.s32.totalorder %s16, 1
    %p59 = por %p57, %p58
    %p60 = scmp.ne.s32.totalorder %s52, %s55
    %p61 = scmp.eq.s32.totalorder %s16, 0
    %p62 = por %p60, %p61
    %p63 = scmp.ne.s32.totalorder %s52, %s55
    %p64 = scmp.eq.s32.totalorder %s21, 1
    %p65 = por %p63, %p64
    %p66 = scmp.ne.s32.totalorder %s55, %s56
    %p67 = scmp.eq.s32.totalorder %s21, 0
    %p68 = por %p66, %p67
    %p69 = scmp.ne.s32.totalorder %s55, %s56
    %p70 = scmp.eq.s32.totalorder %s22, 1
    %p71 = por %p69, %p70
    %p73 = scmp.ne.s32.totalorder %s56, %s72
    %p74 = scmp.eq.s32.totalorder %s22, 0
    %p75 = por %p73, %p74
    %s77 = sadd.s32 %s76, 1
    %p80 = scmp.eq.s32.totalorder %s16, 1
    %p81 = scmp.ne.s32.totalorder %s76, %s78
    %p82 = scmp.eq.s32.totalorder %s16, 0
    %p83 = por %p81, %p82
    %p84 = scmp.ne.s32.totalorder %s76, %s78
    %p85 = scmp.eq.s32.totalorder %s21, 1
    %p86 = por %p84, %p85
    %p87 = scmp.ne.s32.totalorder %s78, %s79
    %p88 = scmp.eq.s32.totalorder %s21, 0
    %p89 = por %p87, %p88
    %p90 = scmp.ne.s32.totalorder %s78, %s79
    %p91 = scmp.eq.s32.totalorder %s22, 1
    %p92 = por %p90, %p91
    %p94 = scmp.ne.s32.totalorder %s79, %s93
    %p95 = scmp.eq.s32.totalorder %s22, 0
    %p96 = por %p94, %p95
    %s98 = sadd.s32 %s97, 1
    %p101 = scmp.eq.s32.totalorder %s16, 1
    %p102 = scmp.ne.s32.totalorder %s97, %s99
    %p103 = scmp.eq.s32.totalorder %s16, 0
    %p104 = por %p102, %p103
    %p105 = scmp.ne.s32.totalorder %s97, %s99
    %p106 = scmp.eq.s32.totalorder %s21, 1
    %p107 = por %p105, %p106
    %p108 = scmp.ne.s32.totalorder %s99, %s100
    %p109 = scmp.eq.s32.totalorder %s21, 0
    %p110 = por %p108, %p109
    %p111 = scmp.ne.s32.totalorder %s99, %s100
    %p112 = scmp.eq.s32.totalorder %s22, 1
    %p113 = por %p111, %p112
    %p115 = scmp.ne.s32.totalorder %s100, %s114
    %p116 = scmp.eq.s32.totalorder %s22, 0
    %p117 = por %p115, %p116
    %s119 = sadd.s32 %s118, 1
    %p122 = scmp.eq.s32.totalorder %s16, 1
    %p123 = scmp.ne.s32.totalorder %s118, %s120
    %p124 = scmp.eq.s32.totalorder %s16, 0
    %p125 = por %p123, %p124
    %p126 = scmp.ne.s32.totalorder %s118, %s120
    %p127 = scmp.eq.s32.totalorder %s21, 1
    %p128 = por %p126, %p127
    %p129 = scmp.ne.s32.totalorder %s120, %s121
    %p130 = scmp.eq.s32.totalorder %s21, 0
    %p131 = por %p129, %p130
    %p132 = scmp.ne.s32.totalorder %s120, %s121
    %p133 = scmp.eq.s32.totalorder %s22, 1
    %p134 = por %p132, %p133
    %p136 = scmp.ne.s32.totalorder %s121, %s135
    %p137 = scmp.eq.s32.totalorder %s22, 0
    %p138 = por %p136, %p137
    %s140 = sadd.s32 %s139, 1
    %p143 = scmp.eq.s32.totalorder %s16, 1
    %p144 = scmp.ne.s32.totalorder %s139, %s141
    %p145 = scmp.eq.s32.totalorder %s16, 0
    %p146 = por %p144, %p145
    %p147 = scmp.ne.s32.totalorder %s139, %s141
    %p148 = scmp.eq.s32.totalorder %s21, 1
    %p149 = por %p147, %p148
    %p150 = scmp.ne.s32.totalorder %s141, %s142
    %p151 = scmp.eq.s32.totalorder %s21, 0
    %p152 = por %p150, %p151
    %p153 = scmp.ne.s32.totalorder %s141, %s142
    %p154 = scmp.eq.s32.totalorder %s22, 1
    %p155 = por %p153, %p154
    %p157 = scmp.ne.s32.totalorder %s142, %s156
    %p158 = scmp.eq.s32.totalorder %s22, 0
    %p159 = por %p157, %p158
    %s161 = sadd.s32 %s160, 1
    %p164 = scmp.eq.s32.totalorder %s16, 1
    %p165 = scmp.ne.s32.totalorder %s160, %s162
    %p166 = scmp.eq.s32.totalorder %s16, 0
    %p167 = por %p165, %p166
    %p168 = scmp.ne.s32.totalorder %s160, %s162
    %p169 = scmp.eq.s32.totalorder %s21, 1
    %p170 = por %p168, %p169
    %p171 = scmp.ne.s32.totalorder %s162, %s163
    %p172 = scmp.eq.s32.totalorder %s21, 0
    %p173 = por %p171, %p172
    %p174 = scmp.ne.s32.totalorder %s162, %s163
    %p175 = scmp.eq.s32.totalorder %s22, 1
    %p176 = por %p174, %p175
    %p178 = scmp.ne.s32.totalorder %s163, %s177
    %p179 = scmp.eq.s32.totalorder %s22, 0
    %p180 = por %p178, %p179
    %s182 = sadd.s32 %s181, 1
    %p185 = scmp.eq.s32.totalorder %s16, 1
    %p186 = scmp.ne.s32.totalorder %s181, %s183
    %p187 = scmp.eq.s32.totalorder %s16, 0
    %p188 = por %p186, %p187
    %p189 = scmp.ne.s32.totalorder %s181, %s183
    %p190 = scmp.eq.s32.totalorder %s21, 1
    %p191 = por %p189, %p190
    %p192 = scmp.ne.s32.totalorder %s183, %s184
    %p193 = scmp.eq.s32.totalorder %s21, 0
    %p194 = por %p192, %p193
    %p195 = scmp.ne.s32.totalorder %s183, %s184
    %p196 = scmp.eq.s32.totalorder %s22, 1
    %p197 = por %p195, %p196
    %p199 = scmp.ne.s32.totalorder %s184, %s198
    %p200 = scmp.eq.s32.totalorder %s22, 0
    %p201 = por %p199, %p200
    %s203 = sadd.s32 %s202, 1
    %p206 = scmp.eq.s32.totalorder %s16, 1
    %p207 = scmp.ne.s32.totalorder %s202, %s204
    %p208 = scmp.eq.s32.totalorder %s16, 0
    %p209 = por %p207, %p208
    %p210 = scmp.ne.s32.totalorder %s202, %s204
    %p211 = scmp.eq.s32.totalorder %s21, 1
    %p212 = por %p210, %p211
    %p213 = scmp.ne.s32.totalorder %s204, %s205
    %p214 = scmp.eq.s32.totalorder %s21, 0
    %p215 = por %p213, %p214
    %p216 = scmp.ne.s32.totalorder %s204, %s205
    %p217 = scmp.eq.s32.totalorder %s22, 1
    %p218 = por %p216, %p217
    %p220 = scmp.ne.s32.totalorder %s205, %s219
    %p221 = scmp.eq.s32.totalorder %s22, 0
    %p222 = por %p220, %p221
    %s224 = sadd.s32 %s223, 1
    %p227 = scmp.eq.s32.totalorder %s16, 1
    %p228 = scmp.ne.s32.totalorder %s223, %s225
    %p229 = scmp.eq.s32.totalorder %s16, 0
    %p230 = por %p228, %p229
    %p231 = scmp.ne.s32.totalorder %s223, %s225
    %p232 = scmp.eq.s32.totalorder %s21, 1
    %p233 = por %p231, %p232
    %p234 = scmp.ne.s32.totalorder %s225, %s226
    %p235 = scmp.eq.s32.totalorder %s21, 0
    %p236 = por %p234, %p235
    %p237 = scmp.ne.s32.totalorder %s225, %s226
    %p238 = scmp.eq.s32.totalorder %s22, 1
    %p239 = por %p237, %p238
    %p241 = scmp.ne.s32.totalorder %s226, %s240
    %p242 = scmp.eq.s32.totalorder %s22, 0
    %p243 = por %p241, %p242
    %s244 = ssub.s32 %s16, %s23
    %p245 = scmp.eq.s32.totalorder %s244, 0
    %s247 = sadd.s32 %s246, 1
    %s248 = scalar_select %p245, %s246, %s247
    %p251 = pneg %p245
    %p252 = scmp.eq.s32.totalorder %s16, 1
    %p253 = por %p251, %p252
    %p254 = scmp.ne.s32.totalorder %s246, %s249
    %p255 = scmp.eq.s32.totalorder %s16, 0
    %p256 = por %p254, %p255
    %p257 = scmp.ne.s32.totalorder %s246, %s249
    %p258 = scmp.eq.s32.totalorder %s21, 1
    %p259 = por %p257, %p258
    %p260 = scmp.ne.s32.totalorder %s249, %s250
    %p261 = scmp.eq.s32.totalorder %s21, 0
    %p262 = por %p260, %p261
    %p263 = scmp.ne.s32.totalorder %s249, %s250
    %p264 = scmp.eq.s32.totalorder %s22, 1
    %p265 = por %p263, %p264
    %p267 = scmp.ne.s32.totalorder %s250, %s266
    %p268 = scmp.eq.s32.totalorder %s22, 0
    %p269 = por %p267, %p268
    %p270 = scmp.le.s32.totalorder 1, %s16
    %p271 = scmp.lt.s32.totalorder %s16, 3
    %p272 = pnand %p270, %p271
    %p273 = pneg %p272
    // Predicated region
    $region9: #{tpu_custom_call.1} parent=5 // pred_check
      _
    $region10: #{tpu_custom_call.1} parent=5 // pred_check_branch
      %275 = sbr.rel (%p272) target = $region12
    $region11: #{tpu_custom_call.1} parent=5 // pred_region
      %s276 = ssub.s32 %s16, 1
      // Predicated region
      $region13: #{tpu_custom_call.1} parent=11 // pred_check
        %p277 = pneg %p89
      $region14: #{tpu_custom_call.1} parent=11 // pred_check_branch
        %279 = sbr.rel (%p277) target = $region16
      $region15: #{tpu_custom_call.1} parent=11 // pred_region
        _
      $region16: #{tpu_custom_call.1} parent=11 // pred_fallthru
        _
      // Predicated region
      $region17: #{tpu_custom_call.1} parent=11 // pred_check
        %p280 = pneg %p110
      $region18: #{tpu_custom_call.1} parent=11 // pred_check_branch
        %282 = sbr.rel (%p280) target = $region20
      $region19: #{tpu_custom_call.1} parent=11 // pred_region
        _
      $region20: #{tpu_custom_call.1} parent=11 // pred_fallthru
        _
      // Predicated region
      $region21: #{tpu_custom_call.1} parent=11 // pred_check
        %p283 = pneg %p131
      $region22: #{tpu_custom_call.1} parent=11 // pred_check_branch
        %285 = sbr.rel (%p283) target = $region24
      $region23: #{tpu_custom_call.1} parent=11 // pred_region
        _
      $region24: #{tpu_custom_call.1} parent=11 // pred_fallthru
        _
      // Predicated region
      $region25: #{tpu_custom_call.1} parent=11 // pred_check
        %p286 = pneg %p152
      $region26: #{tpu_custom_call.1} parent=11 // pred_check_branch
        %288 = sbr.rel (%p286) target = $region28
      $region27: #{tpu_custom_call.1} parent=11 // pred_region
        _
      $region28: #{tpu_custom_call.1} parent=11 // pred_fallthru
        _
      // Predicated region
      $region29: #{tpu_custom_call.1} parent=11 // pred_check
        %p289 = pneg %p173
      $region30: #{tpu_custom_call.1} parent=11 // pred_check_branch
        %291 = sbr.rel (%p289) target = $region32
      $region31: #{tpu_custom_call.1} parent=11 // pred_region
        _
      $region32: #{tpu_custom_call.1} parent=11 // pred_fallthru
        _
      // Predicated region
      $region33: #{tpu_custom_call.1} parent=11 // pred_check
        %p292 = pneg %p194
      $region34: #{tpu_custom_call.1} parent=11 // pred_check_branch
        %294 = sbr.rel (%p292) target = $region36
      $region35: #{tpu_custom_call.1} parent=11 // pred_region
        _
      $region36: #{tpu_custom_call.1} parent=11 // pred_fallthru
        _
      // Predicated region
      $region37: #{tpu_custom_call.1} parent=11 // pred_check
        %p295 = pneg %p215
      $region38: #{tpu_custom_call.1} parent=11 // pred_check_branch
        %297 = sbr.rel (%p295) target = $region40
      $region39: #{tpu_custom_call.1} parent=11 // pred_region
        _
      $region40: #{tpu_custom_call.1} parent=11 // pred_fallthru
        _
      // Predicated region
      $region41: #{tpu_custom_call.1} parent=11 // pred_check
        %p298 = pneg %p236
      $region42: #{tpu_custom_call.1} parent=11 // pred_check_branch
        %300 = sbr.rel (%p298) target = $region44
      $region43: #{tpu_custom_call.1} parent=11 // pred_region
        _
      $region44: #{tpu_custom_call.1} parent=11 // pred_fallthru
        _
    $region12: #{tpu_custom_call.1} parent=5 // pred_fallthru
      _
    %p301 = scmp.lt.s32.totalorder %s16, 2
    // Predicated region
    $region45: #{tpu_custom_call.1} parent=5 // pred_check
      %p302 = pneg %p301
    $region46: #{tpu_custom_call.1} parent=5 // pred_check_branch
      %304 = sbr.rel (%p302) target = $region48
    $region47: #{tpu_custom_call.1} parent=5 // pred_region
      // Predicated region
      $region49: #{tpu_custom_call.1} parent=47 // pred_check
        %p305 = pneg %p36
      $region50: #{tpu_custom_call.1} parent=47 // pred_check_branch
        %307 = sbr.rel (%p305) target = $region52
      $region51: #{tpu_custom_call.1} parent=47 // pred_region
        %p308 = scmp.lt.s32.totalorder %s16, 1
        %s309 = scalar_select %p308, %s16, 1
        %s310 = smul.addr %s309, 8
        %s311 = smul.addr %s310, 4
        %s312 = scalar_lea.vmem %s0, %s311
      $region52: #{tpu_custom_call.1} parent=47 // pred_fallthru
        _
      // Predicated region
      $region53: #{tpu_custom_call.1} parent=47 // pred_check
        %p313 = pneg %p62
      $region54: #{tpu_custom_call.1} parent=47 // pred_check_branch
        %315 = sbr.rel (%p313) target = $region56
      $region55: #{tpu_custom_call.1} parent=47 // pred_region
        %p316 = scmp.lt.s32.totalorder %s16, 1
        %s317 = scalar_select %p316, %s16, 1
        %s318 = smul.addr %s317, 16
        %s319 = smul.addr %s318, 4
        %s320 = scalar_lea.vmem %s1, %s319
      $region56: #{tpu_custom_call.1} parent=47 // pred_fallthru
        _
    $region48: #{tpu_custom_call.1} parent=5 // pred_fallthru
      _
    %p321 = scmp.le.s32.totalorder 1, %s16
    %p322 = scmp.lt.s32.totalorder %s16, 3
    %p323 = pnand %p321, %p322
    %p324 = pneg %p323
    // Predicated region
    $region57: #{tpu_custom_call.1} parent=5 // pred_check
      _
    $region58: #{tpu_custom_call.1} parent=5 // pred_check_branch
      %326 = sbr.rel (%p323) target = $region60
    $region59: #{tpu_custom_call.1} parent=5 // pred_region
      %s327 = ssub.s32 %s16, 1
      %p328 = scmp.lt.s32.totalorder %s21, 1
      %s329 = scalar_select %p328, %s21, 1
      %s330 = smul.addr %s329, 8
      %s331 = smul.addr %s330, 4
      %s332 = scalar_lea.vmem %s0, %s331
      %p333 = pneg %p42
      %p334 = pneg %p39
      %p335 = scmp.lt.s32.totalorder %s21, 1
      %s336 = scalar_select %p335, %s21, 1
      %s337 = smul.addr %s336, 16
      %s338 = smul.addr %s337, 4
      %s339 = scalar_lea.vmem %s1, %s338
      %p340 = pneg %p68
      %p341 = pneg %p65
      %p342 = pneg %p89
      %p343 = pneg %p86
      %p344 = pneg %p110
      %p345 = pneg %p107
      %p346 = pneg %p131
      %p347 = pneg %p128
      %p348 = pneg %p152
      %p349 = pneg %p149
      %p350 = pneg %p173
      %p351 = pneg %p170
      %p352 = pneg %p194
      %p353 = pneg %p191
      %p354 = pneg %p215
      %p355 = pneg %p212
      %p356 = pneg %p236
      %p357 = pneg %p233
      %p358 = pneg %p262
      %p359 = pneg %p259
      %p360 = scmp.lt.s32.totalorder %s21, 1
      %s361 = scalar_select %p360, %s21, 1
      %s362 = smul.addr %s361, 16
      %s363 = smul.addr %s362, 4
      %s364 = scalar_lea.vmem %s10, %s363
      %p365 = scmp.lt.s32.totalorder %s21, 1
      %s366 = scalar_select %p365, %s21, 1
      %s367 = smul.addr %s366, 8
      %s368 = smul.addr %s367, 4
      %s369 = scalar_lea.vmem %s0, %s368
      %p370 = scmp.lt.s32.totalorder %s21, 1
      %s371 = scalar_select %p370, %s21, 1
      %s372 = smul.addr %s371, 16
      %s373 = smul.addr %s372, 4
      %s374 = scalar_lea.vmem %s1, %s373
      %p375 = scmp.lt.s32.totalorder %s21, 1
      %s376 = scalar_select %p375, %s21, 1
      %s377 = smul.addr %s376, 16
      %s378 = smul.addr %s377, 4
      %s379 = scalar_lea.vmem %s10, %s378
      %vm383 = vcmask 519168
      %384 = vst.msk [vmem:[#allocation2] sm:$0xf] %vm383, 0
      %vm385 = vcmask 516096
      %vm386 = vsmask.f32 256
      %vm387 = vmand %vm385, %vm386
      %v388 = vld [vmem:[#allocation2 + $0x4] sm:$0x1]
      %v389 = vsel %vm387, 0, %v388
      %390 = vst [vmem:[#allocation2 + $0x4] sm:$0x1] %v389
      %vm391 = vcmask 519168
      %vm392 = vsmask.f32 7938
      %vm393 = vmand %vm391, %vm392
      %v394 = vld [vmem:[#allocation2 + $0x24] sm:$0xf]
      %v395 = vsel %vm393, 0, %v394
      %396 = vst [vmem:[#allocation2 + $0x24] sm:$0xf] %v395
      %vm397 = vcmask 516096
      %398 = vst.msk [vmem:[#allocation2 + $0x28] sm:$0x1] %vm397, 0
      %v399 = vld [vmem:[%s369] sm:$0xf]
      %v400 = vld [vmem:[%s369 + $0x4] sm:$0xf]
      %v401 = vld [vmem:[%s369 + $0x8] sm:$0xf]
      %v402 = vld [vmem:[%s369 + $0xc] sm:$0xf]
      %v403 = vld [vmem:[%s369 + $0x10] sm:$0xf]
      %v404 = vld [vmem:[%s369 + $0x14] sm:$0xf]
      %v405 = vld [vmem:[%s369 + $0x18] sm:$0xf]
      %v406 = vld [vmem:[%s369 + $0x1c] sm:$0xf]
      %vm407 = vsmask.f32 4368
      %vm408 = vmor %vm386, %vm407
      %v410 = vshrl.u32 %v399, 16
      %v412 = vrot.slane %v410, 7
      %v413 = vshll.u32 %v399, 16
      %v415 = vor.u32 %v412, %v413
      %v416 = vrot.slane %v412, 4
      %v418 = vshrl.u32 %v400, 16
      %v420 = vrot.slane %v418, 7
      %v421 = vshll.u32 %v400, 16
      %v423 = vor.u32 %v420, %v421
      %v424 = vsel %vm408, %v416, %v423
      %v425 = vrot.slane %v420, 4
      %v427 = vshrl.u32 %v401, 16
      %v429 = vrot.slane %v427, 7
      %v430 = vshll.u32 %v401, 16
      %v432 = vor.u32 %v429, %v430
      %v433 = vsel %vm408, %v425, %v432
      %v434 = vrot.slane %v429, 4
      %v436 = vshrl.u32 %v402, 16
      %v438 = vrot.slane %v436, 7
      %v439 = vshll.u32 %v402, 16
      %v441 = vor.u32 %v438, %v439
      %v442 = vsel %vm408, %v434, %v441
      %v443 = vrot.slane %v438, 4
      %v445 = vshrl.u32 %v403, 16
      %v447 = vrot.slane %v445, 7
      %v448 = vshll.u32 %v403, 16
      %v450 = vor.u32 %v447, %v448
      %v451 = vsel %vm408, %v443, %v450
      %v452 = vrot.slane %v447, 4
      %v454 = vshrl.u32 %v404, 16
      %v456 = vrot.slane %v454, 7
      %v457 = vshll.u32 %v404, 16
      %v459 = vor.u32 %v456, %v457
      %v460 = vsel %vm408, %v452, %v459
      %v461 = vrot.slane %v456, 4
      %v463 = vshrl.u32 %v405, 16
      %v465 = vrot.slane %v463, 7
      %v466 = vshll.u32 %v405, 16
      %v468 = vor.u32 %v465, %v466
      %v469 = vsel %vm408, %v461, %v468
      %v470 = vrot.slane %v465, 4
      %v472 = vshrl.u32 %v406, 16
      %v474 = vrot.slane %v472, 7
      %v475 = vshll.u32 %v406, 16
      %v477 = vor.u32 %v474, %v475
      %v478 = vsel %vm408, %v470, %v477
      %v479 = vrot.slane %v474, 4
      %v489 = vld [vmem:[#allocation2 + $0x4] sm:$0xf]
      %v490 = vsel %vm393, %v415, %v489
      %491 = vst [vmem:[#allocation2 + $0x4] sm:$0xf] %v490
      %492 = vst.msk [vmem:[#allocation2 + $0x8] sm:$0xf] %vm383, %v424
      %493 = vst.msk [vmem:[#allocation2 + $0xc] sm:$0xf] %vm383, %v433
      %494 = vst.msk [vmem:[#allocation2 + $0x10] sm:$0xf] %vm383, %v442
      %495 = vst.msk [vmem:[#allocation2 + $0x14] sm:$0xf] %vm383, %v451
      %496 = vst.msk [vmem:[#allocation2 + $0x18] sm:$0xf] %vm383, %v460
      %497 = vst.msk [vmem:[#allocation2 + $0x1c] sm:$0xf] %vm383, %v469
      %498 = vst.msk [vmem:[#allocation2 + $0x20] sm:$0xf] %vm383, %v478
      %v499 = vld [vmem:[#allocation2 + $0x24] sm:$0x1]
      %v500 = vsel %vm387, %v479, %v499
      %501 = vst [vmem:[#allocation2 + $0x24] sm:$0x1] %v500
      %v502 = vlaneseq
      %v503 = vshrl.u32 %v502, 7
      %v504 = vadd.s32 %v503, 8
      %v505 = vadd.s32 %v503, 16
      %v506 = vadd.s32 %v503, 24
      %v507 = vadd.s32 %v503, 32
      %v508 = vadd.s32 %v503, 40
      %v509 = vadd.s32 %v503, 48
      %v510 = vadd.s32 %v503, 56
      %vm511 = vcmp.lt.s32.totalorder %v503, 0
      %v512 = vsub.s32 0, %v503
      %v513 = vsel %vm511, %v512, %v503
      %v514 = vshrl.u32 %v513, 3
      %v515 = vand.u32 %v513, 7
      %v516 = vsub.s32 0, %v515
      %v517 = vsel %vm511, %v516, %v515
      %vm518 = vcmp.lt.s32.totalorder %v504, 0
      %v519 = vsub.s32 0, %v504
      %v520 = vsel %vm518, %v519, %v504
      %v521 = vshrl.u32 %v520, 3
      %v522 = vand.u32 %v520, 7
      %v523 = vsub.s32 0, %v522
      %v524 = vsel %vm518, %v523, %v522
      %vm525 = vcmp.lt.s32.totalorder %v505, 0
      %v526 = vsub.s32 0, %v505
      %v527 = vsel %vm525, %v526, %v505
      %v528 = vshrl.u32 %v527, 3
      %v529 = vand.u32 %v527, 7
      %v530 = vsub.s32 0, %v529
      %v531 = vsel %vm525, %v530, %v529
      %vm532 = vcmp.lt.s32.totalorder %v506, 0
      %v533 = vsub.s32 0, %v506
      %v534 = vsel %vm532, %v533, %v506
      %v535 = vshrl.u32 %v534, 3
      %v536 = vand.u32 %v534, 7
      %v537 = vsub.s32 0, %v536
      %v538 = vsel %vm532, %v537, %v536
      %vm539 = vcmp.lt.s32.totalorder %v507, 0
      %v540 = vsub.s32 0, %v507
      %v541 = vsel %vm539, %v540, %v507
      %v542 = vshrl.u32 %v541, 3
      %v543 = vand.u32 %v541, 7
      %v544 = vsub.s32 0, %v543
      %v545 = vsel %vm539, %v544, %v543
      %vm546 = vcmp.lt.s32.totalorder %v508, 0
      %v547 = vsub.s32 0, %v508
      %v548 = vsel %vm546, %v547, %v508
      %v549 = vshrl.u32 %v548, 3
      %v550 = vand.u32 %v548, 7
      %v551 = vsub.s32 0, %v550
      %v552 = vsel %vm546, %v551, %v550
      %vm553 = vcmp.lt.s32.totalorder %v509, 0
      %v554 = vsub.s32 0, %v509
      %v555 = vsel %vm553, %v554, %v509
      %v556 = vshrl.u32 %v555, 3
      %v557 = vand.u32 %v555, 7
      %v558 = vsub.s32 0, %v557
      %v559 = vsel %vm553, %v558, %v557
      %vm560 = vcmp.lt.s32.totalorder %v510, 0
      %v561 = vsub.s32 0, %v510
      %v562 = vsel %vm560, %v561, %v510
      %v563 = vshrl.u32 %v562, 3
      %v564 = vand.u32 %v562, 7
      %v565 = vsub.s32 0, %v564
      %v566 = vsel %vm560, %v565, %v564
      %vm567 = vcmp.ne.s32.totalorder %v517, 0
      %vm568 = vcmp.ne.s32.totalorder %v524, 0
      %vm569 = vcmp.ne.s32.totalorder %v531, 0
      %vm570 = vcmp.ne.s32.totalorder %v538, 0
      %vm571 = vcmp.ne.s32.totalorder %v545, 0
      %vm572 = vcmp.ne.s32.totalorder %v552, 0
      %vm573 = vcmp.ne.s32.totalorder %v559, 0
      %vm574 = vcmp.ne.s32.totalorder %v566, 0
      %vm575 = vcmp.lt.s32.totalorder %v517, 0
      %vm576 = vcmp.lt.s32.totalorder %v524, 0
      %vm577 = vcmp.lt.s32.totalorder %v531, 0
      %vm578 = vcmp.lt.s32.totalorder %v538, 0
      %vm579 = vcmp.lt.s32.totalorder %v545, 0
      %vm580 = vcmp.lt.s32.totalorder %v552, 0
      %vm581 = vcmp.lt.s32.totalorder %v559, 0
      %vm582 = vcmp.lt.s32.totalorder %v566, 0
      %vm583 = vmand %vm575, %vm567
      %vm584 = vmand %vm576, %vm568
      %vm585 = vmand %vm577, %vm569
      %vm586 = vmand %vm578, %vm570
      %vm587 = vmand %vm579, %vm571
      %vm588 = vmand %vm580, %vm572
      %vm589 = vmand %vm581, %vm573
      %vm590 = vmand %vm582, %vm574
      %v591 = vadd.s32 %v517, 8
      %v592 = vadd.s32 %v524, 8
      %v593 = vadd.s32 %v531, 8
      %v594 = vadd.s32 %v538, 8
      %v595 = vadd.s32 %v545, 8
      %v596 = vadd.s32 %v552, 8
      %v597 = vadd.s32 %v559, 8
      %v598 = vadd.s32 %v566, 8
      %v599 = vsel %vm583, %v591, %v517
      %v600 = vsel %vm584, %v592, %v524
      %v601 = vsel %vm585, %v593, %v531
      %v602 = vsel %vm586, %v594, %v538
      %v603 = vsel %vm587, %v595, %v545
      %v604 = vsel %vm588, %v596, %v552
      %v605 = vsel %vm589, %v597, %v559
      %v606 = vsel %vm590, %v598, %v566
      %vm607 = vcmp.eq.s32.totalorder %v599, 0
      %vm608 = vcmp.eq.s32.totalorder %v600, 0
      %vm609 = vcmp.eq.s32.totalorder %v601, 0
      %vm610 = vcmp.eq.s32.totalorder %v602, 0
      %vm611 = vcmp.eq.s32.totalorder %v603, 0
      %vm612 = vcmp.eq.s32.totalorder %v604, 0
      %vm613 = vcmp.eq.s32.totalorder %v605, 0
      %vm614 = vcmp.eq.s32.totalorder %v606, 0
      %vm615 = vcmp.eq.s32.totalorder %v599, 7
      %vm616 = vcmp.eq.s32.totalorder %v600, 7
      %vm617 = vcmp.eq.s32.totalorder %v601, 7
      %vm618 = vcmp.eq.s32.totalorder %v602, 7
      %vm619 = vcmp.eq.s32.totalorder %v603, 7
      %vm620 = vcmp.eq.s32.totalorder %v604, 7
      %vm621 = vcmp.eq.s32.totalorder %v605, 7
      %vm622 = vcmp.eq.s32.totalorder %v606, 7
      %v623 = vld [vmem:[#allocation2] sm:$0xf]
      %v624 = vld [vmem:[#allocation2 + $0x4] sm:$0xf]
      %v625 = vld [vmem:[#allocation2 + $0x8] sm:$0xf]
      %v626 = vld [vmem:[#allocation2 + $0xc] sm:$0xf]
      %v627 = vld [vmem:[#allocation2 + $0x10] sm:$0xf]
      %v628 = vld [vmem:[#allocation2 + $0x14] sm:$0xf]
      %v629 = vld [vmem:[#allocation2 + $0x18] sm:$0xf]
      %v630 = vld [vmem:[#allocation2 + $0x1c] sm:$0xf]
      %v631 = vsel %vm607, 1, 0
      %v632 = vsel %vm608, 1, 0
      %v633 = vsel %vm609, 1, 0
      %v634 = vsel %vm610, 1, 0
      %v635 = vsel %vm611, 1, 0
      %v636 = vsel %vm612, 1, 0
      %v637 = vsel %vm613, 1, 0
      %v638 = vsel %vm614, 1, 0
      %vm639 = vcmp.eq.s32.totalorder %v631, 1
      %vm640 = vcmp.eq.s32.totalorder %v632, 1
      %vm641 = vcmp.eq.s32.totalorder %v633, 1
      %vm642 = vcmp.eq.s32.totalorder %v634, 1
      %vm643 = vcmp.eq.s32.totalorder %v635, 1
      %vm644 = vcmp.eq.s32.totalorder %v636, 1
      %vm645 = vcmp.eq.s32.totalorder %v637, 1
      %vm646 = vcmp.eq.s32.totalorder %v638, 1
      %vm647 = vmpackc.low %vm639, %vm639
      %vm648 = vmpackc.low %vm640, %vm640
      %vm649 = vmpackc.low %vm641, %vm641
      %vm650 = vmpackc.low %vm642, %vm642
      %vm651 = vmpackc.low %vm643, %vm643
      %vm652 = vmpackc.low %vm644, %vm644
      %vm653 = vmpackc.low %vm645, %vm645
      %vm654 = vmpackc.low %vm646, %vm646
      %v655 = vsel %vm647, 0, %v623
      %v656 = vsel %vm648, 0, %v624
      %v657 = vsel %vm649, 0, %v625
      %v658 = vsel %vm650, 0, %v626
      %v659 = vsel %vm651, 0, %v627
      %v660 = vsel %vm652, 0, %v628
      %v661 = vsel %vm653, 0, %v629
      %v662 = vsel %vm654, 0, %v630
      %v671 = vunpack.c.l.b16 %v655
      %v672 = vunpack.c.l.b16 %v656
      %v673 = vunpack.c.l.b16 %v657
      %v674 = vunpack.c.l.b16 %v658
      %v675 = vunpack.c.l.b16 %v659
      %v676 = vunpack.c.l.b16 %v660
      %v677 = vunpack.c.l.b16 %v661
      %v678 = vunpack.c.l.b16 %v662
      %v679 = vpack.c.b16 %v672, %v671
      %v680 = vpack.c.b16 %v674, %v673
      %v681 = vpack.c.b16 %v676, %v675
      %v682 = vpack.c.b16 %v678, %v677
      %vm687 = vcmask 523264
      %688 = vst.msk [vmem:[#allocation3] sm:$0xff] %vm687, %v679
      %689 = vst.msk [vmem:[#allocation3 + $0x28] sm:$0xff] %vm687, %v680
      %690 = vst.msk [vmem:[#allocation3 + $0x50] sm:$0xff] %vm687, %v681
      %691 = vst.msk [vmem:[#allocation3 + $0x78] sm:$0xff] %vm687, %v682
      %v692 = vld [vmem:[#allocation2] sm:$0xf]
      %v693 = vld [vmem:[#allocation2 + $0x4] sm:$0xf]
      %v694 = vld [vmem:[#allocation2 + $0x8] sm:$0xf]
      %v695 = vld [vmem:[#allocation2 + $0xc] sm:$0xf]
      %v696 = vld [vmem:[#allocation2 + $0x10] sm:$0xf]
      %v697 = vld [vmem:[#allocation2 + $0x14] sm:$0xf]
      %v698 = vld [vmem:[#allocation2 + $0x18] sm:$0xf]
      %v699 = vld [vmem:[#allocation2 + $0x1c] sm:$0xf]
      %v700 = vld [vmem:[#allocation2 + $0x20] sm:$0x1]
      %v710 = vunpack.c.l.b16 %v692
      %v711 = vunpack.c.l.b16 %v693
      %v712 = vunpack.c.l.b16 %v694
      %v713 = vunpack.c.l.b16 %v695
      %v714 = vunpack.c.l.b16 %v696
      %v715 = vunpack.c.l.b16 %v697
      %v716 = vunpack.c.l.b16 %v698
      %v717 = vunpack.c.l.b16 %v699
      %v718 = vunpack.c.l.b16 %v700
      %v719 = vpack.c.b16 %v711, %v710
      %v720 = vpack.c.b16 %v713, %v712
      %v721 = vpack.c.b16 %v715, %v714
      %v722 = vpack.c.b16 %v717, %v716
      %v723 = vpack.c.b16 %v718, %v718
      %vm724 = vsmask.f32 7424
      %v726 = vshrl.u32 %v719, 16
      %v728 = vshll.u32 %v719, 16
      %v730 = vrot.slane %v728, 1
      %v731 = vor.u32 %v726, %v730
      %v733 = vshll.u32 %v720, 16
      %v735 = vrot.slane %v733, 1
      %v736 = vsel %vm724, %v731, %v735
      %v737 = vshrl.u32 %v720, 16
      %v739 = vor.u32 %v737, %v735
      %v741 = vshll.u32 %v721, 16
      %v743 = vrot.slane %v741, 1
      %v744 = vsel %vm724, %v739, %v743
      %v745 = vshrl.u32 %v721, 16
      %v747 = vor.u32 %v745, %v743
      %v749 = vshll.u32 %v722, 16
      %v751 = vrot.slane %v749, 1
      %v752 = vsel %vm724, %v747, %v751
      %v753 = vshrl.u32 %v722, 16
      %v755 = vor.u32 %v753, %v751
      %v757 = vshll.u32 %v723, 16
      %v759 = vrot.slane %v757, 1
      %v760 = vsel %vm724, %v755, %v759
      %761 = vrot.lane.b32.xlu0 %v736, 64
      %v762 = vpop.permute.xlu0 %761
      %763 = vrot.lane.b32.xlu0 %v744, 64
      %v764 = vpop.permute.xlu0 %763
      %765 = vrot.lane.b32.xlu0 %v752, 64
      %v766 = vpop.permute.xlu0 %765
      %767 = vrot.lane.b32.xlu0 %v760, 64
      %v768 = vpop.permute.xlu0 %767
      %vm773 = vcmask 1048064
      %774 = vst.msk [vmem:[#allocation3] sm:$0xff] %vm773, %v762
      %775 = vst.msk [vmem:[#allocation3 + $0x28] sm:$0xff] %vm773, %v764
      %776 = vst.msk [vmem:[#allocation3 + $0x50] sm:$0xff] %vm773, %v766
      %777 = vst.msk [vmem:[#allocation3 + $0x78] sm:$0xff] %vm773, %v768
      %v778 = vld [vmem:[#allocation2] sm:$0xe]
      %v779 = vld [vmem:[#allocation2 + $0x4] sm:$0xf]
      %v780 = vld [vmem:[#allocation2 + $0x8] sm:$0xf]
      %v781 = vld [vmem:[#allocation2 + $0xc] sm:$0xf]
      %v782 = vld [vmem:[#allocation2 + $0x10] sm:$0xf]
      %v783 = vld [vmem:[#allocation2 + $0x14] sm:$0xf]
      %v784 = vld [vmem:[#allocation2 + $0x18] sm:$0xf]
      %v785 = vld [vmem:[#allocation2 + $0x1c] sm:$0xf]
      %v786 = vld [vmem:[#allocation2 + $0x20] sm:$0x1]
      %v787 = vsel %vm615, 1, 0
      %v788 = vsel %vm616, 1, 0
      %v789 = vsel %vm617, 1, 0
      %v790 = vsel %vm618, 1, 0
      %v791 = vsel %vm619, 1, 0
      %v792 = vsel %vm620, 1, 0
      %v793 = vsel %vm621, 1, 0
      %v794 = vsel %vm622, 1, 0
      %vm795 = vcmp.eq.s32.totalorder %v787, 1
      %vm796 = vcmp.eq.s32.totalorder %v788, 1
      %vm797 = vcmp.eq.s32.totalorder %v789, 1
      %vm798 = vcmp.eq.s32.totalorder %v790, 1
      %vm799 = vcmp.eq.s32.totalorder %v791, 1
      %vm800 = vcmp.eq.s32.totalorder %v792, 1
      %vm801 = vcmp.eq.s32.totalorder %v793, 1
      %vm802 = vcmp.eq.s32.totalorder %v794, 1
      %vm803 = vmpackc.low %vm795, %vm795
      %vm804 = vmpackc.low %vm796, %vm796
      %vm805 = vmpackc.low %vm797, %vm797
      %vm806 = vmpackc.low %vm798, %vm798
      %vm807 = vmpackc.low %vm799, %vm799
      %vm808 = vmpackc.low %vm800, %vm800
      %vm809 = vmpackc.low %vm801, %vm801
      %vm810 = vmpackc.low %vm802, %vm802
      %v811 = vsel %vm803, 65537, 0
      %v812 = vsel %vm804, 65537, 0
      %v813 = vsel %vm805, 65537, 0
      %v814 = vsel %vm806, 65537, 0
      %v815 = vsel %vm807, 65537, 0
      %v816 = vsel %vm808, 65537, 0
      %v817 = vsel %vm809, 65537, 0
      %v818 = vsel %vm810, 65537, 0
      %vm819 = vcmask 1040384
      %vm820 = vcmask 1044484
      %vm821 = vmor %vm819, %vm820
      %v822 = vrot.slane %v811, 7
      %v823 = vrot.slane %v822, 4
      %v824 = vrot.slane %v812, 7
      %v825 = vsel %vm821, %v823, %v824
      %v826 = vrot.slane %v824, 4
      %v827 = vrot.slane %v813, 7
      %v828 = vsel %vm821, %v826, %v827
      %v829 = vrot.slane %v827, 4
      %v830 = vrot.slane %v814, 7
      %v831 = vsel %vm821, %v829, %v830
      %v832 = vrot.slane %v830, 4
      %v833 = vrot.slane %v815, 7
      %v834 = vsel %vm821, %v832, %v833
      %v835 = vrot.slane %v833, 4
      %v836 = vrot.slane %v816, 7
      %v837 = vsel %vm821, %v835, %v836
      %v838 = vrot.slane %v836, 4
      %v839 = vrot.slane %v817, 7
      %v840 = vsel %vm821, %v838, %v839
      %v841 = vrot.slane %v839, 4
      %v842 = vrot.slane %v818, 7
      %v843 = vsel %vm821, %v841, %v842
      %v844 = vrot.slane %v842, 4
      %vm845 = vcmp.ne.s16.totalorder %v822, 0
      %vm846 = vcmp.ne.s16.totalorder %v825, 0
      %vm847 = vcmp.ne.s16.totalorder %v828, 0
      %vm848 = vcmp.ne.s16.totalorder %v831, 0
      %vm849 = vcmp.ne.s16.totalorder %v834, 0
      %vm850 = vcmp.ne.s16.totalorder %v837, 0
      %vm851 = vcmp.ne.s16.totalorder %v840, 0
      %vm852 = vcmp.ne.s16.totalorder %v843, 0
      %vm853 = vcmp.ne.s16.totalorder %v844, 0
      %v854 = vsel %vm845, 0, %v778
      %v855 = vsel %vm846, 0, %v779
      %v856 = vsel %vm847, 0, %v780
      %v857 = vsel %vm848, 0, %v781
      %v858 = vsel %vm849, 0, %v782
      %v859 = vsel %vm850, 0, %v783
      %v860 = vsel %vm851, 0, %v784
      %v861 = vsel %vm852, 0, %v785
      %v862 = vsel %vm853, 0, %v786
      %v872 = vunpack.c.l.b16 %v854
      %v873 = vunpack.c.l.b16 %v855
      %v874 = vunpack.c.l.b16 %v856
      %v875 = vunpack.c.l.b16 %v857
      %v876 = vunpack.c.l.b16 %v858
      %v877 = vunpack.c.l.b16 %v859
      %v878 = vunpack.c.l.b16 %v860
      %v879 = vunpack.c.l.b16 %v861
      %v880 = vunpack.c.l.b16 %v862
      %v881 = vpack.c.b16 %v873, %v872
      %v882 = vpack.c.b16 %v875, %v874
      %v883 = vpack.c.b16 %v877, %v876
      %v884 = vpack.c.b16 %v879, %v878
      %v885 = vpack.c.b16 %v880, %v880
      %vm886 = vcmask 1046528
      %v887 = vrot.slane %v881, 1
      %v888 = vrot.slane %v882, 1
      %v889 = vsel %vm886, %v887, %v888
      %v890 = vrot.slane %v883, 1
      %v891 = vsel %vm886, %v888, %v890
      %v892 = vrot.slane %v884, 1
      %v893 = vsel %vm886, %v890, %v892
      %v894 = vrot.slane %v885, 1
      %v895 = vsel %vm886, %v892, %v894
      %900 = vst.msk [vmem:[#allocation3 + $0x8] sm:$0xff] %vm687, %v889
      %901 = vst.msk [vmem:[#allocation3 + $0x30] sm:$0xff] %vm687, %v891
      %902 = vst.msk [vmem:[#allocation3 + $0x58] sm:$0xff] %vm687, %v893
      %903 = vst.msk [vmem:[#allocation3 + $0x80] sm:$0xff] %vm687, %v895
      %v904 = vld [vmem:[#allocation2 + $0x4] sm:$0xf]
      %v905 = vld [vmem:[#allocation2 + $0x8] sm:$0xf]
      %v906 = vld [vmem:[#allocation2 + $0xc] sm:$0xf]
      %v907 = vld [vmem:[#allocation2 + $0x10] sm:$0xf]
      %v908 = vld [vmem:[#allocation2 + $0x14] sm:$0xf]
      %v909 = vld [vmem:[#allocation2 + $0x18] sm:$0xf]
      %v910 = vld [vmem:[#allocation2 + $0x1c] sm:$0xf]
      %v911 = vld [vmem:[#allocation2 + $0x20] sm:$0xf]
      %v912 = vsel %vm647, 0, %v904
      %v913 = vsel %vm648, 0, %v905
      %v914 = vsel %vm649, 0, %v906
      %v915 = vsel %vm650, 0, %v907
      %v916 = vsel %vm651, 0, %v908
      %v917 = vsel %vm652, 0, %v909
      %v918 = vsel %vm653, 0, %v910
      %v919 = vsel %vm654, 0, %v911
      %v928 = vunpack.c.l.b16 %v912
      %v929 = vunpack.c.l.b16 %v913
      %v930 = vunpack.c.l.b16 %v914
      %v931 = vunpack.c.l.b16 %v915
      %v932 = vunpack.c.l.b16 %v916
      %v933 = vunpack.c.l.b16 %v917
      %v934 = vunpack.c.l.b16 %v918
      %v935 = vunpack.c.l.b16 %v919
      %v936 = vpack.c.b16 %v929, %v928
      %v937 = vpack.c.b16 %v931, %v930
      %v938 = vpack.c.b16 %v933, %v932
      %v939 = vpack.c.b16 %v935, %v934
      %940 = vrot.lane.b32.xlu0 %v936, 64
      %v941 = vpop.permute.xlu0 %940
      %942 = vrot.lane.b32.xlu0 %v937, 64
      %v943 = vpop.permute.xlu0 %942
      %944 = vrot.lane.b32.xlu0 %v938, 64
      %v945 = vpop.permute.xlu0 %944
      %946 = vrot.lane.b32.xlu0 %v939, 64
      %v947 = vpop.permute.xlu0 %946
      %952 = vst.msk [vmem:[#allocation3 + $0x8] sm:$0xff] %vm773, %v941
      %953 = vst.msk [vmem:[#allocation3 + $0x30] sm:$0xff] %vm773, %v943
      %954 = vst.msk [vmem:[#allocation3 + $0x58] sm:$0xff] %vm773, %v945
      %955 = vst.msk [vmem:[#allocation3 + $0x80] sm:$0xff] %vm773, %v947
      %v956 = vld [vmem:[#allocation2 + $0x4] sm:$0xf]
      %v957 = vld [vmem:[#allocation2 + $0x8] sm:$0xf]
      %v958 = vld [vmem:[#allocation2 + $0xc] sm:$0xf]
      %v959 = vld [vmem:[#allocation2 + $0x10] sm:$0xf]
      %v960 = vld [vmem:[#allocation2 + $0x14] sm:$0xf]
      %v961 = vld [vmem:[#allocation2 + $0x18] sm:$0xf]
      %v962 = vld [vmem:[#allocation2 + $0x1c] sm:$0xf]
      %v963 = vld [vmem:[#allocation2 + $0x20] sm:$0xf]
      %v964 = vld [vmem:[#allocation2 + $0x24] sm:$0x1]
      %v974 = vunpack.c.l.b16 %v956
      %v975 = vunpack.c.l.b16 %v957
      %v976 = vunpack.c.l.b16 %v958
      %v977 = vunpack.c.l.b16 %v959
      %v978 = vunpack.c.l.b16 %v960
      %v979 = vunpack.c.l.b16 %v961
      %v980 = vunpack.c.l.b16 %v962
      %v981 = vunpack.c.l.b16 %v963
      %v982 = vunpack.c.l.b16 %v964
      %v983 = vpack.c.b16 %v975, %v974
      %v984 = vpack.c.b16 %v977, %v976
      %v985 = vpack.c.b16 %v979, %v978
      %v986 = vpack.c.b16 %v981, %v980
      %v987 = vpack.c.b16 %v982, %v982
      %v989 = vshrl.u32 %v983, 16
      %v991 = vshll.u32 %v983, 16
      %v993 = vrot.slane %v991, 1
      %v994 = vor.u32 %v989, %v993
      %v996 = vshll.u32 %v984, 16
      %v998 = vrot.slane %v996, 1
      %v999 = vsel %vm724, %v994, %v998
      %v1000 = vshrl.u32 %v984, 16
      %v1002 = vor.u32 %v1000, %v998
      %v1004 = vshll.u32 %v985, 16
      %v1006 = vrot.slane %v1004, 1
      %v1007 = vsel %vm724, %v1002, %v1006
      %v1008 = vshrl.u32 %v985, 16
      %v1010 = vor.u32 %v1008, %v1006
      %v1012 = vshll.u32 %v986, 16
      %v1014 = vrot.slane %v1012, 1
      %v1015 = vsel %vm724, %v1010, %v1014
      %v1016 = vshrl.u32 %v986, 16
      %v1018 = vor.u32 %v1016, %v1014
      %v1020 = vshll.u32 %v987, 16
      %v1022 = vrot.slane %v1020, 1
      %v1023 = vsel %vm724, %v1018, %v1022
      %1028 = vst.msk [vmem:[#allocation3 + $0x10] sm:$0xff] %vm687, %v999
      %1029 = vst.msk [vmem:[#allocation3 + $0x38] sm:$0xff] %vm687, %v1007
      %1030 = vst.msk [vmem:[#allocation3 + $0x60] sm:$0xff] %vm687, %v1015
      %1031 = vst.msk [vmem:[#allocation3 + $0x88] sm:$0xff] %vm687, %v1023
      %v1032 = vld [vmem:[#allocation2 + $0x4] sm:$0xe]
      %v1033 = vld [vmem:[#allocation2 + $0x8] sm:$0xf]
      %v1034 = vld [vmem:[#allocation2 + $0xc] sm:$0xf]
      %v1035 = vld [vmem:[#allocation2 + $0x10] sm:$0xf]
      %v1036 = vld [vmem:[#allocation2 + $0x14] sm:$0xf]
      %v1037 = vld [vmem:[#allocation2 + $0x18] sm:$0xf]
      %v1038 = vld [vmem:[#allocation2 + $0x1c] sm:$0xf]
      %v1039 = vld [vmem:[#allocation2 + $0x20] sm:$0xf]
      %v1040 = vld [vmem:[#allocation2 + $0x24] sm:$0x1]
      %v1041 = vsel %vm845, 0, %v1032
      %v1042 = vsel %vm846, 0, %v1033
      %v1043 = vsel %vm847, 0, %v1034
      %v1044 = vsel %vm848, 0, %v1035
      %v1045 = vsel %vm849, 0, %v1036
      %v1046 = vsel %vm850, 0, %v1037
      %v1047 = vsel %vm851, 0, %v1038
      %v1048 = vsel %vm852, 0, %v1039
      %v1049 = vsel %vm853, 0, %v1040
      %v1059 = vunpack.c.l.b16 %v1041
      %v1060 = vunpack.c.l.b16 %v1042
      %v1061 = vunpack.c.l.b16 %v1043
      %v1062 = vunpack.c.l.b16 %v1044
      %v1063 = vunpack.c.l.b16 %v1045
      %v1064 = vunpack.c.l.b16 %v1046
      %v1065 = vunpack.c.l.b16 %v1047
      %v1066 = vunpack.c.l.b16 %v1048
      %v1067 = vunpack.c.l.b16 %v1049
      %v1068 = vpack.c.b16 %v1060, %v1059
      %v1069 = vpack.c.b16 %v1062, %v1061
      %v1070 = vpack.c.b16 %v1064, %v1063
      %v1071 = vpack.c.b16 %v1066, %v1065
      %v1072 = vpack.c.b16 %v1067, %v1067
      %v1073 = vrot.slane %v1068, 1
      %v1074 = vrot.slane %v1069, 1
      %v1075 = vsel %vm886, %v1073, %v1074
      %v1076 = vrot.slane %v1070, 1
      %v1077 = vsel %vm886, %v1074, %v1076
      %v1078 = vrot.slane %v1071, 1
      %v1079 = vsel %vm886, %v1076, %v1078
      %v1080 = vrot.slane %v1072, 1
      %v1081 = vsel %vm886, %v1078, %v1080
      %1082 = vrot.lane.b32.xlu0 %v1075, 64
      %v1083 = vpop.permute.xlu0 %1082
      %1084 = vrot.lane.b32.xlu0 %v1077, 64
      %v1085 = vpop.permute.xlu0 %1084
      %1086 = vrot.lane.b32.xlu0 %v1079, 64
      %v1087 = vpop.permute.xlu0 %1086
      %1088 = vrot.lane.b32.xlu0 %v1081, 64
      %v1089 = vpop.permute.xlu0 %1088
      %1094 = vst.msk [vmem:[#allocation3 + $0x10] sm:$0xff] %vm773, %v1083
      %1095 = vst.msk [vmem:[#allocation3 + $0x38] sm:$0xff] %vm773, %v1085
      %1096 = vst.msk [vmem:[#allocation3 + $0x60] sm:$0xff] %vm773, %v1087
      %1097 = vst.msk [vmem:[#allocation3 + $0x88] sm:$0xff] %vm773, %v1089
      %v1098 = vld [vmem:[#allocation2 + $0x8] sm:$0xf]
      %v1099 = vld [vmem:[#allocation2 + $0xc] sm:$0xf]
      %v1100 = vld [vmem:[#allocation2 + $0x10] sm:$0xf]
      %v1101 = vld [vmem:[#allocation2 + $0x14] sm:$0xf]
      %v1102 = vld [vmem:[#allocation2 + $0x18] sm:$0xf]
      %v1103 = vld [vmem:[#allocation2 + $0x1c] sm:$0xf]
      %v1104 = vld [vmem:[#allocation2 + $0x20] sm:$0xf]
      %v1105 = vld [vmem:[#allocation2 + $0x24] sm:$0xf]
      %v1106 = vsel %vm647, 0, %v1098
      %v1107 = vsel %vm648, 0, %v1099
      %v1108 = vsel %vm649, 0, %v1100
      %v1109 = vsel %vm650, 0, %v1101
      %v1110 = vsel %vm651, 0, %v1102
      %v1111 = vsel %vm652, 0, %v1103
      %v1112 = vsel %vm653, 0, %v1104
      %v1113 = vsel %vm654, 0, %v1105
      %v1122 = vunpack.c.l.b16 %v1106
      %v1123 = vunpack.c.l.b16 %v1107
      %v1124 = vunpack.c.l.b16 %v1108
      %v1125 = vunpack.c.l.b16 %v1109
      %v1126 = vunpack.c.l.b16 %v1110
      %v1127 = vunpack.c.l.b16 %v1111
      %v1128 = vunpack.c.l.b16 %v1112
      %v1129 = vunpack.c.l.b16 %v1113
      %v1130 = vpack.c.b16 %v1123, %v1122
      %v1131 = vpack.c.b16 %v1125, %v1124
      %v1132 = vpack.c.b16 %v1127, %v1126
      %v1133 = vpack.c.b16 %v1129, %v1128
      %1138 = vst.msk [vmem:[#allocation3 + $0x18] sm:$0xff] %vm687, %v1130
      %1139 = vst.msk [vmem:[#allocation3 + $0x40] sm:$0xff] %vm687, %v1131
      %1140 = vst.msk [vmem:[#allocation3 + $0x68] sm:$0xff] %vm687, %v1132
      %1141 = vst.msk [vmem:[#allocation3 + $0x90] sm:$0xff] %vm687, %v1133
      %v1142 = vld [vmem:[#allocation2 + $0x8] sm:$0xf]
      %v1143 = vld [vmem:[#allocation2 + $0xc] sm:$0xf]
      %v1144 = vld [vmem:[#allocation2 + $0x10] sm:$0xf]
      %v1145 = vld [vmem:[#allocation2 + $0x14] sm:$0xf]
      %v1146 = vld [vmem:[#allocation2 + $0x18] sm:$0xf]
      %v1147 = vld [vmem:[#allocation2 + $0x1c] sm:$0xf]
      %v1148 = vld [vmem:[#allocation2 + $0x20] sm:$0xf]
      %v1149 = vld [vmem:[#allocation2 + $0x24] sm:$0xf]
      %v1150 = vld [vmem:[#allocation2 + $0x28] sm:$0x1]
      %v1160 = vunpack.c.l.b16 %v1142
      %v1161 = vunpack.c.l.b16 %v1143
      %v1162 = vunpack.c.l.b16 %v1144
      %v1163 = vunpack.c.l.b16 %v1145
      %v1164 = vunpack.c.l.b16 %v1146
      %v1165 = vunpack.c.l.b16 %v1147
      %v1166 = vunpack.c.l.b16 %v1148
      %v1167 = vunpack.c.l.b16 %v1149
      %v1168 = vunpack.c.l.b16 %v1150
      %v1169 = vpack.c.b16 %v1161, %v1160
      %v1170 = vpack.c.b16 %v1163, %v1162
      %v1171 = vpack.c.b16 %v1165, %v1164
      %v1172 = vpack.c.b16 %v1167, %v1166
      %v1173 = vpack.c.b16 %v1168, %v1168
      %v1175 = vshrl.u32 %v1169, 16
      %v1177 = vshll.u32 %v1169, 16
      %v1179 = vrot.slane %v1177, 1
      %v1180 = vor.u32 %v1175, %v1179
      %v1182 = vshll.u32 %v1170, 16
      %v1184 = vrot.slane %v1182, 1
      %v1185 = vsel %vm724, %v1180, %v1184
      %v1186 = vshrl.u32 %v1170, 16
      %v1188 = vor.u32 %v1186, %v1184
      %v1190 = vshll.u32 %v1171, 16
      %v1192 = vrot.slane %v1190, 1
      %v1193 = vsel %vm724, %v1188, %v1192
      %v1194 = vshrl.u32 %v1171, 16
      %v1196 = vor.u32 %v1194, %v1192
      %v1198 = vshll.u32 %v1172, 16
      %v1200 = vrot.slane %v1198, 1
      %v1201 = vsel %vm724, %v1196, %v1200
      %v1202 = vshrl.u32 %v1172, 16
      %v1204 = vor.u32 %v1202, %v1200
      %v1206 = vshll.u32 %v1173, 16
      %v1208 = vrot.slane %v1206, 1
      %v1209 = vsel %vm724, %v1204, %v1208
      %1210 = vrot.lane.b32.xlu0 %v1185, 64
      %v1211 = vpop.permute.xlu0 %1210
      %1212 = vrot.lane.b32.xlu0 %v1193, 64
      %v1213 = vpop.permute.xlu0 %1212
      %1214 = vrot.lane.b32.xlu0 %v1201, 64
      %v1215 = vpop.permute.xlu0 %1214
      %1216 = vrot.lane.b32.xlu0 %v1209, 64
      %v1217 = vpop.permute.xlu0 %1216
      %1222 = vst.msk [vmem:[#allocation3 + $0x18] sm:$0xff] %vm773, %v1211
      %1223 = vst.msk [vmem:[#allocation3 + $0x40] sm:$0xff] %vm773, %v1213
      %1224 = vst.msk [vmem:[#allocation3 + $0x68] sm:$0xff] %vm773, %v1215
      %1225 = vst.msk [vmem:[#allocation3 + $0x90] sm:$0xff] %vm773, %v1217
      %v1226 = vld [vmem:[#allocation2 + $0x8] sm:$0xe]
      %v1227 = vld [vmem:[#allocation2 + $0xc] sm:$0xf]
      %v1228 = vld [vmem:[#allocation2 + $0x10] sm:$0xf]
      %v1229 = vld [vmem:[#allocation2 + $0x14] sm:$0xf]
      %v1230 = vld [vmem:[#allocation2 + $0x18] sm:$0xf]
      %v1231 = vld [vmem:[#allocation2 + $0x1c] sm:$0xf]
      %v1232 = vld [vmem:[#allocation2 + $0x20] sm:$0xf]
      %v1233 = vld [vmem:[#allocation2 + $0x24] sm:$0xf]
      %v1234 = vld [vmem:[#allocation2 + $0x28] sm:$0x1]
      %v1235 = vsel %vm845, 0, %v1226
      %v1236 = vsel %vm846, 0, %v1227
      %v1237 = vsel %vm847, 0, %v1228
      %v1238 = vsel %vm848, 0, %v1229
      %v1239 = vsel %vm849, 0, %v1230
      %v1240 = vsel %vm850, 0, %v1231
      %v1241 = vsel %vm851, 0, %v1232
      %v1242 = vsel %vm852, 0, %v1233
      %v1243 = vsel %vm853, 0, %v1234
      %v1253 = vunpack.c.l.b16 %v1235
      %v1254 = vunpack.c.l.b16 %v1236
      %v1255 = vunpack.c.l.b16 %v1237
      %v1256 = vunpack.c.l.b16 %v1238
      %v1257 = vunpack.c.l.b16 %v1239
      %v1258 = vunpack.c.l.b16 %v1240
      %v1259 = vunpack.c.l.b16 %v1241
      %v1260 = vunpack.c.l.b16 %v1242
      %v1261 = vunpack.c.l.b16 %v1243
      %v1262 = vpack.c.b16 %v1254, %v1253
      %v1263 = vpack.c.b16 %v1256, %v1255
      %v1264 = vpack.c.b16 %v1258, %v1257
      %v1265 = vpack.c.b16 %v1260, %v1259
      %v1266 = vpack.c.b16 %v1261, %v1261
      %v1267 = vrot.slane %v1262, 1
      %v1268 = vrot.slane %v1263, 1
      %v1269 = vsel %vm886, %v1267, %v1268
      %v1270 = vrot.slane %v1264, 1
      %v1271 = vsel %vm886, %v1268, %v1270
      %v1272 = vrot.slane %v1265, 1
      %v1273 = vsel %vm886, %v1270, %v1272
      %v1274 = vrot.slane %v1266, 1
      %v1275 = vsel %vm886, %v1272, %v1274
      %1280 = vst.msk [vmem:[#allocation3 + $0x20] sm:$0xff] %vm687, %v1269
      %1281 = vst.msk [vmem:[#allocation3 + $0x48] sm:$0xff] %vm687, %v1271
      %1282 = vst.msk [vmem:[#allocation3 + $0x70] sm:$0xff] %vm687, %v1273
      %1283 = vst.msk [vmem:[#allocation3 + $0x98] sm:$0xff] %vm687, %v1275
      %v1284 = vld [vmem:[#allocation3] sm:$0xff]
      %v1285 = vld [vmem:[#allocation3 + $0x8] sm:$0xff]
      %v1286 = vld [vmem:[#allocation3 + $0x10] sm:$0xff]
      %v1287 = vld [vmem:[#allocation3 + $0x18] sm:$0xff]
      %v1288 = vld [vmem:[#allocation3 + $0x20] sm:$0xff]
      %v1289 = vld [vmem:[#allocation3 + $0x28] sm:$0xff]
      %v1290 = vld [vmem:[#allocation3 + $0x30] sm:$0xff]
      %v1291 = vld [vmem:[#allocation3 + $0x38] sm:$0xff]
      %v1292 = vld [vmem:[#allocation3 + $0x40] sm:$0xff]
      %v1293 = vld [vmem:[#allocation3 + $0x48] sm:$0xff]
      %v1294 = vld [vmem:[#allocation3 + $0x50] sm:$0xff]
      %v1295 = vld [vmem:[#allocation3 + $0x58] sm:$0xff]
      %v1296 = vld [vmem:[#allocation3 + $0x60] sm:$0xff]
      %v1297 = vld [vmem:[#allocation3 + $0x68] sm:$0xff]
      %v1298 = vld [vmem:[#allocation3 + $0x70] sm:$0xff]
      %v1299 = vld [vmem:[#allocation3 + $0x78] sm:$0xff]
      %v1300 = vld [vmem:[#allocation3 + $0x80] sm:$0xff]
      %v1301 = vld [vmem:[#allocation3 + $0x88] sm:$0xff]
      %v1302 = vld [vmem:[#allocation3 + $0x90] sm:$0xff]
      %v1303 = vld [vmem:[#allocation3 + $0x98] sm:$0xff]
      %v1304 = vld [vmem:[%s2] sm:$0xf]
      %v1305 = vld [vmem:[%s2 + $0x4] sm:$0xf]
      %v1306 = vld [vmem:[%s2 + $0x8] sm:$0xf]
      %v1307 = vld [vmem:[%s2 + $0xc] sm:$0xf]
      %v1308 = vld [vmem:[%s2 + $0x10] sm:$0xf]
      %v1309 = vld [vmem:[%s2 + $0x14] sm:$0xf]
      %v1310 = vld [vmem:[%s2 + $0x18] sm:$0xf]
      %v1311 = vld [vmem:[%s2 + $0x1c] sm:$0xf]
      %v1312 = vld [vmem:[%s2 + $0x20] sm:$0xf]
      %v1313 = vld [vmem:[%s2 + $0x24] sm:$0xf]
      %v1314 = vld [vmem:[%s2 + $0x28] sm:$0xf]
      %v1315 = vld [vmem:[%s2 + $0x2c] sm:$0xf]
      %v1316 = vld [vmem:[%s2 + $0x30] sm:$0xf]
      %v1317 = vld [vmem:[%s2 + $0x34] sm:$0xf]
      %v1318 = vld [vmem:[%s2 + $0x38] sm:$0xf]
      %v1319 = vld [vmem:[%s2 + $0x3c] sm:$0xf]
      %v1320 = vld [vmem:[%s2 + $0x40] sm:$0xf]
      %v1321 = vld [vmem:[%s2 + $0x44] sm:$0xf]
      %v1322 = vld [vmem:[%s2 + $0x48] sm:$0xf]
      %v1323 = vld [vmem:[%s2 + $0x4c] sm:$0xf]
      %v1324 = vld [vmem:[%s2 + $0x50] sm:$0xf]
      %v1325 = vld [vmem:[%s2 + $0x54] sm:$0xf]
      %v1326 = vld [vmem:[%s2 + $0x58] sm:$0xf]
      %v1327 = vld [vmem:[%s2 + $0x5c] sm:$0xf]
      %v1328 = vld [vmem:[%s2 + $0x60] sm:$0xf]
      %v1329 = vld [vmem:[%s2 + $0x64] sm:$0xf]
      %v1330 = vld [vmem:[%s2 + $0x68] sm:$0xf]
      %v1331 = vld [vmem:[%s2 + $0x6c] sm:$0xf]
      %v1332 = vld [vmem:[%s2 + $0x70] sm:$0xf]
      %v1333 = vld [vmem:[%s2 + $0x74] sm:$0xf]
      %v1334 = vld [vmem:[%s2 + $0x78] sm:$0xf]
      %v1335 = vld [vmem:[%s2 + $0x7c] sm:$0xf]
      %v1336 = vld [vmem:[%s2 + $0x80] sm:$0xf]
      %v1337 = vld [vmem:[%s2 + $0x84] sm:$0xf]
      %v1338 = vld [vmem:[%s2 + $0x88] sm:$0xf]
      %v1339 = vld [vmem:[%s2 + $0x8c] sm:$0xf]
      %v1340 = vld [vmem:[%s2 + $0x90] sm:$0xf]
      %v1341 = vld [vmem:[%s2 + $0x94] sm:$0xf]
      %v1342 = vld [vmem:[%s2 + $0x98] sm:$0xf]
      %v1343 = vld [vmem:[%s2 + $0x9c] sm:$0xf]
      %v1344 = vld [vmem:[%s2 + $0xa0] sm:$0xf]
      %v1345 = vld [vmem:[%s2 + $0xa4] sm:$0xf]
      %v1346 = vld [vmem:[%s2 + $0xa8] sm:$0xf]
      %v1347 = vld [vmem:[%s2 + $0xac] sm:$0xf]
      %v1348 = vld [vmem:[%s2 + $0xb0] sm:$0xf]
      %v1349 = vld [vmem:[%s2 + $0xb4] sm:$0xf]
      %v1350 = vld [vmem:[%s2 + $0xb8] sm:$0xf]
      %v1351 = vld [vmem:[%s2 + $0xbc] sm:$0xf]
      %v1352 = vld [vmem:[%s2 + $0xc0] sm:$0xf]
      %v1353 = vld [vmem:[%s2 + $0xc4] sm:$0xf]
      %v1354 = vld [vmem:[%s2 + $0xc8] sm:$0xf]
      %v1355 = vld [vmem:[%s2 + $0xcc] sm:$0xf]
      %v1356 = vld [vmem:[%s2 + $0xd0] sm:$0xf]
      %v1357 = vld [vmem:[%s2 + $0xd4] sm:$0xf]
      %v1358 = vld [vmem:[%s2 + $0xd8] sm:$0xf]
      %v1359 = vld [vmem:[%s2 + $0xdc] sm:$0xf]
      %v1360 = vld [vmem:[%s2 + $0xe0] sm:$0xf]
      %v1361 = vld [vmem:[%s2 + $0xe4] sm:$0xf]
      %v1362 = vld [vmem:[%s2 + $0xe8] sm:$0xf]
      %v1363 = vld [vmem:[%s2 + $0xec] sm:$0xf]
      %v1364 = vld [vmem:[%s2 + $0xf0] sm:$0xf]
      %v1365 = vld [vmem:[%s2 + $0xf4] sm:$0xf]
      %v1366 = vld [vmem:[%s2 + $0xf8] sm:$0xf]
      %v1367 = vld [vmem:[%s2 + $0xfc] sm:$0xf]
      %v1368 = vld [vmem:[%s2 + $0x100] sm:$0xf]
      %v1369 = vld [vmem:[%s2 + $0x104] sm:$0xf]
      %v1370 = vld [vmem:[%s2 + $0x108] sm:$0xf]
      %v1371 = vld [vmem:[%s2 + $0x10c] sm:$0xf]
      %v1372 = vld [vmem:[%s2 + $0x110] sm:$0xf]
      %v1373 = vld [vmem:[%s2 + $0x114] sm:$0xf]
      %v1374 = vld [vmem:[%s2 + $0x118] sm:$0xf]
      %v1375 = vld [vmem:[%s2 + $0x11c] sm:$0xf]
      %v1448 = vunpack.c.l.b16 %v1304
      %v1449 = vunpack.c.l.b16 %v1305
      %v1450 = vunpack.c.l.b16 %v1306
      %v1451 = vunpack.c.l.b16 %v1307
      %v1452 = vunpack.c.l.b16 %v1308
      %v1453 = vunpack.c.l.b16 %v1309
      %v1454 = vunpack.c.l.b16 %v1310
      %v1455 = vunpack.c.l.b16 %v1311
      %v1456 = vunpack.c.l.b16 %v1312
      %v1457 = vunpack.c.l.b16 %v1313
      %v1458 = vunpack.c.l.b16 %v1314
      %v1459 = vunpack.c.l.b16 %v1315
      %v1460 = vunpack.c.l.b16 %v1316
      %v1461 = vunpack.c.l.b16 %v1317
      %v1462 = vunpack.c.l.b16 %v1318
      %v1463 = vunpack.c.l.b16 %v1319
      %v1464 = vunpack.c.l.b16 %v1320
      %v1465 = vunpack.c.l.b16 %v1321
      %v1466 = vunpack.c.l.b16 %v1322
      %v1467 = vunpack.c.l.b16 %v1323
      %v1468 = vunpack.c.l.b16 %v1324
      %v1469 = vunpack.c.l.b16 %v1325
      %v1470 = vunpack.c.l.b16 %v1326
      %v1471 = vunpack.c.l.b16 %v1327
      %v1472 = vunpack.c.l.b16 %v1328
      %v1473 = vunpack.c.l.b16 %v1329
      %v1474 = vunpack.c.l.b16 %v1330
      %v1475 = vunpack.c.l.b16 %v1331
      %v1476 = vunpack.c.l.b16 %v1332
      %v1477 = vunpack.c.l.b16 %v1333
      %v1478 = vunpack.c.l.b16 %v1334
      %v1479 = vunpack.c.l.b16 %v1335
      %v1480 = vunpack.c.l.b16 %v1336
      %v1481 = vunpack.c.l.b16 %v1337
      %v1482 = vunpack.c.l.b16 %v1338
      %v1483 = vunpack.c.l.b16 %v1339
      %v1484 = vunpack.c.l.b16 %v1340
      %v1485 = vunpack.c.l.b16 %v1341
      %v1486 = vunpack.c.l.b16 %v1342
      %v1487 = vunpack.c.l.b16 %v1343
      %v1488 = vunpack.c.l.b16 %v1344
      %v1489 = vunpack.c.l.b16 %v1345
      %v1490 = vunpack.c.l.b16 %v1346
      %v1491 = vunpack.c.l.b16 %v1347
      %v1492 = vunpack.c.l.b16 %v1348
      %v1493 = vunpack.c.l.b16 %v1349
      %v1494 = vunpack.c.l.b16 %v1350
      %v1495 = vunpack.c.l.b16 %v1351
      %v1496 = vunpack.c.l.b16 %v1352
      %v1497 = vunpack.c.l.b16 %v1353
      %v1498 = vunpack.c.l.b16 %v1354
      %v1499 = vunpack.c.l.b16 %v1355
      %v1500 = vunpack.c.l.b16 %v1356
      %v1501 = vunpack.c.l.b16 %v1357
      %v1502 = vunpack.c.l.b16 %v1358
      %v1503 = vunpack.c.l.b16 %v1359
      %v1504 = vunpack.c.l.b16 %v1360
      %v1505 = vunpack.c.l.b16 %v1361
      %v1506 = vunpack.c.l.b16 %v1362
      %v1507 = vunpack.c.l.b16 %v1363
      %v1508 = vunpack.c.l.b16 %v1364
      %v1509 = vunpack.c.l.b16 %v1365
      %v1510 = vunpack.c.l.b16 %v1366
      %v1511 = vunpack.c.l.b16 %v1367
      %v1512 = vunpack.c.l.b16 %v1368
      %v1513 = vunpack.c.l.b16 %v1369
      %v1514 = vunpack.c.l.b16 %v1370
      %v1515 = vunpack.c.l.b16 %v1371
      %v1516 = vunpack.c.l.b16 %v1372
      %v1517 = vunpack.c.l.b16 %v1373
      %v1518 = vunpack.c.l.b16 %v1374
      %v1519 = vunpack.c.l.b16 %v1375
      %v1520 = vpack.c.b16 %v1449, %v1448
      %v1521 = vpack.c.b16 %v1451, %v1450
      %v1522 = vpack.c.b16 %v1453, %v1452
      %v1523 = vpack.c.b16 %v1455, %v1454
      %v1524 = vpack.c.b16 %v1457, %v1456
      %v1525 = vpack.c.b16 %v1459, %v1458
      %v1526 = vpack.c.b16 %v1461, %v1460
      %v1527 = vpack.c.b16 %v1463, %v1462
      %v1528 = vpack.c.b16 %v1465, %v1464
      %v1529 = vpack.c.b16 %v1467, %v1466
      %v1530 = vpack.c.b16 %v1469, %v1468
      %v1531 = vpack.c.b16 %v1471, %v1470
      %v1532 = vpack.c.b16 %v1473, %v1472
      %v1533 = vpack.c.b16 %v1475, %v1474
      %v1534 = vpack.c.b16 %v1477, %v1476
      %v1535 = vpack.c.b16 %v1479, %v1478
      %v1536 = vpack.c.b16 %v1481, %v1480
      %v1537 = vpack.c.b16 %v1483, %v1482
      %v1538 = vpack.c.b16 %v1485, %v1484
      %v1539 = vpack.c.b16 %v1487, %v1486
      %v1540 = vpack.c.b16 %v1489, %v1488
      %v1541 = vpack.c.b16 %v1491, %v1490
      %v1542 = vpack.c.b16 %v1493, %v1492
      %v1543 = vpack.c.b16 %v1495, %v1494
      %v1544 = vpack.c.b16 %v1497, %v1496
      %v1545 = vpack.c.b16 %v1499, %v1498
      %v1546 = vpack.c.b16 %v1501, %v1500
      %v1547 = vpack.c.b16 %v1503, %v1502
      %v1548 = vpack.c.b16 %v1505, %v1504
      %v1549 = vpack.c.b16 %v1507, %v1506
      %v1550 = vpack.c.b16 %v1509, %v1508
      %v1551 = vpack.c.b16 %v1511, %v1510
      %v1552 = vpack.c.b16 %v1513, %v1512
      %v1553 = vpack.c.b16 %v1515, %v1514
      %v1554 = vpack.c.b16 %v1517, %v1516
      %v1555 = vpack.c.b16 %v1519, %v1518
      %v1593 = vsel %vm687, %v1288, 0
      %v1596 = vsel %vm687, %v1293, 0
      %v1599 = vsel %vm687, %v1298, 0
      %v1602 = vsel %vm687, %v1303, 0
      %1604 = vmatprep.subr.bf16.mxu0 0
      %1605 = vmatpush1.bf16.msra.mxu0 %v1520
      %1606 = vmatprep.subr.bf16.mxu0 0
      %1607 = vmatpush1.bf16.msra.mxu0 %v1521
      %1608 = vmatprep.subr.bf16.mxu0 0
      %1609 = vmatpush1.bf16.msra.mxu0 %v1522
      %1610 = vmatprep.subr.bf16.mxu0 0
      %1611 = vmatpush1.bf16.msra.mxu0 %v1523
      %1612 = vmatprep.subr.bf16.mxu0 0
      %1613 = vmatpush1.bf16.msra.mxu0 %v1524
      %1614 = vmatprep.subr.bf16.mxu0 0
      %1615 = vmatpush1.bf16.msra.mxu0 %v1525
      %1616 = vmatprep.subr.bf16.mxu0 0
      %1617 = vmatpush1.bf16.msra.mxu0 %v1526
      %1618 = vmatprep.subr.bf16.mxu0 0
      %1619 = vmatpush1.bf16.msra.mxu0 %v1527
      %1620 = vmatprep.subr.bf16.mxu0 0
      %1621 = vmatpush1.bf16.msra.mxu0 %v1528
      %1622 = vmatprep.subr.bf16.mxu0 0
      %1623 = vmatpush1.bf16.msra.mxu0 %v1529
      %1624 = vmatprep.subr.bf16.mxu0 0
      %1625 = vmatpush1.bf16.msra.mxu0 %v1530
      %1626 = vmatprep.subr.bf16.mxu0 0
      %1627 = vmatpush1.bf16.msra.mxu0 %v1531
      %1628 = vmatprep.subr.bf16.mxu0 0
      %1629 = vmatpush1.bf16.msra.mxu0 %v1532
      %1630 = vmatprep.subr.bf16.mxu0 0
      %1631 = vmatpush1.bf16.msra.mxu0 %v1533
      %1632 = vmatprep.subr.bf16.mxu0 0
      %1633 = vmatpush1.bf16.msra.mxu0 %v1534
      %1634 = vmatprep.subr.bf16.mxu0 0
      %1635 = vmatpush1.bf16.msra.mxu0 %v1535
      %1636 = vmatprep.mubr.bf16.mxu0 %v1285
      %1637 = vmatmul.mubr.bf16.gmra.mrb[0].mxu0 %v1284
      %v1638 = vpop.f32.mrb[0].mxu0
      %v1639 = vadd.f32 0.0, %v1638
      %v1640 = vpop.f32.mrb[0].mxu0
      %v1641 = vpop.f32.mrb[0].mxu0
      %v1642 = vadd.f32 0.0, %v1641
      %v1643 = vpop.f32.mrb[0].mxu0
      %1644 = vmatprep.mubr.bf16.mxu0 %v1290
      %1645 = vmatmul.mubr.bf16.gmra.mrb[0].mxu0 %v1289
      %v1646 = vpop.f32.mrb[0].mxu0
      %v1647 = vadd.f32 0.0, %v1646
      %v1648 = vpop.f32.mrb[0].mxu0
      %v1649 = vpop.f32.mrb[0].mxu0
      %v1650 = vadd.f32 0.0, %v1649
      %v1651 = vpop.f32.mrb[0].mxu0
      %1652 = vmatprep.mubr.bf16.mxu0 %v1295
      %1653 = vmatmul.mubr.bf16.gmra.mrb[0].mxu0 %v1294
      %v1654 = vpop.f32.mrb[0].mxu0
      %v1655 = vadd.f32 0.0, %v1654
      %v1656 = vpop.f32.mrb[0].mxu0
      %v1657 = vpop.f32.mrb[0].mxu0
      %v1658 = vadd.f32 0.0, %v1657
      %v1659 = vpop.f32.mrb[0].mxu0
      %1660 = vmatprep.mubr.bf16.mxu0 %v1300
      %1661 = vmatmul.mubr.bf16.gmra.mrb[0].mxu0 %v1299
      %v1662 = vpop.f32.mrb[0].mxu0
      %v1663 = vadd.f32 0.0, %v1662
      %v1664 = vpop.f32.mrb[0].mxu0
      %v1665 = vpop.f32.mrb[0].mxu0
      %v1666 = vadd.f32 0.0, %v1665
      %v1667 = vpop.f32.mrb[0].mxu0
      %1668 = vdwg.mxu0
      %1669 = vmatprep.subr.bf16.mxu0 0
      %1670 = vmatpush1.bf16.msra.mxu0 %v1536
      %1671 = vmatprep.subr.bf16.mxu0 0
      %1672 = vmatpush1.bf16.msra.mxu0 %v1537
      %1673 = vmatprep.subr.bf16.mxu0 0
      %1674 = vmatpush1.bf16.msra.mxu0 %v1538
      %1675 = vmatprep.subr.bf16.mxu0 0
      %1676 = vmatpush1.bf16.msra.mxu0 %v1539
      %1677 = vmatprep.subr.bf16.mxu0 0
      %1678 = vmatpush1.bf16.msra.mxu0 %v1540
      %1679 = vmatprep.subr.bf16.mxu0 0
      %1680 = vmatpush1.bf16.msra.mxu0 %v1541
      %1681 = vmatprep.subr.bf16.mxu0 0
      %1682 = vmatpush1.bf16.msra.mxu0 %v1542
      %1683 = vmatprep.subr.bf16.mxu0 0
      %1684 = vmatpush1.bf16.msra.mxu0 %v1543
      %1685 = vmatprep.subr.bf16.mxu0 0
      %1686 = vmatpush1.bf16.msra.mxu0 %v1544
      %1687 = vmatprep.subr.bf16.mxu0 0
      %1688 = vmatpush1.bf16.msra.mxu0 %v1545
      %1689 = vmatprep.subr.bf16.mxu0 0
      %1690 = vmatpush1.bf16.msra.mxu0 %v1546
      %1691 = vmatprep.subr.bf16.mxu0 0
      %1692 = vmatpush1.bf16.msra.mxu0 %v1547
      %1693 = vmatprep.subr.bf16.mxu0 0
      %1694 = vmatpush1.bf16.msra.mxu0 %v1548
      %1695 = vmatprep.subr.bf16.mxu0 0
      %1696 = vmatpush1.bf16.msra.mxu0 %v1549
      %1697 = vmatprep.subr.bf16.mxu0 0
      %1698 = vmatpush1.bf16.msra.mxu0 %v1550
      %1699 = vmatprep.subr.bf16.mxu0 0
      %1700 = vmatpush1.bf16.msra.mxu0 %v1551
      %1701 = vmatprep.mubr.bf16.mxu0 %v1287
      %1702 = vmatmul.mubr.bf16.gmra.mrb[0].mxu0 %v1286
      %v1703 = vpop.f32.mrb[0].mxu0
      %v1704 = vadd.f32 %v1639, %v1703
      %v1705 = vpop.f32.mrb[0].mxu0
      %v1706 = vpop.f32.mrb[0].mxu0
      %v1707 = vadd.f32 %v1642, %v1706
      %v1708 = vpop.f32.mrb[0].mxu0
      %1709 = vmatprep.mubr.bf16.mxu0 %v1292
      %1710 = vmatmul.mubr.bf16.gmra.mrb[0].mxu0 %v1291
      %v1711 = vpop.f32.mrb[0].mxu0
      %v1712 = vadd.f32 %v1647, %v1711
      %v1713 = vpop.f32.mrb[0].mxu0
      %v1714 = vpop.f32.mrb[0].mxu0
      %v1715 = vadd.f32 %v1650, %v1714
      %v1716 = vpop.f32.mrb[0].mxu0
      %1717 = vmatprep.mubr.bf16.mxu0 %v1297
      %1718 = vmatmul.mubr.bf16.gmra.mrb[0].mxu0 %v1296
      %v1719 = vpop.f32.mrb[0].mxu0
      %v1720 = vadd.f32 %v1655, %v1719
      %v1721 = vpop.f32.mrb[0].mxu0
      %v1722 = vpop.f32.mrb[0].mxu0
      %v1723 = vadd.f32 %v1658, %v1722
      %v1724 = vpop.f32.mrb[0].mxu0
      %1725 = vmatprep.mubr.bf16.mxu0 %v1302
      %1726 = vmatmul.mubr.bf16.gmra.mrb[0].mxu0 %v1301
      %v1727 = vpop.f32.mrb[0].mxu0
      %v1728 = vadd.f32 %v1663, %v1727
      %v1729 = vpop.f32.mrb[0].mxu0
      %v1730 = vpop.f32.mrb[0].mxu0
      %v1731 = vadd.f32 %v1666, %v1730
      %v1732 = vpop.f32.mrb[0].mxu0
      %1733 = vdwg.mxu0
      %1734 = vmatprep.subr.bf16.mxu0 0
      %1735 = vmatpush1.bf16.msra.mxu0 %v1552
      %1736 = vmatprep.subr.bf16.mxu0 0
      %1737 = vmatpush1.bf16.msra.mxu0 %v1553
      %1738 = vmatprep.subr.bf16.mxu0 0
      %1739 = vmatpush1.bf16.msra.mxu0 %v1554
      %1740 = vmatprep.subr.bf16.mxu0 0
      %1741 = vmatpush1.bf16.msra.mxu0 %v1555
      %1742 = vmatprep.subr.bf16.mxu0 0
      %1743 = vmatpush1.bf16.msra.mxu0 0
      %1744 = vmatprep.subr.bf16.mxu0 0
      %1745 = vmatpush1.bf16.msra.mxu0 0
      %1746 = vmatprep.subr.bf16.mxu0 0
      %1747 = vmatpush1.bf16.msra.mxu0 0
      %1748 = vmatprep.subr.bf16.mxu0 0
      %1749 = vmatpush1.bf16.msra.mxu0 0
      %1750 = vmatprep.subr.bf16.mxu0 0
      %1751 = vmatpush1.bf16.msra.mxu0 0
      %1752 = vmatprep.subr.bf16.mxu0 0
      %1753 = vmatpush1.bf16.msra.mxu0 0
      %1754 = vmatprep.subr.bf16.mxu0 0
      %1755 = vmatpush1.bf16.msra.mxu0 0
      %1756 = vmatprep.subr.bf16.mxu0 0
      %1757 = vmatpush1.bf16.msra.mxu0 0
      %1758 = vmatprep.subr.bf16.mxu0 0
      %1759 = vmatpush1.bf16.msra.mxu0 0
      %1760 = vmatprep.subr.bf16.mxu0 0
      %1761 = vmatpush1.bf16.msra.mxu0 0
      %1762 = vmatprep.subr.bf16.mxu0 0
      %1763 = vmatpush1.bf16.msra.mxu0 0
      %1764 = vmatprep.subr.bf16.mxu0 0
      %1765 = vmatpush1.bf16.msra.mxu0 0
      %1766 = vmatprep.mubr.bf16.mxu0 0
      %1767 = vmatmul.mubr.bf16.gmra.mrb[0].mxu0 %v1593
      %v1768 = vpop.f32.mrb[0].mxu0
      %v1769 = vadd.f32 %v1704, %v1768
      %v1770 = vpop.f32.mrb[0].mxu0
      %v1771 = vpop.f32.mrb[0].mxu0
      %v1772 = vadd.f32 %v1707, %v1771
      %v1773 = vpop.f32.mrb[0].mxu0
      %1774 = vmatprep.mubr.bf16.mxu0 0
      %1775 = vmatmul.mubr.bf16.gmra.mrb[0].mxu0 %v1596
      %v1776 = vpop.f32.mrb[0].mxu0
      %v1777 = vadd.f32 %v1712, %v1776
      %v1778 = vpop.f32.mrb[0].mxu0
      %v1779 = vpop.f32.mrb[0].mxu0
      %v1780 = vadd.f32 %v1715, %v1779
      %v1781 = vpop.f32.mrb[0].mxu0
      %1782 = vmatprep.mubr.bf16.mxu0 0
      %1783 = vmatmul.mubr.bf16.gmra.mrb[0].mxu0 %v1599
      %v1784 = vpop.f32.mrb[0].mxu0
      %v1785 = vadd.f32 %v1720, %v1784
      %v1786 = vpop.f32.mrb[0].mxu0
      %v1787 = vpop.f32.mrb[0].mxu0
      %v1788 = vadd.f32 %v1723, %v1787
      %v1789 = vpop.f32.mrb[0].mxu0
      %1790 = vmatprep.mubr.bf16.mxu0 0
      %1791 = vmatmul.mubr.bf16.gmra.mrb[0].mxu0 %v1602
      %v1792 = vpop.f32.mrb[0].mxu0
      %v1793 = vadd.f32 %v1728, %v1792
      %v1794 = vpop.f32.mrb[0].mxu0
      %v1795 = vpop.f32.mrb[0].mxu0
      %v1796 = vadd.f32 %v1731, %v1795
      %v1797 = vpop.f32.mrb[0].mxu0
      %1798 = vdwg.mxu0
      %v1799 = vld [vmem:[%s6] sm:$0x1]
      %v1801 = vlaneseq
      %v1802 = vshrl.u32 %v1801, 7
      %v1803 = vsub.s32 0, %v1802
      %v1804 = vrot.slane %v1799, %v1803
      %v1806 = vmul.f32 %v1769, %v1804
      %v1807 = vmul.f32 %v1772, %v1804
      %v1808 = vmul.f32 %v1777, %v1804
      %v1809 = vmul.f32 %v1780, %v1804
      %v1810 = vmul.f32 %v1785, %v1804
      %v1811 = vmul.f32 %v1788, %v1804
      %v1812 = vmul.f32 %v1793, %v1804
      %v1813 = vmul.f32 %v1796, %v1804
      %v1814 = vld [vmem:[%s7] sm:$0x1]
      %v1816 = vlaneseq
      %v1817 = vshrl.u32 %v1816, 7
      %v1818 = vsub.s32 0, %v1817
      %v1819 = vrot.slane %v1814, %v1818
      %v1821 = vadd.f32 %v1806, %v1819
      %v1822 = vadd.f32 %v1807, %v1819
      %v1823 = vadd.f32 %v1808, %v1819
      %v1824 = vadd.f32 %v1809, %v1819
      %v1825 = vadd.f32 %v1810, %v1819
      %v1826 = vadd.f32 %v1811, %v1819
      %v1827 = vadd.f32 %v1812, %v1819
      %v1828 = vadd.f32 %v1813, %v1819
      %v1829 = vmax.f32 %v1821, 0.0
      %v1830 = vmax.f32 %v1822, 0.0
      %v1831 = vmax.f32 %v1823, 0.0
      %v1832 = vmax.f32 %v1824, 0.0
      %v1833 = vmax.f32 %v1825, 0.0
      %v1834 = vmax.f32 %v1826, 0.0
      %v1835 = vmax.f32 %v1827, 0.0
      %v1836 = vmax.f32 %v1828, 0.0
      %vm1837 = vcmask 261120
      %1838 = vst.msk [vmem:[#allocation4] sm:$0xff] %vm1837, 0.0
      %vm1839 = vcmask 253952
      %1840 = vst.msk [vmem:[#allocation4 + $0x8] sm:$0x1] %vm1839, 0.0
      %1841 = vst.msk [vmem:[#allocation4 + $0x49] sm:$0xff] %vm1837, 0.0
      %1842 = vst.msk [vmem:[#allocation4 + $0x51] sm:$0x1] %vm1839, 0.0
      %1843 = vst.msk [vmem:[#allocation4 + $0x9] sm:$0xff] %vm1837, %v1829
      %1844 = vst.msk [vmem:[#allocation4 + $0x11] sm:$0xff] %vm1837, %v1830
      %1845 = vst.msk [vmem:[#allocation4 + $0x19] sm:$0xff] %vm1837, %v1831
      %1846 = vst.msk [vmem:[#allocation4 + $0x21] sm:$0xff] %vm1837, %v1832
      %1847 = vst.msk [vmem:[#allocation4 + $0x29] sm:$0xff] %vm1837, %v1833
      %1848 = vst.msk [vmem:[#allocation4 + $0x31] sm:$0xff] %vm1837, %v1834
      %1849 = vst.msk [vmem:[#allocation4 + $0x39] sm:$0xff] %vm1837, %v1835
      %1850 = vst.msk [vmem:[#allocation4 + $0x41] sm:$0xff] %vm1837, %v1836
      %v1851 = vld [vmem:[#allocation4 + $0x9] sm:$0xff]
      %v1852 = vld [vmem:[#allocation4 + $0x11] sm:$0xff]
      %v1853 = vld [vmem:[#allocation4 + $0x19] sm:$0xff]
      %v1854 = vld [vmem:[#allocation4 + $0x21] sm:$0xff]
      %v1855 = vld [vmem:[#allocation4 + $0x29] sm:$0xff]
      %v1856 = vld [vmem:[#allocation4 + $0x31] sm:$0xff]
      %v1857 = vld [vmem:[#allocation4 + $0x39] sm:$0xff]
      %v1858 = vld [vmem:[#allocation4 + $0x41] sm:$0xff]
      %v1859 = vmul.f32 %v1851, 0.5625
      %v1860 = vmul.f32 %v1852, 0.5625
      %v1861 = vmul.f32 %v1853, 0.5625
      %v1862 = vmul.f32 %v1854, 0.5625
      %v1863 = vmul.f32 %v1855, 0.5625
      %v1864 = vmul.f32 %v1856, 0.5625
      %v1865 = vmul.f32 %v1857, 0.5625
      %v1866 = vmul.f32 %v1858, 0.5625
      %v1867 = vadd.f32 %v1859, 0.0
      %v1868 = vadd.f32 %v1860, 0.0
      %v1869 = vadd.f32 %v1861, 0.0
      %v1870 = vadd.f32 %v1862, 0.0
      %v1871 = vadd.f32 %v1863, 0.0
      %v1872 = vadd.f32 %v1864, 0.0
      %v1873 = vadd.f32 %v1865, 0.0
      %v1874 = vadd.f32 %v1866, 0.0
      %v1875 = vld [vmem:[#allocation4 + $0x8] sm:$0xff]
      %v1876 = vld [vmem:[#allocation4 + $0x10] sm:$0xff]
      %v1877 = vld [vmem:[#allocation4 + $0x18] sm:$0xff]
      %v1878 = vld [vmem:[#allocation4 + $0x20] sm:$0xff]
      %v1879 = vld [vmem:[#allocation4 + $0x28] sm:$0xff]
      %v1880 = vld [vmem:[#allocation4 + $0x30] sm:$0xff]
      %v1881 = vld [vmem:[#allocation4 + $0x38] sm:$0xff]
      %v1882 = vld [vmem:[#allocation4 + $0x40] sm:$0xff]
      %v1883 = vsel %vm639, 0.0, %v1875
      %v1884 = vsel %vm640, 0.0, %v1876
      %v1885 = vsel %vm641, 0.0, %v1877
      %v1886 = vsel %vm642, 0.0, %v1878
      %v1887 = vsel %vm643, 0.0, %v1879
      %v1888 = vsel %vm644, 0.0, %v1880
      %v1889 = vsel %vm645, 0.0, %v1881
      %v1890 = vsel %vm646, 0.0, %v1882
      %v1891 = vmul.f32 %v1883, 0.1875
      %v1892 = vmul.f32 %v1884, 0.1875
      %v1893 = vmul.f32 %v1885, 0.1875
      %v1894 = vmul.f32 %v1886, 0.1875
      %v1895 = vmul.f32 %v1887, 0.1875
      %v1896 = vmul.f32 %v1888, 0.1875
      %v1897 = vmul.f32 %v1889, 0.1875
      %v1898 = vmul.f32 %v1890, 0.1875
      %v1899 = vadd.f32 %v1867, %v1891
      %v1900 = vadd.f32 %v1868, %v1892
      %v1901 = vadd.f32 %v1869, %v1893
      %v1902 = vadd.f32 %v1870, %v1894
      %v1903 = vadd.f32 %v1871, %v1895
      %v1904 = vadd.f32 %v1872, %v1896
      %v1905 = vadd.f32 %v1873, %v1897
      %v1906 = vadd.f32 %v1874, %v1898
      %v1907 = vld [vmem:[#allocation4 + $0x1] sm:$0xff]
      %v1908 = vmul.f32 %v1907, 0.1875
      %v1909 = vmul.f32 %v1851, 0.1875
      %v1910 = vmul.f32 %v1852, 0.1875
      %v1911 = vmul.f32 %v1853, 0.1875
      %v1912 = vmul.f32 %v1854, 0.1875
      %v1913 = vmul.f32 %v1855, 0.1875
      %v1914 = vmul.f32 %v1856, 0.1875
      %v1915 = vmul.f32 %v1857, 0.1875
      %v1916 = vadd.f32 %v1899, %v1908
      %v1917 = vadd.f32 %v1900, %v1909
      %v1918 = vadd.f32 %v1901, %v1910
      %v1919 = vadd.f32 %v1902, %v1911
      %v1920 = vadd.f32 %v1903, %v1912
      %v1921 = vadd.f32 %v1904, %v1913
      %v1922 = vadd.f32 %v1905, %v1914
      %v1923 = vadd.f32 %v1906, %v1915
      %v1924 = vld [vmem:[#allocation4] sm:$0xff]
      %v1925 = vsel %vm639, 0.0, %v1924
      %v1926 = vsel %vm640, 0.0, %v1875
      %v1927 = vsel %vm641, 0.0, %v1876
      %v1928 = vsel %vm642, 0.0, %v1877
      %v1929 = vsel %vm643, 0.0, %v1878
      %v1930 = vsel %vm644, 0.0, %v1879
      %v1931 = vsel %vm645, 0.0, %v1880
      %v1932 = vsel %vm646, 0.0, %v1881
      %v1933 = vmul.f32 %v1925, 0.0625
      %v1934 = vmul.f32 %v1926, 0.0625
      %v1935 = vmul.f32 %v1927, 0.0625
      %v1936 = vmul.f32 %v1928, 0.0625
      %v1937 = vmul.f32 %v1929, 0.0625
      %v1938 = vmul.f32 %v1930, 0.0625
      %v1939 = vmul.f32 %v1931, 0.0625
      %v1940 = vmul.f32 %v1932, 0.0625
      %v1941 = vadd.f32 %v1916, %v1933
      %v1942 = vadd.f32 %v1917, %v1934
      %v1943 = vadd.f32 %v1918, %v1935
      %v1944 = vadd.f32 %v1919, %v1936
      %v1945 = vadd.f32 %v1920, %v1937
      %v1946 = vadd.f32 %v1921, %v1938
      %v1947 = vadd.f32 %v1922, %v1939
      %v1948 = vadd.f32 %v1923, %v1940
      %v1949 = vld [vmem:[#allocation4 + $0xa] sm:$0xff]
      %v1950 = vld [vmem:[#allocation4 + $0x12] sm:$0xff]
      %v1951 = vld [vmem:[#allocation4 + $0x1a] sm:$0xff]
      %v1952 = vld [vmem:[#allocation4 + $0x22] sm:$0xff]
      %v1953 = vld [vmem:[#allocation4 + $0x2a] sm:$0xff]
      %v1954 = vld [vmem:[#allocation4 + $0x32] sm:$0xff]
      %v1955 = vld [vmem:[#allocation4 + $0x3a] sm:$0xff]
      %v1956 = vld [vmem:[#allocation4 + $0x42] sm:$0xff]
      %v1957 = vsel %vm795, 0.0, %v1949
      %v1958 = vsel %vm796, 0.0, %v1950
      %v1959 = vsel %vm797, 0.0, %v1951
      %v1960 = vsel %vm798, 0.0, %v1952
      %v1961 = vsel %vm799, 0.0, %v1953
      %v1962 = vsel %vm800, 0.0, %v1954
      %v1963 = vsel %vm801, 0.0, %v1955
      %v1964 = vsel %vm802, 0.0, %v1956
      %v1965 = vmul.f32 %v1957, 0.1875
      %v1966 = vmul.f32 %v1958, 0.1875
      %v1967 = vmul.f32 %v1959, 0.1875
      %v1968 = vmul.f32 %v1960, 0.1875
      %v1969 = vmul.f32 %v1961, 0.1875
      %v1970 = vmul.f32 %v1962, 0.1875
      %v1971 = vmul.f32 %v1963, 0.1875
      %v1972 = vmul.f32 %v1964, 0.1875
      %v1973 = vadd.f32 %v1867, %v1965
      %v1974 = vadd.f32 %v1868, %v1966
      %v1975 = vadd.f32 %v1869, %v1967
      %v1976 = vadd.f32 %v1870, %v1968
      %v1977 = vadd.f32 %v1871, %v1969
      %v1978 = vadd.f32 %v1872, %v1970
      %v1979 = vadd.f32 %v1873, %v1971
      %v1980 = vadd.f32 %v1874, %v1972
      %v1981 = vadd.f32 %v1973, %v1908
      %v1982 = vadd.f32 %v1974, %v1909
      %v1983 = vadd.f32 %v1975, %v1910
      %v1984 = vadd.f32 %v1976, %v1911
      %v1985 = vadd.f32 %v1977, %v1912
      %v1986 = vadd.f32 %v1978, %v1913
      %v1987 = vadd.f32 %v1979, %v1914
      %v1988 = vadd.f32 %v1980, %v1915
      %v1989 = vld [vmem:[#allocation4 + $0x2] sm:$0xff]
      %v1990 = vsel %vm795, 0.0, %v1989
      %v1991 = vsel %vm796, 0.0, %v1949
      %v1992 = vsel %vm797, 0.0, %v1950
      %v1993 = vsel %vm798, 0.0, %v1951
      %v1994 = vsel %vm799, 0.0, %v1952
      %v1995 = vsel %vm800, 0.0, %v1953
      %v1996 = vsel %vm801, 0.0, %v1954
      %v1997 = vsel %vm802, 0.0, %v1955
      %v1998 = vmul.f32 %v1990, 0.0625
      %v1999 = vmul.f32 %v1991, 0.0625
      %v2000 = vmul.f32 %v1992, 0.0625
      %v2001 = vmul.f32 %v1993, 0.0625
      %v2002 = vmul.f32 %v1994, 0.0625
      %v2003 = vmul.f32 %v1995, 0.0625
      %v2004 = vmul.f32 %v1996, 0.0625
      %v2005 = vmul.f32 %v1997, 0.0625
      %v2006 = vadd.f32 %v1981, %v1998
      %v2007 = vadd.f32 %v1982, %v1999
      %v2008 = vadd.f32 %v1983, %v2000
      %v2009 = vadd.f32 %v1984, %v2001
      %v2010 = vadd.f32 %v1985, %v2002
      %v2011 = vadd.f32 %v1986, %v2003
      %v2012 = vadd.f32 %v1987, %v2004
      %v2013 = vadd.f32 %v1988, %v2005
      %v2014 = vld [vmem:[#allocation4 + $0x49] sm:$0xff]
      %v2015 = vmul.f32 %v1858, 0.1875
      %v2016 = vmul.f32 %v2014, 0.1875
      %v2017 = vadd.f32 %v1899, %v1910
      %v2018 = vadd.f32 %v1900, %v1911
      %v2019 = vadd.f32 %v1901, %v1912
      %v2020 = vadd.f32 %v1902, %v1913
      %v2021 = vadd.f32 %v1903, %v1914
      %v2022 = vadd.f32 %v1904, %v1915
      %v2023 = vadd.f32 %v1905, %v2015
      %v2024 = vadd.f32 %v1906, %v2016
      %v2025 = vld [vmem:[#allocation4 + $0x48] sm:$0xff]
      %v2026 = vsel %vm639, 0.0, %v1876
      %v2027 = vsel %vm640, 0.0, %v1877
      %v2028 = vsel %vm641, 0.0, %v1878
      %v2029 = vsel %vm642, 0.0, %v1879
      %v2030 = vsel %vm643, 0.0, %v1880
      %v2031 = vsel %vm644, 0.0, %v1881
      %v2032 = vsel %vm645, 0.0, %v1882
      %v2033 = vsel %vm646, 0.0, %v2025
      %v2034 = vmul.f32 %v2026, 0.0625
      %v2035 = vmul.f32 %v2027, 0.0625
      %v2036 = vmul.f32 %v2028, 0.0625
      %v2037 = vmul.f32 %v2029, 0.0625
      %v2038 = vmul.f32 %v2030, 0.0625
      %v2039 = vmul.f32 %v2031, 0.0625
      %v2040 = vmul.f32 %v2032, 0.0625
      %v2041 = vmul.f32 %v2033, 0.0625
      %v2042 = vadd.f32 %v2017, %v2034
      %v2043 = vadd.f32 %v2018, %v2035
      %v2044 = vadd.f32 %v2019, %v2036
      %v2045 = vadd.f32 %v2020, %v2037
      %v2046 = vadd.f32 %v2021, %v2038
      %v2047 = vadd.f32 %v2022, %v2039
      %v2048 = vadd.f32 %v2023, %v2040
      %v2049 = vadd.f32 %v2024, %v2041
      %v2050 = vadd.f32 %v1973, %v1910
      %v2051 = vadd.f32 %v1974, %v1911
      %v2052 = vadd.f32 %v1975, %v1912
      %v2053 = vadd.f32 %v1976, %v1913
      %v2054 = vadd.f32 %v1977, %v1914
      %v2055 = vadd.f32 %v1978, %v1915
      %v2056 = vadd.f32 %v1979, %v2015
      %v2057 = vadd.f32 %v1980, %v2016
      %v2058 = vld [vmem:[#allocation4 + $0x4a] sm:$0xff]
      %v2059 = vsel %vm795, 0.0, %v1950
      %v2060 = vsel %vm796, 0.0, %v1951
      %v2061 = vsel %vm797, 0.0, %v1952
      %v2062 = vsel %vm798, 0.0, %v1953
      %v2063 = vsel %vm799, 0.0, %v1954
      %v2064 = vsel %vm800, 0.0, %v1955
      %v2065 = vsel %vm801, 0.0, %v1956
      %v2066 = vsel %vm802, 0.0, %v2058
      %v2067 = vmul.f32 %v2059, 0.0625
      %v2068 = vmul.f32 %v2060, 0.0625
      %v2069 = vmul.f32 %v2061, 0.0625
      %v2070 = vmul.f32 %v2062, 0.0625
      %v2071 = vmul.f32 %v2063, 0.0625
      %v2072 = vmul.f32 %v2064, 0.0625
      %v2073 = vmul.f32 %v2065, 0.0625
      %v2074 = vmul.f32 %v2066, 0.0625
      %v2075 = vadd.f32 %v2050, %v2067
      %v2076 = vadd.f32 %v2051, %v2068
      %v2077 = vadd.f32 %v2052, %v2069
      %v2078 = vadd.f32 %v2053, %v2070
      %v2079 = vadd.f32 %v2054, %v2071
      %v2080 = vadd.f32 %v2055, %v2072
      %v2081 = vadd.f32 %v2056, %v2073
      %v2082 = vadd.f32 %v2057, %v2074
      %2083 = vst [vmem:[#allocation5] sm:$0xf] 0
      %vm2084 = vmand %vm819, %vm386
      %v2085 = vld [vmem:[#allocation5 + $0x4] sm:$0x1]
      %v2086 = vsel %vm2084, 0, %v2085
      %2087 = vst [vmem:[#allocation5 + $0x4] sm:$0x1] %v2086
      %vm2088 = vcmask 1043456
      %vm2089 = vmand %vm2088, %vm392
      %v2090 = vld [vmem:[#allocation5 + $0x44] sm:$0xf]
      %v2091 = vsel %vm2089, 0, %v2090
      %2092 = vst [vmem:[#allocation5 + $0x44] sm:$0xf] %v2091
      %2093 = vst [vmem:[#allocation5 + $0x48] sm:$0x1] 0
      %v2094 = vld [vmem:[%s374] sm:$0xf]
      %v2095 = vld [vmem:[%s374 + $0x4] sm:$0xf]
      %v2096 = vld [vmem:[%s374 + $0x8] sm:$0xf]
      %v2097 = vld [vmem:[%s374 + $0xc] sm:$0xf]
      %v2098 = vld [vmem:[%s374 + $0x10] sm:$0xf]
      %v2099 = vld [vmem:[%s374 + $0x14] sm:$0xf]
      %v2100 = vld [vmem:[%s374 + $0x18] sm:$0xf]
      %v2101 = vld [vmem:[%s374 + $0x1c] sm:$0xf]
      %v2102 = vld [vmem:[%s374 + $0x20] sm:$0xf]
      %v2103 = vld [vmem:[%s374 + $0x24] sm:$0xf]
      %v2104 = vld [vmem:[%s374 + $0x28] sm:$0xf]
      %v2105 = vld [vmem:[%s374 + $0x2c] sm:$0xf]
      %v2106 = vld [vmem:[%s374 + $0x30] sm:$0xf]
      %v2107 = vld [vmem:[%s374 + $0x34] sm:$0xf]
      %v2108 = vld [vmem:[%s374 + $0x38] sm:$0xf]
      %v2109 = vld [vmem:[%s374 + $0x3c] sm:$0xf]
      %v2111 = vshrl.u32 %v2094, 16
      %v2113 = vrot.slane %v2111, 7
      %v2114 = vshll.u32 %v2094, 16
      %v2116 = vor.u32 %v2113, %v2114
      %v2117 = vrot.slane %v2113, 4
      %v2119 = vshrl.u32 %v2095, 16
      %v2121 = vrot.slane %v2119, 7
      %v2122 = vshll.u32 %v2095, 16
      %v2124 = vor.u32 %v2121, %v2122
      %v2125 = vsel %vm408, %v2117, %v2124
      %v2126 = vrot.slane %v2121, 4
      %v2128 = vshrl.u32 %v2096, 16
      %v2130 = vrot.slane %v2128, 7
      %v2131 = vshll.u32 %v2096, 16
      %v2133 = vor.u32 %v2130, %v2131
      %v2134 = vsel %vm408, %v2126, %v2133
      %v2135 = vrot.slane %v2130, 4
      %v2137 = vshrl.u32 %v2097, 16
      %v2139 = vrot.slane %v2137, 7
      %v2140 = vshll.u32 %v2097, 16
      %v2142 = vor.u32 %v2139, %v2140
      %v2143 = vsel %vm408, %v2135, %v2142
      %v2144 = vrot.slane %v2139, 4
      %v2146 = vshrl.u32 %v2098, 16
      %v2148 = vrot.slane %v2146, 7
      %v2149 = vshll.u32 %v2098, 16
      %v2151 = vor.u32 %v2148, %v2149
      %v2152 = vsel %vm408, %v2144, %v2151
      %v2153 = vrot.slane %v2148, 4
      %v2155 = vshrl.u32 %v2099, 16
      %v2157 = vrot.slane %v2155, 7
      %v2158 = vshll.u32 %v2099, 16
      %v2160 = vor.u32 %v2157, %v2158
      %v2161 = vsel %vm408, %v2153, %v2160
      %v2162 = vrot.slane %v2157, 4
      %v2164 = vshrl.u32 %v2100, 16
      %v2166 = vrot.slane %v2164, 7
      %v2167 = vshll.u32 %v2100, 16
      %v2169 = vor.u32 %v2166, %v2167
      %v2170 = vsel %vm408, %v2162, %v2169
      %v2171 = vrot.slane %v2166, 4
      %v2173 = vshrl.u32 %v2101, 16
      %v2175 = vrot.slane %v2173, 7
      %v2176 = vshll.u32 %v2101, 16
      %v2178 = vor.u32 %v2175, %v2176
      %v2179 = vsel %vm408, %v2171, %v2178
      %v2180 = vrot.slane %v2175, 4
      %v2182 = vshrl.u32 %v2102, 16
      %v2184 = vrot.slane %v2182, 7
      %v2185 = vshll.u32 %v2102, 16
      %v2187 = vor.u32 %v2184, %v2185
      %v2188 = vsel %vm408, %v2180, %v2187
      %v2189 = vrot.slane %v2184, 4
      %v2191 = vshrl.u32 %v2103, 16
      %v2193 = vrot.slane %v2191, 7
      %v2194 = vshll.u32 %v2103, 16
      %v2196 = vor.u32 %v2193, %v2194
      %v2197 = vsel %vm408, %v2189, %v2196
      %v2198 = vrot.slane %v2193, 4
      %v2200 = vshrl.u32 %v2104, 16
      %v2202 = vrot.slane %v2200, 7
      %v2203 = vshll.u32 %v2104, 16
      %v2205 = vor.u32 %v2202, %v2203
      %v2206 = vsel %vm408, %v2198, %v2205
      %v2207 = vrot.slane %v2202, 4
      %v2209 = vshrl.u32 %v2105, 16
      %v2211 = vrot.slane %v2209, 7
      %v2212 = vshll.u32 %v2105, 16
      %v2214 = vor.u32 %v2211, %v2212
      %v2215 = vsel %vm408, %v2207, %v2214
      %v2216 = vrot.slane %v2211, 4
      %v2218 = vshrl.u32 %v2106, 16
      %v2220 = vrot.slane %v2218, 7
      %v2221 = vshll.u32 %v2106, 16
      %v2223 = vor.u32 %v2220, %v2221
      %v2224 = vsel %vm408, %v2216, %v2223
      %v2225 = vrot.slane %v2220, 4
      %v2227 = vshrl.u32 %v2107, 16
      %v2229 = vrot.slane %v2227, 7
      %v2230 = vshll.u32 %v2107, 16
      %v2232 = vor.u32 %v2229, %v2230
      %v2233 = vsel %vm408, %v2225, %v2232
      %v2234 = vrot.slane %v2229, 4
      %v2236 = vshrl.u32 %v2108, 16
      %v2238 = vrot.slane %v2236, 7
      %v2239 = vshll.u32 %v2108, 16
      %v2241 = vor.u32 %v2238, %v2239
      %v2242 = vsel %vm408, %v2234, %v2241
      %v2243 = vrot.slane %v2238, 4
      %v2245 = vshrl.u32 %v2109, 16
      %v2247 = vrot.slane %v2245, 7
      %v2248 = vshll.u32 %v2109, 16
      %v2250 = vor.u32 %v2247, %v2248
      %v2251 = vsel %vm408, %v2243, %v2250
      %v2252 = vrot.slane %v2247, 4
      %vm2270 = vcmask 257024
      %vm2271 = vmand %vm2270, %vm392
      %v2272 = vld [vmem:[#allocation5 + $0x4] sm:$0xf]
      %v2273 = vsel %vm2271, %v2116, %v2272
      %2274 = vst [vmem:[#allocation5 + $0x4] sm:$0xf] %v2273
      %vm2275 = vcmask 257024
      %2276 = vst.msk [vmem:[#allocation5 + $0x8] sm:$0xf] %vm2275, %v2125
      %2277 = vst.msk [vmem:[#allocation5 + $0xc] sm:$0xf] %vm2275, %v2134
      %2278 = vst.msk [vmem:[#allocation5 + $0x10] sm:$0xf] %vm2275, %v2143
      %2279 = vst.msk [vmem:[#allocation5 + $0x14] sm:$0xf] %vm2275, %v2152
      %2280 = vst.msk [vmem:[#allocation5 + $0x18] sm:$0xf] %vm2275, %v2161
      %2281 = vst.msk [vmem:[#allocation5 + $0x1c] sm:$0xf] %vm2275, %v2170
      %2282 = vst.msk [vmem:[#allocation5 + $0x20] sm:$0xf] %vm2275, %v2179
      %2283 = vst.msk [vmem:[#allocation5 + $0x24] sm:$0xf] %vm2275, %v2188
      %2284 = vst.msk [vmem:[#allocation5 + $0x28] sm:$0xf] %vm2275, %v2197
      %2285 = vst.msk [vmem:[#allocation5 + $0x2c] sm:$0xf] %vm2275, %v2206
      %2286 = vst.msk [vmem:[#allocation5 + $0x30] sm:$0xf] %vm2275, %v2215
      %2287 = vst.msk [vmem:[#allocation5 + $0x34] sm:$0xf] %vm2275, %v2224
      %2288 = vst.msk [vmem:[#allocation5 + $0x38] sm:$0xf] %vm2275, %v2233
      %2289 = vst.msk [vmem:[#allocation5 + $0x3c] sm:$0xf] %vm2275, %v2242
      %2290 = vst.msk [vmem:[#allocation5 + $0x40] sm:$0xf] %vm2275, %v2251
      %vm2291 = vcmask 253952
      %vm2292 = vmand %vm2291, %vm386
      %v2293 = vld [vmem:[#allocation5 + $0x44] sm:$0x1]
      %v2294 = vsel %vm2292, %v2252, %v2293
      %2295 = vst [vmem:[#allocation5 + $0x44] sm:$0x1] %v2294
      %2296 = vrot.lane.b32.xlu0 %v2116, 32
      %v2297 = vpop.permute.xlu0 %2296
      %2298 = vrot.lane.b32.xlu0 %v2125, 32
      %v2299 = vpop.permute.xlu0 %2298
      %2300 = vrot.lane.b32.xlu0 %v2134, 32
      %v2301 = vpop.permute.xlu0 %2300
      %2302 = vrot.lane.b32.xlu0 %v2143, 32
      %v2303 = vpop.permute.xlu0 %2302
      %2304 = vrot.lane.b32.xlu0 %v2152, 32
      %v2305 = vpop.permute.xlu0 %2304
      %2306 = vrot.lane.b32.xlu0 %v2161, 32
      %v2307 = vpop.permute.xlu0 %2306
      %2308 = vrot.lane.b32.xlu0 %v2170, 32
      %v2309 = vpop.permute.xlu0 %2308
      %2310 = vrot.lane.b32.xlu0 %v2179, 32
      %v2311 = vpop.permute.xlu0 %2310
      %2312 = vrot.lane.b32.xlu0 %v2188, 32
      %v2313 = vpop.permute.xlu0 %2312
      %2314 = vrot.lane.b32.xlu0 %v2197, 32
      %v2315 = vpop.permute.xlu0 %2314
      %2316 = vrot.lane.b32.xlu0 %v2206, 32
      %v2317 = vpop.permute.xlu0 %2316
      %2318 = vrot.lane.b32.xlu0 %v2215, 32
      %v2319 = vpop.permute.xlu0 %2318
      %2320 = vrot.lane.b32.xlu0 %v2224, 32
      %v2321 = vpop.permute.xlu0 %2320
      %2322 = vrot.lane.b32.xlu0 %v2233, 32
      %v2323 = vpop.permute.xlu0 %2322
      %2324 = vrot.lane.b32.xlu0 %v2242, 32
      %v2325 = vpop.permute.xlu0 %2324
      %2326 = vrot.lane.b32.xlu0 %v2251, 32
      %v2327 = vpop.permute.xlu0 %2326
      %2328 = vrot.lane.b32.xlu0 %v2252, 32
      %v2329 = vpop.permute.xlu0 %2328
      %vm2347 = vcmask 781824
      %vm2348 = vmand %vm2347, %vm392
      %v2349 = vld [vmem:[#allocation5 + $0x4] sm:$0xf]
      %v2350 = vsel %vm2348, %v2297, %v2349
      %2351 = vst [vmem:[#allocation5 + $0x4] sm:$0xf] %v2350
      %vm2352 = vcmask 781824
      %2353 = vst.msk [vmem:[#allocation5 + $0x8] sm:$0xf] %vm2352, %v2299
      %2354 = vst.msk [vmem:[#allocation5 + $0xc] sm:$0xf] %vm2352, %v2301
      %2355 = vst.msk [vmem:[#allocation5 + $0x10] sm:$0xf] %vm2352, %v2303
      %2356 = vst.msk [vmem:[#allocation5 + $0x14] sm:$0xf] %vm2352, %v2305
      %2357 = vst.msk [vmem:[#allocation5 + $0x18] sm:$0xf] %vm2352, %v2307
      %2358 = vst.msk [vmem:[#allocation5 + $0x1c] sm:$0xf] %vm2352, %v2309
      %2359 = vst.msk [vmem:[#allocation5 + $0x20] sm:$0xf] %vm2352, %v2311
      %2360 = vst.msk [vmem:[#allocation5 + $0x24] sm:$0xf] %vm2352, %v2313
      %2361 = vst.msk [vmem:[#allocation5 + $0x28] sm:$0xf] %vm2352, %v2315
      %2362 = vst.msk [vmem:[#allocation5 + $0x2c] sm:$0xf] %vm2352, %v2317
      %2363 = vst.msk [vmem:[#allocation5 + $0x30] sm:$0xf] %vm2352, %v2319
      %2364 = vst.msk [vmem:[#allocation5 + $0x34] sm:$0xf] %vm2352, %v2321
      %2365 = vst.msk [vmem:[#allocation5 + $0x38] sm:$0xf] %vm2352, %v2323
      %2366 = vst.msk [vmem:[#allocation5 + $0x3c] sm:$0xf] %vm2352, %v2325
      %2367 = vst.msk [vmem:[#allocation5 + $0x40] sm:$0xf] %vm2352, %v2327
      %vm2368 = vcmask 778752
      %vm2369 = vmand %vm2368, %vm386
      %v2370 = vld [vmem:[#allocation5 + $0x44] sm:$0x1]
      %v2371 = vsel %vm2369, %v2329, %v2370
      %2372 = vst [vmem:[#allocation5 + $0x44] sm:$0x1] %v2371
      %v2373 = vpack.c.bf16 %v2042, %v1941
      %v2374 = vpack.c.bf16 %v2043, %v1942
      %v2375 = vpack.c.bf16 %v2044, %v1943
      %v2376 = vpack.c.bf16 %v2045, %v1944
      %v2377 = vpack.c.bf16 %v2046, %v1945
      %v2378 = vpack.c.bf16 %v2047, %v1946
      %v2379 = vpack.c.bf16 %v2048, %v1947
      %v2380 = vpack.c.bf16 %v2049, %v1948
      %v2389 = vunpack.c.l.b16 %v2373
      %v2390 = vunpack.c.h.b16 %v2373
      %v2391 = vunpack.c.l.b16 %v2374
      %v2392 = vunpack.c.h.b16 %v2374
      %v2393 = vunpack.c.l.b16 %v2375
      %v2394 = vunpack.c.h.b16 %v2375
      %v2395 = vunpack.c.l.b16 %v2376
      %v2396 = vunpack.c.h.b16 %v2376
      %v2397 = vunpack.c.l.b16 %v2377
      %v2398 = vunpack.c.h.b16 %v2377
      %v2399 = vunpack.c.l.b16 %v2378
      %v2400 = vunpack.c.h.b16 %v2378
      %v2401 = vunpack.c.l.b16 %v2379
      %v2402 = vunpack.c.h.b16 %v2379
      %v2403 = vunpack.c.l.b16 %v2380
      %v2404 = vunpack.c.h.b16 %v2380
      %v2405 = vpack.c.b16 %v2389, %v2389
      %v2406 = vpack.c.b16 %v2390, %v2390
      %v2407 = vpack.c.b16 %v2391, %v2391
      %v2408 = vpack.c.b16 %v2392, %v2392
      %v2409 = vpack.c.b16 %v2393, %v2393
      %v2410 = vpack.c.b16 %v2394, %v2394
      %v2411 = vpack.c.b16 %v2395, %v2395
      %v2412 = vpack.c.b16 %v2396, %v2396
      %v2413 = vpack.c.b16 %v2397, %v2397
      %v2414 = vpack.c.b16 %v2398, %v2398
      %v2415 = vpack.c.b16 %v2399, %v2399
      %v2416 = vpack.c.b16 %v2400, %v2400
      %v2417 = vpack.c.b16 %v2401, %v2401
      %v2418 = vpack.c.b16 %v2402, %v2402
      %v2419 = vpack.c.b16 %v2403, %v2403
      %v2420 = vpack.c.b16 %v2404, %v2404
      %v2422 = vshrl.u32 %v2405, 16
      %v2424 = vrot.slane %v2422, 7
      %v2425 = vshll.u32 %v2405, 16
      %v2427 = vor.u32 %v2424, %v2425
      %v2428 = vrot.slane %v2424, 4
      %v2430 = vshrl.u32 %v2406, 16
      %v2432 = vrot.slane %v2430, 7
      %v2433 = vshll.u32 %v2406, 16
      %v2435 = vor.u32 %v2432, %v2433
      %v2436 = vsel %vm408, %v2428, %v2435
      %v2437 = vrot.slane %v2432, 4
      %v2439 = vshrl.u32 %v2407, 16
      %v2441 = vrot.slane %v2439, 7
      %v2442 = vshll.u32 %v2407, 16
      %v2444 = vor.u32 %v2441, %v2442
      %v2445 = vsel %vm408, %v2437, %v2444
      %v2446 = vrot.slane %v2441, 4
      %v2448 = vshrl.u32 %v2408, 16
      %v2450 = vrot.slane %v2448, 7
      %v2451 = vshll.u32 %v2408, 16
      %v2453 = vor.u32 %v2450, %v2451
      %v2454 = vsel %vm408, %v2446, %v2453
      %v2455 = vrot.slane %v2450, 4
      %v2457 = vshrl.u32 %v2409, 16
      %v2459 = vrot.slane %v2457, 7
      %v2460 = vshll.u32 %v2409, 16
      %v2462 = vor.u32 %v2459, %v2460
      %v2463 = vsel %vm408, %v2455, %v2462
      %v2464 = vrot.slane %v2459, 4
      %v2466 = vshrl.u32 %v2410, 16
      %v2468 = vrot.slane %v2466, 7
      %v2469 = vshll.u32 %v2410, 16
      %v2471 = vor.u32 %v2468, %v2469
      %v2472 = vsel %vm408, %v2464, %v2471
      %v2473 = vrot.slane %v2468, 4
      %v2475 = vshrl.u32 %v2411, 16
      %v2477 = vrot.slane %v2475, 7
      %v2478 = vshll.u32 %v2411, 16
      %v2480 = vor.u32 %v2477, %v2478
      %v2481 = vsel %vm408, %v2473, %v2480
      %v2482 = vrot.slane %v2477, 4
      %v2484 = vshrl.u32 %v2412, 16
      %v2486 = vrot.slane %v2484, 7
      %v2487 = vshll.u32 %v2412, 16
      %v2489 = vor.u32 %v2486, %v2487
      %v2490 = vsel %vm408, %v2482, %v2489
      %v2491 = vrot.slane %v2486, 4
      %v2493 = vshrl.u32 %v2413, 16
      %v2495 = vrot.slane %v2493, 7
      %v2496 = vshll.u32 %v2413, 16
      %v2498 = vor.u32 %v2495, %v2496
      %v2499 = vsel %vm408, %v2491, %v2498
      %v2500 = vrot.slane %v2495, 4
      %v2502 = vshrl.u32 %v2414, 16
      %v2504 = vrot.slane %v2502, 7
      %v2505 = vshll.u32 %v2414, 16
      %v2507 = vor.u32 %v2504, %v2505
      %v2508 = vsel %vm408, %v2500, %v2507
      %v2509 = vrot.slane %v2504, 4
      %v2511 = vshrl.u32 %v2415, 16
      %v2513 = vrot.slane %v2511, 7
      %v2514 = vshll.u32 %v2415, 16
      %v2516 = vor.u32 %v2513, %v2514
      %v2517 = vsel %vm408, %v2509, %v2516
      %v2518 = vrot.slane %v2513, 4
      %v2520 = vshrl.u32 %v2416, 16
      %v2522 = vrot.slane %v2520, 7
      %v2523 = vshll.u32 %v2416, 16
      %v2525 = vor.u32 %v2522, %v2523
      %v2526 = vsel %vm408, %v2518, %v2525
      %v2527 = vrot.slane %v2522, 4
      %v2529 = vshrl.u32 %v2417, 16
      %v2531 = vrot.slane %v2529, 7
      %v2532 = vshll.u32 %v2417, 16
      %v2534 = vor.u32 %v2531, %v2532
      %v2535 = vsel %vm408, %v2527, %v2534
      %v2536 = vrot.slane %v2531, 4
      %v2538 = vshrl.u32 %v2418, 16
      %v2540 = vrot.slane %v2538, 7
      %v2541 = vshll.u32 %v2418, 16
      %v2543 = vor.u32 %v2540, %v2541
      %v2544 = vsel %vm408, %v2536, %v2543
      %v2545 = vrot.slane %v2540, 4
      %v2547 = vshrl.u32 %v2419, 16
      %v2549 = vrot.slane %v2547, 7
      %v2550 = vshll.u32 %v2419, 16
      %v2552 = vor.u32 %v2549, %v2550
      %v2553 = vsel %vm408, %v2545, %v2552
      %v2554 = vrot.slane %v2549, 4
      %v2556 = vshrl.u32 %v2420, 16
      %v2558 = vrot.slane %v2556, 7
      %v2559 = vshll.u32 %v2420, 16
      %v2561 = vor.u32 %v2558, %v2559
      %v2562 = vsel %vm408, %v2554, %v2561
      %v2563 = vrot.slane %v2558, 4
      %2564 = vrot.lane.b32.xlu0 %v2427, 32
      %v2565 = vpop.permute.xlu0 %2564
      %2566 = vrot.lane.b32.xlu0 %v2436, 32
      %v2567 = vpop.permute.xlu0 %2566
      %2568 = vrot.lane.b32.xlu0 %v2445, 32
      %v2569 = vpop.permute.xlu0 %2568
      %2570 = vrot.lane.b32.xlu0 %v2454, 32
      %v2571 = vpop.permute.xlu0 %2570
      %2572 = vrot.lane.b32.xlu0 %v2463, 32
      %v2573 = vpop.permute.xlu0 %2572
      %2574 = vrot.lane.b32.xlu0 %v2472, 32
      %v2575 = vpop.permute.xlu0 %2574
      %2576 = vrot.lane.b32.xlu0 %v2481, 32
      %v2577 = vpop.permute.xlu0 %2576
      %2578 = vrot.lane.b32.xlu0 %v2490, 32
      %v2579 = vpop.permute.xlu0 %2578
      %2580 = vrot.lane.b32.xlu0 %v2499, 32
      %v2581 = vpop.permute.xlu0 %2580
      %2582 = vrot.lane.b32.xlu0 %v2508, 32
      %v2583 = vpop.permute.xlu0 %2582
      %2584 = vrot.lane.b32.xlu0 %v2517, 32
      %v2585 = vpop.permute.xlu0 %2584
      %2586 = vrot.lane.b32.xlu0 %v2526, 32
      %v2587 = vpop.permute.xlu0 %2586
      %2588 = vrot.lane.b32.xlu0 %v2535, 32
      %v2589 = vpop.permute.xlu0 %2588
      %2590 = vrot.lane.b32.xlu0 %v2544, 32
      %v2591 = vpop.permute.xlu0 %2590
      %2592 = vrot.lane.b32.xlu0 %v2553, 32
      %v2593 = vpop.permute.xlu0 %2592
      %2594 = vrot.lane.b32.xlu0 %v2562, 32
      %v2595 = vpop.permute.xlu0 %2594
      %2596 = vrot.lane.b32.xlu0 %v2563, 32
      %v2597 = vpop.permute.xlu0 %2596
      %vm2615 = vcmask 519424
      %vm2616 = vmand %vm2615, %vm392
      %v2617 = vld [vmem:[#allocation5 + $0x4] sm:$0xf]
      %v2618 = vsel %vm2616, %v2565, %v2617
      %2619 = vst [vmem:[#allocation5 + $0x4] sm:$0xf] %v2618
      %vm2620 = vcmask 519424
      %2621 = vst.msk [vmem:[#allocation5 + $0x8] sm:$0xf] %vm2620, %v2567
      %2622 = vst.msk [vmem:[#allocation5 + $0xc] sm:$0xf] %vm2620, %v2569
      %2623 = vst.msk [vmem:[#allocation5 + $0x10] sm:$0xf] %vm2620, %v2571
      %2624 = vst.msk [vmem:[#allocation5 + $0x14] sm:$0xf] %vm2620, %v2573
      %2625 = vst.msk [vmem:[#allocation5 + $0x18] sm:$0xf] %vm2620, %v2575
      %2626 = vst.msk [vmem:[#allocation5 + $0x1c] sm:$0xf] %vm2620, %v2577
      %2627 = vst.msk [vmem:[#allocation5 + $0x20] sm:$0xf] %vm2620, %v2579
      %2628 = vst.msk [vmem:[#allocation5 + $0x24] sm:$0xf] %vm2620, %v2581
      %2629 = vst.msk [vmem:[#allocation5 + $0x28] sm:$0xf] %vm2620, %v2583
      %2630 = vst.msk [vmem:[#allocation5 + $0x2c] sm:$0xf] %vm2620, %v2585
      %2631 = vst.msk [vmem:[#allocation5 + $0x30] sm:$0xf] %vm2620, %v2587
      %2632 = vst.msk [vmem:[#allocation5 + $0x34] sm:$0xf] %vm2620, %v2589
      %2633 = vst.msk [vmem:[#allocation5 + $0x38] sm:$0xf] %vm2620, %v2591
      %2634 = vst.msk [vmem:[#allocation5 + $0x3c] sm:$0xf] %vm2620, %v2593
      %2635 = vst.msk [vmem:[#allocation5 + $0x40] sm:$0xf] %vm2620, %v2595
      %vm2636 = vcmask 516352
      %vm2637 = vmand %vm2636, %vm386
      %v2638 = vld [vmem:[#allocation5 + $0x44] sm:$0x1]
      %v2639 = vsel %vm2637, %v2597, %v2638
      %2640 = vst [vmem:[#allocation5 + $0x44] sm:$0x1] %v2639
      %v2641 = vpack.c.bf16 %v2075, %v2006
      %v2642 = vpack.c.bf16 %v2076, %v2007
      %v2643 = vpack.c.bf16 %v2077, %v2008
      %v2644 = vpack.c.bf16 %v2078, %v2009
      %v2645 = vpack.c.bf16 %v2079, %v2010
      %v2646 = vpack.c.bf16 %v2080, %v2011
      %v2647 = vpack.c.bf16 %v2081, %v2012
      %v2648 = vpack.c.bf16 %v2082, %v2013
      %v2657 = vunpack.c.l.b16 %v2641
      %v2658 = vunpack.c.h.b16 %v2641
      %v2659 = vunpack.c.l.b16 %v2642
      %v2660 = vunpack.c.h.b16 %v2642
      %v2661 = vunpack.c.l.b16 %v2643
      %v2662 = vunpack.c.h.b16 %v2643
      %v2663 = vunpack.c.l.b16 %v2644
      %v2664 = vunpack.c.h.b16 %v2644
      %v2665 = vunpack.c.l.b16 %v2645
      %v2666 = vunpack.c.h.b16 %v2645
      %v2667 = vunpack.c.l.b16 %v2646
      %v2668 = vunpack.c.h.b16 %v2646
      %v2669 = vunpack.c.l.b16 %v2647
      %v2670 = vunpack.c.h.b16 %v2647
      %v2671 = vunpack.c.l.b16 %v2648
      %v2672 = vunpack.c.h.b16 %v2648
      %v2673 = vpack.c.b16 %v2657, %v2657
      %v2674 = vpack.c.b16 %v2658, %v2658
      %v2675 = vpack.c.b16 %v2659, %v2659
      %v2676 = vpack.c.b16 %v2660, %v2660
      %v2677 = vpack.c.b16 %v2661, %v2661
      %v2678 = vpack.c.b16 %v2662, %v2662
      %v2679 = vpack.c.b16 %v2663, %v2663
      %v2680 = vpack.c.b16 %v2664, %v2664
      %v2681 = vpack.c.b16 %v2665, %v2665
      %v2682 = vpack.c.b16 %v2666, %v2666
      %v2683 = vpack.c.b16 %v2667, %v2667
      %v2684 = vpack.c.b16 %v2668, %v2668
      %v2685 = vpack.c.b16 %v2669, %v2669
      %v2686 = vpack.c.b16 %v2670, %v2670
      %v2687 = vpack.c.b16 %v2671, %v2671
      %v2688 = vpack.c.b16 %v2672, %v2672
      %v2690 = vshrl.u32 %v2673, 16
      %v2692 = vrot.slane %v2690, 7
      %v2693 = vshll.u32 %v2673, 16
      %v2695 = vor.u32 %v2692, %v2693
      %v2696 = vrot.slane %v2692, 4
      %v2698 = vshrl.u32 %v2674, 16
      %v2700 = vrot.slane %v2698, 7
      %v2701 = vshll.u32 %v2674, 16
      %v2703 = vor.u32 %v2700, %v2701
      %v2704 = vsel %vm408, %v2696, %v2703
      %v2705 = vrot.slane %v2700, 4
      %v2707 = vshrl.u32 %v2675, 16
      %v2709 = vrot.slane %v2707, 7
      %v2710 = vshll.u32 %v2675, 16
      %v2712 = vor.u32 %v2709, %v2710
      %v2713 = vsel %vm408, %v2705, %v2712
      %v2714 = vrot.slane %v2709, 4
      %v2716 = vshrl.u32 %v2676, 16
      %v2718 = vrot.slane %v2716, 7
      %v2719 = vshll.u32 %v2676, 16
      %v2721 = vor.u32 %v2718, %v2719
      %v2722 = vsel %vm408, %v2714, %v2721
      %v2723 = vrot.slane %v2718, 4
      %v2725 = vshrl.u32 %v2677, 16
      %v2727 = vrot.slane %v2725, 7
      %v2728 = vshll.u32 %v2677, 16
      %v2730 = vor.u32 %v2727, %v2728
      %v2731 = vsel %vm408, %v2723, %v2730
      %v2732 = vrot.slane %v2727, 4
      %v2734 = vshrl.u32 %v2678, 16
      %v2736 = vrot.slane %v2734, 7
      %v2737 = vshll.u32 %v2678, 16
      %v2739 = vor.u32 %v2736, %v2737
      %v2740 = vsel %vm408, %v2732, %v2739
      %v2741 = vrot.slane %v2736, 4
      %v2743 = vshrl.u32 %v2679, 16
      %v2745 = vrot.slane %v2743, 7
      %v2746 = vshll.u32 %v2679, 16
      %v2748 = vor.u32 %v2745, %v2746
      %v2749 = vsel %vm408, %v2741, %v2748
      %v2750 = vrot.slane %v2745, 4
      %v2752 = vshrl.u32 %v2680, 16
      %v2754 = vrot.slane %v2752, 7
      %v2755 = vshll.u32 %v2680, 16
      %v2757 = vor.u32 %v2754, %v2755
      %v2758 = vsel %vm408, %v2750, %v2757
      %v2759 = vrot.slane %v2754, 4
      %v2761 = vshrl.u32 %v2681, 16
      %v2763 = vrot.slane %v2761, 7
      %v2764 = vshll.u32 %v2681, 16
      %v2766 = vor.u32 %v2763, %v2764
      %v2767 = vsel %vm408, %v2759, %v2766
      %v2768 = vrot.slane %v2763, 4
      %v2770 = vshrl.u32 %v2682, 16
      %v2772 = vrot.slane %v2770, 7
      %v2773 = vshll.u32 %v2682, 16
      %v2775 = vor.u32 %v2772, %v2773
      %v2776 = vsel %vm408, %v2768, %v2775
      %v2777 = vrot.slane %v2772, 4
      %v2779 = vshrl.u32 %v2683, 16
      %v2781 = vrot.slane %v2779, 7
      %v2782 = vshll.u32 %v2683, 16
      %v2784 = vor.u32 %v2781, %v2782
      %v2785 = vsel %vm408, %v2777, %v2784
      %v2786 = vrot.slane %v2781, 4
      %v2788 = vshrl.u32 %v2684, 16
      %v2790 = vrot.slane %v2788, 7
      %v2791 = vshll.u32 %v2684, 16
      %v2793 = vor.u32 %v2790, %v2791
      %v2794 = vsel %vm408, %v2786, %v2793
      %v2795 = vrot.slane %v2790, 4
      %v2797 = vshrl.u32 %v2685, 16
      %v2799 = vrot.slane %v2797, 7
      %v2800 = vshll.u32 %v2685, 16
      %v2802 = vor.u32 %v2799, %v2800
      %v2803 = vsel %vm408, %v2795, %v2802
      %v2804 = vrot.slane %v2799, 4
      %v2806 = vshrl.u32 %v2686, 16
      %v2808 = vrot.slane %v2806, 7
      %v2809 = vshll.u32 %v2686, 16
      %v2811 = vor.u32 %v2808, %v2809
      %v2812 = vsel %vm408, %v2804, %v2811
      %v2813 = vrot.slane %v2808, 4
      %v2815 = vshrl.u32 %v2687, 16
      %v2817 = vrot.slane %v2815, 7
      %v2818 = vshll.u32 %v2687, 16
      %v2820 = vor.u32 %v2817, %v2818
      %v2821 = vsel %vm408, %v2813, %v2820
      %v2822 = vrot.slane %v2817, 4
      %v2824 = vshrl.u32 %v2688, 16
      %v2826 = vrot.slane %v2824, 7
      %v2827 = vshll.u32 %v2688, 16
      %v2829 = vor.u32 %v2826, %v2827
      %v2830 = vsel %vm408, %v2822, %v2829
      %v2831 = vrot.slane %v2826, 4
      %2832 = vrot.lane.b32.xlu0 %v2695, 96
      %v2833 = vpop.permute.xlu0 %2832
      %2834 = vrot.lane.b32.xlu0 %v2704, 96
      %v2835 = vpop.permute.xlu0 %2834
      %2836 = vrot.lane.b32.xlu0 %v2713, 96
      %v2837 = vpop.permute.xlu0 %2836
      %2838 = vrot.lane.b32.xlu0 %v2722, 96
      %v2839 = vpop.permute.xlu0 %2838
      %2840 = vrot.lane.b32.xlu0 %v2731, 96
      %v2841 = vpop.permute.xlu0 %2840
      %2842 = vrot.lane.b32.xlu0 %v2740, 96
      %v2843 = vpop.permute.xlu0 %2842
      %2844 = vrot.lane.b32.xlu0 %v2749, 96
      %v2845 = vpop.permute.xlu0 %2844
      %2846 = vrot.lane.b32.xlu0 %v2758, 96
      %v2847 = vpop.permute.xlu0 %2846
      %2848 = vrot.lane.b32.xlu0 %v2767, 96
      %v2849 = vpop.permute.xlu0 %2848
      %2850 = vrot.lane.b32.xlu0 %v2776, 96
      %v2851 = vpop.permute.xlu0 %2850
      %2852 = vrot.lane.b32.xlu0 %v2785, 96
      %v2853 = vpop.permute.xlu0 %2852
      %2854 = vrot.lane.b32.xlu0 %v2794, 96
      %v2855 = vpop.permute.xlu0 %2854
      %2856 = vrot.lane.b32.xlu0 %v2803, 96
      %v2857 = vpop.permute.xlu0 %2856
      %2858 = vrot.lane.b32.xlu0 %v2812, 96
      %v2859 = vpop.permute.xlu0 %2858
      %2860 = vrot.lane.b32.xlu0 %v2821, 96
      %v2861 = vpop.permute.xlu0 %2860
      %2862 = vrot.lane.b32.xlu0 %v2830, 96
      %v2863 = vpop.permute.xlu0 %2862
      %2864 = vrot.lane.b32.xlu0 %v2831, 96
      %v2865 = vpop.permute.xlu0 %2864
      %vm2883 = vcmask 1044224
      %vm2884 = vmand %vm2883, %vm392
      %v2885 = vld [vmem:[#allocation5 + $0x4] sm:$0xf]
      %v2886 = vsel %vm2884, %v2833, %v2885
      %2887 = vst [vmem:[#allocation5 + $0x4] sm:$0xf] %v2886
      %vm2888 = vcmask 1044224
      %2889 = vst.msk [vmem:[#allocation5 + $0x8] sm:$0xf] %vm2888, %v2835
      %2890 = vst.msk [vmem:[#allocation5 + $0xc] sm:$0xf] %vm2888, %v2837
      %2891 = vst.msk [vmem:[#allocation5 + $0x10] sm:$0xf] %vm2888, %v2839
      %2892 = vst.msk [vmem:[#allocation5 + $0x14] sm:$0xf] %vm2888, %v2841
      %2893 = vst.msk [vmem:[#allocation5 + $0x18] sm:$0xf] %vm2888, %v2843
      %2894 = vst.msk [vmem:[#allocation5 + $0x1c] sm:$0xf] %vm2888, %v2845
      %2895 = vst.msk [vmem:[#allocation5 + $0x20] sm:$0xf] %vm2888, %v2847
      %2896 = vst.msk [vmem:[#allocation5 + $0x24] sm:$0xf] %vm2888, %v2849
      %2897 = vst.msk [vmem:[#allocation5 + $0x28] sm:$0xf] %vm2888, %v2851
      %2898 = vst.msk [vmem:[#allocation5 + $0x2c] sm:$0xf] %vm2888, %v2853
      %2899 = vst.msk [vmem:[#allocation5 + $0x30] sm:$0xf] %vm2888, %v2855
      %2900 = vst.msk [vmem:[#allocation5 + $0x34] sm:$0xf] %vm2888, %v2857
      %2901 = vst.msk [vmem:[#allocation5 + $0x38] sm:$0xf] %vm2888, %v2859
      %2902 = vst.msk [vmem:[#allocation5 + $0x3c] sm:$0xf] %vm2888, %v2861
      %2903 = vst.msk [vmem:[#allocation5 + $0x40] sm:$0xf] %vm2888, %v2863
      %vm2904 = vcmask 1041152
      %vm2905 = vmand %vm2904, %vm386
      %v2906 = vld [vmem:[#allocation5 + $0x44] sm:$0x1]
      %v2907 = vsel %vm2905, %v2865, %v2906
      %2908 = vst [vmem:[#allocation5 + $0x44] sm:$0x1] %v2907
      %v2909 = vadd.s32 %v503, 64
      %v2910 = vadd.s32 %v503, 72
      %v2911 = vadd.s32 %v503, 80
      %v2912 = vadd.s32 %v503, 88
      %v2913 = vadd.s32 %v503, 96
      %v2914 = vadd.s32 %v503, 104
      %v2915 = vadd.s32 %v503, 112
      %v2916 = vadd.s32 %v503, 120
      %vm2917 = vcmp.lt.s32.totalorder %v2909, 0
      %v2918 = vsub.s32 0, %v2909
      %v2919 = vsel %vm2917, %v2918, %v2909
      %v2920 = vshrl.u32 %v2919, 3
      %v2921 = vand.u32 %v2919, 7
      %v2922 = vsub.s32 0, %v2921
      %v2923 = vsel %vm2917, %v2922, %v2921
      %vm2924 = vcmp.lt.s32.totalorder %v2910, 0
      %v2925 = vsub.s32 0, %v2910
      %v2926 = vsel %vm2924, %v2925, %v2910
      %v2927 = vshrl.u32 %v2926, 3
      %v2928 = vand.u32 %v2926, 7
      %v2929 = vsub.s32 0, %v2928
      %v2930 = vsel %vm2924, %v2929, %v2928
      %vm2931 = vcmp.lt.s32.totalorder %v2911, 0
      %v2932 = vsub.s32 0, %v2911
      %v2933 = vsel %vm2931, %v2932, %v2911
      %v2934 = vshrl.u32 %v2933, 3
      %v2935 = vand.u32 %v2933, 7
      %v2936 = vsub.s32 0, %v2935
      %v2937 = vsel %vm2931, %v2936, %v2935
      %vm2938 = vcmp.lt.s32.totalorder %v2912, 0
      %v2939 = vsub.s32 0, %v2912
      %v2940 = vsel %vm2938, %v2939, %v2912
      %v2941 = vshrl.u32 %v2940, 3
      %v2942 = vand.u32 %v2940, 7
      %v2943 = vsub.s32 0, %v2942
      %v2944 = vsel %vm2938, %v2943, %v2942
      %vm2945 = vcmp.lt.s32.totalorder %v2913, 0
      %v2946 = vsub.s32 0, %v2913
      %v2947 = vsel %vm2945, %v2946, %v2913
      %v2948 = vshrl.u32 %v2947, 3
      %v2949 = vand.u32 %v2947, 7
      %v2950 = vsub.s32 0, %v2949
      %v2951 = vsel %vm2945, %v2950, %v2949
      %vm2952 = vcmp.lt.s32.totalorder %v2914, 0
      %v2953 = vsub.s32 0, %v2914
      %v2954 = vsel %vm2952, %v2953, %v2914
      %v2955 = vshrl.u32 %v2954, 3
      %v2956 = vand.u32 %v2954, 7
      %v2957 = vsub.s32 0, %v2956
      %v2958 = vsel %vm2952, %v2957, %v2956
      %vm2959 = vcmp.lt.s32.totalorder %v2915, 0
      %v2960 = vsub.s32 0, %v2915
      %v2961 = vsel %vm2959, %v2960, %v2915
      %v2962 = vshrl.u32 %v2961, 3
      %v2963 = vand.u32 %v2961, 7
      %v2964 = vsub.s32 0, %v2963
      %v2965 = vsel %vm2959, %v2964, %v2963
      %vm2966 = vcmp.lt.s32.totalorder %v2916, 0
      %v2967 = vsub.s32 0, %v2916
      %v2968 = vsel %vm2966, %v2967, %v2916
      %v2969 = vshrl.u32 %v2968, 3
      %v2970 = vand.u32 %v2968, 7
      %v2971 = vsub.s32 0, %v2970
      %v2972 = vsel %vm2966, %v2971, %v2970
      %vm2973 = vcmp.ne.s32.totalorder %v2923, 0
      %vm2974 = vcmp.ne.s32.totalorder %v2930, 0
      %vm2975 = vcmp.ne.s32.totalorder %v2937, 0
      %vm2976 = vcmp.ne.s32.totalorder %v2944, 0
      %vm2977 = vcmp.ne.s32.totalorder %v2951, 0
      %vm2978 = vcmp.ne.s32.totalorder %v2958, 0
      %vm2979 = vcmp.ne.s32.totalorder %v2965, 0
      %vm2980 = vcmp.ne.s32.totalorder %v2972, 0
      %vm2981 = vcmp.lt.s32.totalorder %v2923, 0
      %vm2982 = vcmp.lt.s32.totalorder %v2930, 0
      %vm2983 = vcmp.lt.s32.totalorder %v2937, 0
      %vm2984 = vcmp.lt.s32.totalorder %v2944, 0
      %vm2985 = vcmp.lt.s32.totalorder %v2951, 0
      %vm2986 = vcmp.lt.s32.totalorder %v2958, 0
      %vm2987 = vcmp.lt.s32.totalorder %v2965, 0
      %vm2988 = vcmp.lt.s32.totalorder %v2972, 0
      %vm2989 = vmand %vm2981, %vm2973
      %vm2990 = vmand %vm2982, %vm2974
      %vm2991 = vmand %vm2983, %vm2975
      %vm2992 = vmand %vm2984, %vm2976
      %vm2993 = vmand %vm2985, %vm2977
      %vm2994 = vmand %vm2986, %vm2978
      %vm2995 = vmand %vm2987, %vm2979
      %vm2996 = vmand %vm2988, %vm2980
      %v2997 = vadd.s32 %v2923, 8
      %v2998 = vadd.s32 %v2930, 8
      %v2999 = vadd.s32 %v2937, 8
      %v3000 = vadd.s32 %v2944, 8
      %v3001 = vadd.s32 %v2951, 8
      %v3002 = vadd.s32 %v2958, 8
      %v3003 = vadd.s32 %v2965, 8
      %v3004 = vadd.s32 %v2972, 8
      %v3005 = vsel %vm2989, %v2997, %v2923
      %v3006 = vsel %vm2990, %v2998, %v2930
      %v3007 = vsel %vm2991, %v2999, %v2937
      %v3008 = vsel %vm2992, %v3000, %v2944
      %v3009 = vsel %vm2993, %v3001, %v2951
      %v3010 = vsel %vm2994, %v3002, %v2958
      %v3011 = vsel %vm2995, %v3003, %v2965
      %v3012 = vsel %vm2996, %v3004, %v2972
      %vm3013 = vcmp.eq.s32.totalorder %v3005, 0
      %vm3014 = vcmp.eq.s32.totalorder %v3006, 0
      %vm3015 = vcmp.eq.s32.totalorder %v3007, 0
      %vm3016 = vcmp.eq.s32.totalorder %v3008, 0
      %vm3017 = vcmp.eq.s32.totalorder %v3009, 0
      %vm3018 = vcmp.eq.s32.totalorder %v3010, 0
      %vm3019 = vcmp.eq.s32.totalorder %v3011, 0
      %vm3020 = vcmp.eq.s32.totalorder %v3012, 0
      %vm3021 = vcmp.eq.s32.totalorder %v3005, 7
      %vm3022 = vcmp.eq.s32.totalorder %v3006, 7
      %vm3023 = vcmp.eq.s32.totalorder %v3007, 7
      %vm3024 = vcmp.eq.s32.totalorder %v3008, 7
      %vm3025 = vcmp.eq.s32.totalorder %v3009, 7
      %vm3026 = vcmp.eq.s32.totalorder %v3010, 7
      %vm3027 = vcmp.eq.s32.totalorder %v3011, 7
      %vm3028 = vcmp.eq.s32.totalorder %v3012, 7
      %v3029 = vld [vmem:[#allocation5] sm:$0xf]
      %v3030 = vld [vmem:[#allocation5 + $0x4] sm:$0xf]
      %v3031 = vld [vmem:[#allocation5 + $0x8] sm:$0xf]
      %v3032 = vld [vmem:[#allocation5 + $0xc] sm:$0xf]
      %v3033 = vld [vmem:[#allocation5 + $0x10] sm:$0xf]
      %v3034 = vld [vmem:[#allocation5 + $0x14] sm:$0xf]
      %v3035 = vld [vmem:[#allocation5 + $0x18] sm:$0xf]
      %v3036 = vld [vmem:[#allocation5 + $0x1c] sm:$0xf]
      %v3037 = vld [vmem:[#allocation5 + $0x20] sm:$0xf]
      %v3038 = vld [vmem:[#allocation5 + $0x24] sm:$0xf]
      %v3039 = vld [vmem:[#allocation5 + $0x28] sm:$0xf]
      %v3040 = vld [vmem:[#allocation5 + $0x2c] sm:$0xf]
      %v3041 = vld [vmem:[#allocation5 + $0x30] sm:$0xf]
      %v3042 = vld [vmem:[#allocation5 + $0x34] sm:$0xf]
      %v3043 = vld [vmem:[#allocation5 + $0x38] sm:$0xf]
      %v3044 = vld [vmem:[#allocation5 + $0x3c] sm:$0xf]
      %v3045 = vld [vmem:[#allocation5 + $0x40] sm:$0x1]
      %v3046 = vld [vmem:[%s3] sm:$0xf]
      %v3047 = vld [vmem:[%s3 + $0x4] sm:$0xf]
      %v3048 = vld [vmem:[%s3 + $0x8] sm:$0xf]
      %v3049 = vld [vmem:[%s3 + $0xc] sm:$0xf]
      %v3050 = vld [vmem:[%s3 + $0x10] sm:$0xf]
      %v3051 = vld [vmem:[%s3 + $0x14] sm:$0xf]
      %v3052 = vld [vmem:[%s3 + $0x18] sm:$0xf]
      %v3053 = vld [vmem:[%s3 + $0x1c] sm:$0xf]
      %v3054 = vld [vmem:[%s3 + $0x20] sm:$0xf]
      %v3055 = vld [vmem:[%s3 + $0x24] sm:$0xf]
      %v3056 = vld [vmem:[%s3 + $0x28] sm:$0xf]
      %v3057 = vld [vmem:[%s3 + $0x2c] sm:$0xf]
      %v3058 = vld [vmem:[%s3 + $0x30] sm:$0xf]
      %v3059 = vld [vmem:[%s3 + $0x34] sm:$0xf]
      %v3060 = vld [vmem:[%s3 + $0x38] sm:$0xf]
      %v3061 = vld [vmem:[%s3 + $0x3c] sm:$0xf]
      %v3079 = vunpack.c.l.b16 %v3029
      %v3080 = vunpack.c.l.b16 %v3030
      %v3081 = vunpack.c.l.b16 %v3031
      %v3082 = vunpack.c.l.b16 %v3032
      %v3083 = vunpack.c.l.b16 %v3033
      %v3084 = vunpack.c.l.b16 %v3034
      %v3085 = vunpack.c.l.b16 %v3035
      %v3086 = vunpack.c.l.b16 %v3036
      %v3087 = vunpack.c.l.b16 %v3037
      %v3088 = vunpack.c.l.b16 %v3038
      %v3089 = vunpack.c.l.b16 %v3039
      %v3090 = vunpack.c.l.b16 %v3040
      %v3091 = vunpack.c.l.b16 %v3041
      %v3092 = vunpack.c.l.b16 %v3042
      %v3093 = vunpack.c.l.b16 %v3043
      %v3094 = vunpack.c.l.b16 %v3044
      %v3095 = vunpack.c.l.b16 %v3045
      %v3096 = vpack.c.b16 %v3080, %v3079
      %v3097 = vpack.c.b16 %v3082, %v3081
      %v3098 = vpack.c.b16 %v3084, %v3083
      %v3099 = vpack.c.b16 %v3086, %v3085
      %v3100 = vpack.c.b16 %v3088, %v3087
      %v3101 = vpack.c.b16 %v3090, %v3089
      %v3102 = vpack.c.b16 %v3092, %v3091
      %v3103 = vpack.c.b16 %v3094, %v3093
      %v3104 = vpack.c.b16 %v3095, %v3095
      %v3106 = vshrl.u32 %v3096, 16
      %v3108 = vshll.u32 %v3096, 16
      %v3110 = vrot.slane %v3108, 1
      %v3111 = vor.u32 %v3106, %v3110
      %v3113 = vshll.u32 %v3097, 16
      %v3115 = vrot.slane %v3113, 1
      %v3116 = vsel %vm724, %v3111, %v3115
      %v3117 = vshrl.u32 %v3097, 16
      %v3119 = vor.u32 %v3117, %v3115
      %v3121 = vshll.u32 %v3098, 16
      %v3123 = vrot.slane %v3121, 1
      %v3124 = vsel %vm724, %v3119, %v3123
      %v3125 = vshrl.u32 %v3098, 16
      %v3127 = vor.u32 %v3125, %v3123
      %v3129 = vshll.u32 %v3099, 16
      %v3131 = vrot.slane %v3129, 1
      %v3132 = vsel %vm724, %v3127, %v3131
      %v3133 = vshrl.u32 %v3099, 16
      %v3135 = vor.u32 %v3133, %v3131
      %v3137 = vshll.u32 %v3100, 16
      %v3139 = vrot.slane %v3137, 1
      %v3140 = vsel %vm724, %v3135, %v3139
      %v3141 = vshrl.u32 %v3100, 16
      %v3143 = vor.u32 %v3141, %v3139
      %v3145 = vshll.u32 %v3101, 16
      %v3147 = vrot.slane %v3145, 1
      %v3148 = vsel %vm724, %v3143, %v3147
      %v3149 = vshrl.u32 %v3101, 16
      %v3151 = vor.u32 %v3149, %v3147
      %v3153 = vshll.u32 %v3102, 16
      %v3155 = vrot.slane %v3153, 1
      %v3156 = vsel %vm724, %v3151, %v3155
      %v3157 = vshrl.u32 %v3102, 16
      %v3159 = vor.u32 %v3157, %v3155
      %v3161 = vshll.u32 %v3103, 16
      %v3163 = vrot.slane %v3161, 1
      %v3164 = vsel %vm724, %v3159, %v3163
      %v3165 = vshrl.u32 %v3103, 16
      %v3167 = vor.u32 %v3165, %v3163
      %v3169 = vshll.u32 %v3104, 16
      %v3171 = vrot.slane %v3169, 1
      %v3172 = vsel %vm724, %v3167, %v3171
      %v3197 = vunpack.c.l.b16 %v3046
      %v3198 = vunpack.c.l.b16 %v3047
      %v3199 = vunpack.c.l.b16 %v3048
      %v3200 = vunpack.c.l.b16 %v3049
      %v3201 = vunpack.c.l.b16 %v3050
      %v3202 = vunpack.c.l.b16 %v3051
      %v3203 = vunpack.c.l.b16 %v3052
      %v3204 = vunpack.c.l.b16 %v3053
      %v3205 = vunpack.c.l.b16 %v3054
      %v3206 = vunpack.c.l.b16 %v3055
      %v3207 = vunpack.c.l.b16 %v3056
      %v3208 = vunpack.c.l.b16 %v3057
      %v3209 = vunpack.c.l.b16 %v3058
      %v3210 = vunpack.c.l.b16 %v3059
      %v3211 = vunpack.c.l.b16 %v3060
      %v3212 = vunpack.c.l.b16 %v3061
      %v3213 = vpack.c.b16 %v3198, %v3197
      %v3214 = vpack.c.b16 %v3200, %v3199
      %v3215 = vpack.c.b16 %v3202, %v3201
      %v3216 = vpack.c.b16 %v3204, %v3203
      %v3217 = vpack.c.b16 %v3206, %v3205
      %v3218 = vpack.c.b16 %v3208, %v3207
      %v3219 = vpack.c.b16 %v3210, %v3209
      %v3220 = vpack.c.b16 %v3212, %v3211
      %3229 = vmatprep.subr.bf16.mxu0 0
      %3230 = vmatpush1.bf16.msra.mxu0 %v3213
      %3231 = vmatprep.subr.bf16.mxu0 0
      %3232 = vmatpush1.bf16.msra.mxu0 %v3214
      %3233 = vmatprep.subr.bf16.mxu0 0
      %3234 = vmatpush1.bf16.msra.mxu0 %v3215
      %3235 = vmatprep.subr.bf16.mxu0 0
      %3236 = vmatpush1.bf16.msra.mxu0 %v3216
      %3237 = vmatprep.subr.bf16.mxu0 0
      %3238 = vmatpush1.bf16.msra.mxu0 %v3217
      %3239 = vmatprep.subr.bf16.mxu0 0
      %3240 = vmatpush1.bf16.msra.mxu0 %v3218
      %3241 = vmatprep.subr.bf16.mxu0 0
      %3242 = vmatpush1.bf16.msra.mxu0 %v3219
      %3243 = vmatprep.subr.bf16.mxu0 0
      %3244 = vmatpush1.bf16.msra.mxu0 %v3220
      %3245 = vmatprep.subr.bf16.mxu0 0
      %3246 = vmatpush1.bf16.msra.mxu0 0
      %3247 = vmatprep.subr.bf16.mxu0 0
      %3248 = vmatpush1.bf16.msra.mxu0 0
      %3249 = vmatprep.subr.bf16.mxu0 0
      %3250 = vmatpush1.bf16.msra.mxu0 0
      %3251 = vmatprep.subr.bf16.mxu0 0
      %3252 = vmatpush1.bf16.msra.mxu0 0
      %3253 = vmatprep.subr.bf16.mxu0 0
      %3254 = vmatpush1.bf16.msra.mxu0 0
      %3255 = vmatprep.subr.bf16.mxu0 0
      %3256 = vmatpush1.bf16.msra.mxu0 0
      %3257 = vmatprep.subr.bf16.mxu0 0
      %3258 = vmatpush1.bf16.msra.mxu0 0
      %3259 = vmatprep.subr.bf16.mxu0 0
      %3260 = vmatpush1.bf16.msra.mxu0 0
      %3261 = vmatprep.mubr.bf16.mxu0 0
      %3262 = vmatmul.mubr.bf16.gmra.mrb[0].mxu0 %v3116
      %v3263 = vpop.f32.mrb[0].mxu0
      %v3264 = vadd.f32 0.0, %v3263
      %v3265 = vpop.f32.mrb[0].mxu0
      %v3266 = vpop.f32.mrb[0].mxu0
      %v3267 = vadd.f32 0.0, %v3266
      %v3268 = vpop.f32.mrb[0].mxu0
      %3269 = vmatprep.mubr.bf16.mxu0 0
      %3270 = vmatmul.mubr.bf16.gmra.mrb[0].mxu0 %v3124
      %v3271 = vpop.f32.mrb[0].mxu0
      %v3272 = vadd.f32 0.0, %v3271
      %v3273 = vpop.f32.mrb[0].mxu0
      %v3274 = vpop.f32.mrb[0].mxu0
      %v3275 = vadd.f32 0.0, %v3274
      %v3276 = vpop.f32.mrb[0].mxu0
      %3277 = vmatprep.mubr.bf16.mxu0 0
      %3278 = vmatmul.mubr.bf16.gmra.mrb[0].mxu0 %v3132
      %v3279 = vpop.f32.mrb[0].mxu0
      %v3280 = vadd.f32 0.0, %v3279
      %v3281 = vpop.f32.mrb[0].mxu0
      %v3282 = vpop.f32.mrb[0].mxu0
      %v3283 = vadd.f32 0.0, %v3282
      %v3284 = vpop.f32.mrb[0].mxu0
      %3285 = vmatprep.mubr.bf16.mxu0 0
      %3286 = vmatmul.mubr.bf16.gmra.mrb[0].mxu0 %v3140
      %v3287 = vpop.f32.mrb[0].mxu0
      %v3288 = vadd.f32 0.0, %v3287
      %v3289 = vpop.f32.mrb[0].mxu0
      %v3290 = vpop.f32.mrb[0].mxu0
      %v3291 = vadd.f32 0.0, %v3290
      %v3292 = vpop.f32.mrb[0].mxu0
      %3293 = vmatprep.mubr.bf16.mxu0 0
      %3294 = vmatmul.mubr.bf16.gmra.mrb[0].mxu0 %v3148
      %v3295 = vpop.f32.mrb[0].mxu0
      %v3296 = vadd.f32 0.0, %v3295
      %v3297 = vpop.f32.mrb[0].mxu0
      %v3298 = vpop.f32.mrb[0].mxu0
      %v3299 = vadd.f32 0.0, %v3298
      %v3300 = vpop.f32.mrb[0].mxu0
      %3301 = vmatprep.mubr.bf16.mxu0 0
      %3302 = vmatmul.mubr.bf16.gmra.mrb[0].mxu0 %v3156
      %v3303 = vpop.f32.mrb[0].mxu0
      %v3304 = vadd.f32 0.0, %v3303
      %v3305 = vpop.f32.mrb[0].mxu0
      %v3306 = vpop.f32.mrb[0].mxu0
      %v3307 = vadd.f32 0.0, %v3306
      %v3308 = vpop.f32.mrb[0].mxu0
      %3309 = vmatprep.mubr.bf16.mxu0 0
      %3310 = vmatmul.mubr.bf16.gmra.mrb[0].mxu0 %v3164
      %v3311 = vpop.f32.mrb[0].mxu0
      %v3312 = vadd.f32 0.0, %v3311
      %v3313 = vpop.f32.mrb[0].mxu0
      %v3314 = vpop.f32.mrb[0].mxu0
      %v3315 = vadd.f32 0.0, %v3314
      %v3316 = vpop.f32.mrb[0].mxu0
      %3317 = vmatprep.mubr.bf16.mxu0 0
      %3318 = vmatmul.mubr.bf16.gmra.mrb[0].mxu0 %v3172
      %v3319 = vpop.f32.mrb[0].mxu0
      %v3320 = vadd.f32 0.0, %v3319
      %v3321 = vpop.f32.mrb[0].mxu0
      %v3322 = vpop.f32.mrb[0].mxu0
      %v3323 = vadd.f32 0.0, %v3322
      %v3324 = vpop.f32.mrb[0].mxu0
      %3325 = vdwg.mxu0
      %v3326 = vadd.f32 %v3264, 0.0
      %v3327 = vadd.f32 %v3267, 0.0
      %v3328 = vadd.f32 %v3272, 0.0
      %v3329 = vadd.f32 %v3275, 0.0
      %v3330 = vadd.f32 %v3280, 0.0
      %v3331 = vadd.f32 %v3283, 0.0
      %v3332 = vadd.f32 %v3288, 0.0
      %v3333 = vadd.f32 %v3291, 0.0
      %v3334 = vadd.f32 %v3296, 0.0
      %v3335 = vadd.f32 %v3299, 0.0
      %v3336 = vadd.f32 %v3304, 0.0
      %v3337 = vadd.f32 %v3307, 0.0
      %v3338 = vadd.f32 %v3312, 0.0
      %v3339 = vadd.f32 %v3315, 0.0
      %v3340 = vadd.f32 %v3320, 0.0
      %v3341 = vadd.f32 %v3323, 0.0
      %v3342 = vld [vmem:[#allocation5] sm:$0xf]
      %v3343 = vld [vmem:[#allocation5 + $0x4] sm:$0xf]
      %v3344 = vld [vmem:[#allocation5 + $0x8] sm:$0xf]
      %v3345 = vld [vmem:[#allocation5 + $0xc] sm:$0xf]
      %v3346 = vld [vmem:[#allocation5 + $0x10] sm:$0xf]
      %v3347 = vld [vmem:[#allocation5 + $0x14] sm:$0xf]
      %v3348 = vld [vmem:[#allocation5 + $0x18] sm:$0xf]
      %v3349 = vld [vmem:[#allocation5 + $0x1c] sm:$0xf]
      %v3350 = vld [vmem:[#allocation5 + $0x20] sm:$0xf]
      %v3351 = vld [vmem:[#allocation5 + $0x24] sm:$0xf]
      %v3352 = vld [vmem:[#allocation5 + $0x28] sm:$0xf]
      %v3353 = vld [vmem:[#allocation5 + $0x2c] sm:$0xf]
      %v3354 = vld [vmem:[#allocation5 + $0x30] sm:$0xf]
      %v3355 = vld [vmem:[#allocation5 + $0x34] sm:$0xf]
      %v3356 = vld [vmem:[#allocation5 + $0x38] sm:$0xf]
      %v3357 = vld [vmem:[#allocation5 + $0x3c] sm:$0xf]
      %v3358 = vsel %vm3013, 1, 0
      %v3359 = vsel %vm3014, 1, 0
      %v3360 = vsel %vm3015, 1, 0
      %v3361 = vsel %vm3016, 1, 0
      %v3362 = vsel %vm3017, 1, 0
      %v3363 = vsel %vm3018, 1, 0
      %v3364 = vsel %vm3019, 1, 0
      %v3365 = vsel %vm3020, 1, 0
      %vm3366 = vcmp.eq.s32.totalorder %v3358, 1
      %vm3367 = vcmp.eq.s32.totalorder %v3359, 1
      %vm3368 = vcmp.eq.s32.totalorder %v3360, 1
      %vm3369 = vcmp.eq.s32.totalorder %v3361, 1
      %vm3370 = vcmp.eq.s32.totalorder %v3362, 1
      %vm3371 = vcmp.eq.s32.totalorder %v3363, 1
      %vm3372 = vcmp.eq.s32.totalorder %v3364, 1
      %vm3373 = vcmp.eq.s32.totalorder %v3365, 1
      %vm3374 = vmpackc.low %vm3366, %vm3366
      %vm3375 = vmpackc.low %vm3367, %vm3367
      %vm3376 = vmpackc.low %vm3368, %vm3368
      %vm3377 = vmpackc.low %vm3369, %vm3369
      %vm3378 = vmpackc.low %vm3370, %vm3370
      %vm3379 = vmpackc.low %vm3371, %vm3371
      %vm3380 = vmpackc.low %vm3372, %vm3372
      %vm3381 = vmpackc.low %vm3373, %vm3373
      %v3382 = vsel %vm647, 0, %v3342
      %v3383 = vsel %vm648, 0, %v3343
      %v3384 = vsel %vm649, 0, %v3344
      %v3385 = vsel %vm650, 0, %v3345
      %v3386 = vsel %vm651, 0, %v3346
      %v3387 = vsel %vm652, 0, %v3347
      %v3388 = vsel %vm653, 0, %v3348
      %v3389 = vsel %vm654, 0, %v3349
      %v3390 = vsel %vm3374, 0, %v3350
      %v3391 = vsel %vm3375, 0, %v3351
      %v3392 = vsel %vm3376, 0, %v3352
      %v3393 = vsel %vm3377, 0, %v3353
      %v3394 = vsel %vm3378, 0, %v3354
      %v3395 = vsel %vm3379, 0, %v3355
      %v3396 = vsel %vm3380, 0, %v3356
      %v3397 = vsel %vm3381, 0, %v3357
      %v3398 = vld [vmem:[%s4] sm:$0xf]
      %v3399 = vld [vmem:[%s4 + $0x4] sm:$0xf]
      %v3400 = vld [vmem:[%s4 + $0x8] sm:$0xf]
      %v3401 = vld [vmem:[%s4 + $0xc] sm:$0xf]
      %v3402 = vld [vmem:[%s4 + $0x10] sm:$0xf]
      %v3403 = vld [vmem:[%s4 + $0x14] sm:$0xf]
      %v3404 = vld [vmem:[%s4 + $0x18] sm:$0xf]
      %v3405 = vld [vmem:[%s4 + $0x1c] sm:$0xf]
      %v3422 = vunpack.c.l.b16 %v3382
      %v3423 = vunpack.c.l.b16 %v3383
      %v3424 = vunpack.c.l.b16 %v3384
      %v3425 = vunpack.c.l.b16 %v3385
      %v3426 = vunpack.c.l.b16 %v3386
      %v3427 = vunpack.c.l.b16 %v3387
      %v3428 = vunpack.c.l.b16 %v3388
      %v3429 = vunpack.c.l.b16 %v3389
      %v3430 = vunpack.c.l.b16 %v3390
      %v3431 = vunpack.c.l.b16 %v3391
      %v3432 = vunpack.c.l.b16 %v3392
      %v3433 = vunpack.c.l.b16 %v3393
      %v3434 = vunpack.c.l.b16 %v3394
      %v3435 = vunpack.c.l.b16 %v3395
      %v3436 = vunpack.c.l.b16 %v3396
      %v3437 = vunpack.c.l.b16 %v3397
      %v3438 = vpack.c.b16 %v3423, %v3422
      %v3439 = vpack.c.b16 %v3425, %v3424
      %v3440 = vpack.c.b16 %v3427, %v3426
      %v3441 = vpack.c.b16 %v3429, %v3428
      %v3442 = vpack.c.b16 %v3431, %v3430
      %v3443 = vpack.c.b16 %v3433, %v3432
      %v3444 = vpack.c.b16 %v3435, %v3434
      %v3445 = vpack.c.b16 %v3437, %v3436
      %3446 = vrot.lane.b32.xlu0 %v3438, 64
      %v3447 = vpop.permute.xlu0 %3446
      %3448 = vrot.lane.b32.xlu0 %v3439, 64
      %v3449 = vpop.permute.xlu0 %3448
      %3450 = vrot.lane.b32.xlu0 %v3440, 64
      %v3451 = vpop.permute.xlu0 %3450
      %3452 = vrot.lane.b32.xlu0 %v3441, 64
      %v3453 = vpop.permute.xlu0 %3452
      %3454 = vrot.lane.b32.xlu0 %v3442, 64
      %v3455 = vpop.permute.xlu0 %3454
      %3456 = vrot.lane.b32.xlu0 %v3443, 64
      %v3457 = vpop.permute.xlu0 %3456
      %3458 = vrot.lane.b32.xlu0 %v3444, 64
      %v3459 = vpop.permute.xlu0 %3458
      %3460 = vrot.lane.b32.xlu0 %v3445, 64
      %v3461 = vpop.permute.xlu0 %3460
      %v3470 = vunpack.c.l.b16 %v3398
      %v3471 = vunpack.c.l.b16 %v3399
      %v3472 = vunpack.c.l.b16 %v3400
      %v3473 = vunpack.c.l.b16 %v3401
      %v3474 = vunpack.c.l.b16 %v3402
      %v3475 = vunpack.c.l.b16 %v3403
      %v3476 = vunpack.c.l.b16 %v3404
      %v3477 = vunpack.c.l.b16 %v3405
      %v3478 = vpack.c.b16 %v3471, %v3470
      %v3479 = vpack.c.b16 %v3473, %v3472
      %v3480 = vpack.c.b16 %v3475, %v3474
      %v3481 = vpack.c.b16 %v3477, %v3476
      %v3487 = vsel %vm687, %v3447, 0
      %v3490 = vsel %vm687, %v3449, 0
      %v3493 = vsel %vm687, %v3451, 0
      %v3496 = vsel %vm687, %v3453, 0
      %v3499 = vsel %vm687, %v3455, 0
      %v3502 = vsel %vm687, %v3457, 0
      %v3505 = vsel %vm687, %v3459, 0
      %v3508 = vsel %vm687, %v3461, 0
      %3510 = vmatprep.subr.bf16.mxu0 0
      %3511 = vmatpush1.bf16.msra.mxu0 %v3478
      %3512 = vmatprep.subr.bf16.mxu0 0
      %3513 = vmatpush1.bf16.msra.mxu0 %v3479
      %3514 = vmatprep.subr.bf16.mxu0 0
      %3515 = vmatpush1.bf16.msra.mxu0 %v3480
      %3516 = vmatprep.subr.bf16.mxu0 0
      %3517 = vmatpush1.bf16.msra.mxu0 %v3481
      %3518 = vmatprep.subr.bf16.mxu0 0
      %3519 = vmatpush1.bf16.msra.mxu0 0
      %3520 = vmatprep.subr.bf16.mxu0 0
      %3521 = vmatpush1.bf16.msra.mxu0 0
      %3522 = vmatprep.subr.bf16.mxu0 0
      %3523 = vmatpush1.bf16.msra.mxu0 0
      %3524 = vmatprep.subr.bf16.mxu0 0
      %3525 = vmatpush1.bf16.msra.mxu0 0
      %3526 = vmatprep.subr.bf16.mxu0 0
      %3527 = vmatpush1.bf16.msra.mxu0 0
      %3528 = vmatprep.subr.bf16.mxu0 0
      %3529 = vmatpush1.bf16.msra.mxu0 0
      %3530 = vmatprep.subr.bf16.mxu0 0
      %3531 = vmatpush1.bf16.msra.mxu0 0
      %3532 = vmatprep.subr.bf16.mxu0 0
      %3533 = vmatpush1.bf16.msra.mxu0 0
      %3534 = vmatprep.subr.bf16.mxu0 0
      %3535 = vmatpush1.bf16.msra.mxu0 0
      %3536 = vmatprep.subr.bf16.mxu0 0
      %3537 = vmatpush1.bf16.msra.mxu0 0
      %3538 = vmatprep.subr.bf16.mxu0 0
      %3539 = vmatpush1.bf16.msra.mxu0 0
      %3540 = vmatprep.subr.bf16.mxu0 0
      %3541 = vmatpush1.bf16.msra.mxu0 0
      %3542 = vmatprep.mubr.bf16.mxu0 0
      %3543 = vmatmul.mubr.bf16.gmra.mrb[0].mxu0 %v3487
      %v3544 = vpop.f32.mrb[0].mxu0
      %v3545 = vadd.f32 0.0, %v3544
      %v3546 = vpop.f32.mrb[0].mxu0
      %v3547 = vpop.f32.mrb[0].mxu0
      %v3548 = vadd.f32 0.0, %v3547
      %v3549 = vpop.f32.mrb[0].mxu0
      %3550 = vmatprep.mubr.bf16.mxu0 0
      %3551 = vmatmul.mubr.bf16.gmra.mrb[0].mxu0 %v3490
      %v3552 = vpop.f32.mrb[0].mxu0
      %v3553 = vadd.f32 0.0, %v3552
      %v3554 = vpop.f32.mrb[0].mxu0
      %v3555 = vpop.f32.mrb[0].mxu0
      %v3556 = vadd.f32 0.0, %v3555
      %v3557 = vpop.f32.mrb[0].mxu0
      %3558 = vmatprep.mubr.bf16.mxu0 0
      %3559 = vmatmul.mubr.bf16.gmra.mrb[0].mxu0 %v3493
      %v3560 = vpop.f32.mrb[0].mxu0
      %v3561 = vadd.f32 0.0, %v3560
      %v3562 = vpop.f32.mrb[0].mxu0
      %v3563 = vpop.f32.mrb[0].mxu0
      %v3564 = vadd.f32 0.0, %v3563
      %v3565 = vpop.f32.mrb[0].mxu0
      %3566 = vmatprep.mubr.bf16.mxu0 0
      %3567 = vmatmul.mubr.bf16.gmra.mrb[0].mxu0 %v3496
      %v3568 = vpop.f32.mrb[0].mxu0
      %v3569 = vadd.f32 0.0, %v3568
      %v3570 = vpop.f32.mrb[0].mxu0
      %v3571 = vpop.f32.mrb[0].mxu0
      %v3572 = vadd.f32 0.0, %v3571
      %v3573 = vpop.f32.mrb[0].mxu0
      %3574 = vmatprep.mubr.bf16.mxu0 0
      %3575 = vmatmul.mubr.bf16.gmra.mrb[0].mxu0 %v3499
      %v3576 = vpop.f32.mrb[0].mxu0
      %v3577 = vadd.f32 0.0, %v3576
      %v3578 = vpop.f32.mrb[0].mxu0
      %v3579 = vpop.f32.mrb[0].mxu0
      %v3580 = vadd.f32 0.0, %v3579
      %v3581 = vpop.f32.mrb[0].mxu0
      %3582 = vmatprep.mubr.bf16.mxu0 0
      %3583 = vmatmul.mubr.bf16.gmra.mrb[0].mxu0 %v3502
      %v3584 = vpop.f32.mrb[0].mxu0
      %v3585 = vadd.f32 0.0, %v3584
      %v3586 = vpop.f32.mrb[0].mxu0
      %v3587 = vpop.f32.mrb[0].mxu0
      %v3588 = vadd.f32 0.0, %v3587
      %v3589 = vpop.f32.mrb[0].mxu0
      %3590 = vmatprep.mubr.bf16.mxu0 0
      %3591 = vmatmul.mubr.bf16.gmra.mrb[0].mxu0 %v3505
      %v3592 = vpop.f32.mrb[0].mxu0
      %v3593 = vadd.f32 0.0, %v3592
      %v3594 = vpop.f32.mrb[0].mxu0
      %v3595 = vpop.f32.mrb[0].mxu0
      %v3596 = vadd.f32 0.0, %v3595
      %v3597 = vpop.f32.mrb[0].mxu0
      %3598 = vmatprep.mubr.bf16.mxu0 0
      %3599 = vmatmul.mubr.bf16.gmra.mrb[0].mxu0 %v3508
      %v3600 = vpop.f32.mrb[0].mxu0
      %v3601 = vadd.f32 0.0, %v3600
      %v3602 = vpop.f32.mrb[0].mxu0
      %v3603 = vpop.f32.mrb[0].mxu0
      %v3604 = vadd.f32 0.0, %v3603
      %v3605 = vpop.f32.mrb[0].mxu0
      %3606 = vdwg.mxu0
      %v3607 = vadd.f32 %v3326, %v3545
      %v3608 = vadd.f32 %v3327, %v3548
      %v3609 = vadd.f32 %v3328, %v3553
      %v3610 = vadd.f32 %v3329, %v3556
      %v3611 = vadd.f32 %v3330, %v3561
      %v3612 = vadd.f32 %v3331, %v3564
      %v3613 = vadd.f32 %v3332, %v3569
      %v3614 = vadd.f32 %v3333, %v3572
      %v3615 = vadd.f32 %v3334, %v3577
      %v3616 = vadd.f32 %v3335, %v3580
      %v3617 = vadd.f32 %v3336, %v3585
      %v3618 = vadd.f32 %v3337, %v3588
      %v3619 = vadd.f32 %v3338, %v3593
      %v3620 = vadd.f32 %v3339, %v3596
      %v3621 = vadd.f32 %v3340, %v3601
      %v3622 = vadd.f32 %v3341, %v3604
      %v3623 = vld [vmem:[#allocation5] sm:$0xe]
      %v3624 = vsel %vm3021, 1, 0
      %v3625 = vsel %vm3022, 1, 0
      %v3626 = vsel %vm3023, 1, 0
      %v3627 = vsel %vm3024, 1, 0
      %v3628 = vsel %vm3025, 1, 0
      %v3629 = vsel %vm3026, 1, 0
      %v3630 = vsel %vm3027, 1, 0
      %v3631 = vsel %vm3028, 1, 0
      %vm3632 = vcmp.eq.s32.totalorder %v3624, 1
      %vm3633 = vcmp.eq.s32.totalorder %v3625, 1
      %vm3634 = vcmp.eq.s32.totalorder %v3626, 1
      %vm3635 = vcmp.eq.s32.totalorder %v3627, 1
      %vm3636 = vcmp.eq.s32.totalorder %v3628, 1
      %vm3637 = vcmp.eq.s32.totalorder %v3629, 1
      %vm3638 = vcmp.eq.s32.totalorder %v3630, 1
      %vm3639 = vcmp.eq.s32.totalorder %v3631, 1
      %vm3640 = vmpackc.low %vm3632, %vm3632
      %vm3641 = vmpackc.low %vm3633, %vm3633
      %vm3642 = vmpackc.low %vm3634, %vm3634
      %vm3643 = vmpackc.low %vm3635, %vm3635
      %vm3644 = vmpackc.low %vm3636, %vm3636
      %vm3645 = vmpackc.low %vm3637, %vm3637
      %vm3646 = vmpackc.low %vm3638, %vm3638
      %vm3647 = vmpackc.low %vm3639, %vm3639
      %v3648 = vsel %vm3640, 65537, 0
      %v3649 = vsel %vm3641, 65537, 0
      %v3650 = vsel %vm3642, 65537, 0
      %v3651 = vsel %vm3643, 65537, 0
      %v3652 = vsel %vm3644, 65537, 0
      %v3653 = vsel %vm3645, 65537, 0
      %v3654 = vsel %vm3646, 65537, 0
      %v3655 = vsel %vm3647, 65537, 0
      %v3656 = vrot.slane %v3648, 7
      %v3657 = vsel %vm821, %v844, %v3656
      %v3658 = vrot.slane %v3656, 4
      %v3659 = vrot.slane %v3649, 7
      %v3660 = vsel %vm821, %v3658, %v3659
      %v3661 = vrot.slane %v3659, 4
      %v3662 = vrot.slane %v3650, 7
      %v3663 = vsel %vm821, %v3661, %v3662
      %v3664 = vrot.slane %v3662, 4
      %v3665 = vrot.slane %v3651, 7
      %v3666 = vsel %vm821, %v3664, %v3665
      %v3667 = vrot.slane %v3665, 4
      %v3668 = vrot.slane %v3652, 7
      %v3669 = vsel %vm821, %v3667, %v3668
      %v3670 = vrot.slane %v3668, 4
      %v3671 = vrot.slane %v3653, 7
      %v3672 = vsel %vm821, %v3670, %v3671
      %v3673 = vrot.slane %v3671, 4
      %v3674 = vrot.slane %v3654, 7
      %v3675 = vsel %vm821, %v3673, %v3674
      %v3676 = vrot.slane %v3674, 4
      %v3677 = vrot.slane %v3655, 7
      %v3678 = vsel %vm821, %v3676, %v3677
      %v3679 = vrot.slane %v3677, 4
      %vm3680 = vcmp.ne.s16.totalorder %v3657, 0
      %vm3681 = vcmp.ne.s16.totalorder %v3660, 0
      %vm3682 = vcmp.ne.s16.totalorder %v3663, 0
      %vm3683 = vcmp.ne.s16.totalorder %v3666, 0
      %vm3684 = vcmp.ne.s16.totalorder %v3669, 0
      %vm3685 = vcmp.ne.s16.totalorder %v3672, 0
      %vm3686 = vcmp.ne.s16.totalorder %v3675, 0
      %vm3687 = vcmp.ne.s16.totalorder %v3678, 0
      %vm3688 = vcmp.ne.s16.totalorder %v3679, 0
      %v3689 = vsel %vm845, 0, %v3623
      %v3690 = vsel %vm846, 0, %v3030
      %v3691 = vsel %vm847, 0, %v3031
      %v3692 = vsel %vm848, 0, %v3032
      %v3693 = vsel %vm849, 0, %v3033
      %v3694 = vsel %vm850, 0, %v3034
      %v3695 = vsel %vm851, 0, %v3035
      %v3696 = vsel %vm852, 0, %v3036
      %v3697 = vsel %vm3680, 0, %v3037
      %v3698 = vsel %vm3681, 0, %v3038
      %v3699 = vsel %vm3682, 0, %v3039
      %v3700 = vsel %vm3683, 0, %v3040
      %v3701 = vsel %vm3684, 0, %v3041
      %v3702 = vsel %vm3685, 0, %v3042
      %v3703 = vsel %vm3686, 0, %v3043
      %v3704 = vsel %vm3687, 0, %v3044
      %v3705 = vsel %vm3688, 0, %v3045
      %v3706 = vld [vmem:[%s5] sm:$0xf]
      %v3707 = vld [vmem:[%s5 + $0x4] sm:$0xf]
      %v3708 = vld [vmem:[%s5 + $0x8] sm:$0xf]
      %v3709 = vld [vmem:[%s5 + $0xc] sm:$0xf]
      %v3710 = vld [vmem:[%s5 + $0x10] sm:$0xf]
      %v3711 = vld [vmem:[%s5 + $0x14] sm:$0xf]
      %v3712 = vld [vmem:[%s5 + $0x18] sm:$0xf]
      %v3713 = vld [vmem:[%s5 + $0x1c] sm:$0xf]
      %v3731 = vunpack.c.l.b16 %v3689
      %v3732 = vunpack.c.l.b16 %v3690
      %v3733 = vunpack.c.l.b16 %v3691
      %v3734 = vunpack.c.l.b16 %v3692
      %v3735 = vunpack.c.l.b16 %v3693
      %v3736 = vunpack.c.l.b16 %v3694
      %v3737 = vunpack.c.l.b16 %v3695
      %v3738 = vunpack.c.l.b16 %v3696
      %v3739 = vunpack.c.l.b16 %v3697
      %v3740 = vunpack.c.l.b16 %v3698
      %v3741 = vunpack.c.l.b16 %v3699
      %v3742 = vunpack.c.l.b16 %v3700
      %v3743 = vunpack.c.l.b16 %v3701
      %v3744 = vunpack.c.l.b16 %v3702
      %v3745 = vunpack.c.l.b16 %v3703
      %v3746 = vunpack.c.l.b16 %v3704
      %v3747 = vunpack.c.l.b16 %v3705
      %v3748 = vpack.c.b16 %v3732, %v3731
      %v3749 = vpack.c.b16 %v3734, %v3733
      %v3750 = vpack.c.b16 %v3736, %v3735
      %v3751 = vpack.c.b16 %v3738, %v3737
      %v3752 = vpack.c.b16 %v3740, %v3739
      %v3753 = vpack.c.b16 %v3742, %v3741
      %v3754 = vpack.c.b16 %v3744, %v3743
      %v3755 = vpack.c.b16 %v3746, %v3745
      %v3756 = vpack.c.b16 %v3747, %v3747
      %v3757 = vrot.slane %v3748, 1
      %v3758 = vrot.slane %v3749, 1
      %v3759 = vsel %vm886, %v3757, %v3758
      %v3760 = vrot.slane %v3750, 1
      %v3761 = vsel %vm886, %v3758, %v3760
      %v3762 = vrot.slane %v3751, 1
      %v3763 = vsel %vm886, %v3760, %v3762
      %v3764 = vrot.slane %v3752, 1
      %v3765 = vsel %vm886, %v3762, %v3764
      %v3766 = vrot.slane %v3753, 1
      %v3767 = vsel %vm886, %v3764, %v3766
      %v3768 = vrot.slane %v3754, 1
      %v3769 = vsel %vm886, %v3766, %v3768
      %v3770 = vrot.slane %v3755, 1
      %v3771 = vsel %vm886, %v3768, %v3770
      %v3772 = vrot.slane %v3756, 1
      %v3773 = vsel %vm886, %v3770, %v3772
      %v3782 = vunpack.c.l.b16 %v3706
      %v3783 = vunpack.c.l.b16 %v3707
      %v3784 = vunpack.c.l.b16 %v3708
      %v3785 = vunpack.c.l.b16 %v3709
      %v3786 = vunpack.c.l.b16 %v3710
      %v3787 = vunpack.c.l.b16 %v3711
      %v3788 = vunpack.c.l.b16 %v3712
      %v3789 = vunpack.c.l.b16 %v3713
      %v3790 = vpack.c.b16 %v3783, %v3782
      %v3791 = vpack.c.b16 %v3785, %v3784
      %v3792 = vpack.c.b16 %v3787, %v3786
      %v3793 = vpack.c.b16 %v3789, %v3788
      %v3799 = vsel %vm687, %v3759, 0
      %v3802 = vsel %vm687, %v3761, 0
      %v3805 = vsel %vm687, %v3763, 0
      %v3808 = vsel %vm687, %v3765, 0
      %v3811 = vsel %vm687, %v3767, 0
      %v3814 = vsel %vm687, %v3769, 0
      %v3817 = vsel %vm687, %v3771, 0
      %v3820 = vsel %vm687, %v3773, 0
      %3822 = vmatprep.subr.bf16.mxu0 0
      %3823 = vmatpush1.bf16.msra.mxu0 %v3790
      %3824 = vmatprep.subr.bf16.mxu0 0
      %3825 = vmatpush1.bf16.msra.mxu0 %v3791
      %3826 = vmatprep.subr.bf16.mxu0 0
      %3827 = vmatpush1.bf16.msra.mxu0 %v3792
      %3828 = vmatprep.subr.bf16.mxu0 0
      %3829 = vmatpush1.bf16.msra.mxu0 %v3793
      %3830 = vmatprep.subr.bf16.mxu0 0
      %3831 = vmatpush1.bf16.msra.mxu0 0
      %3832 = vmatprep.subr.bf16.mxu0 0
      %3833 = vmatpush1.bf16.msra.mxu0 0
      %3834 = vmatprep.subr.bf16.mxu0 0
      %3835 = vmatpush1.bf16.msra.mxu0 0
      %3836 = vmatprep.subr.bf16.mxu0 0
      %3837 = vmatpush1.bf16.msra.mxu0 0
      %3838 = vmatprep.subr.bf16.mxu0 0
      %3839 = vmatpush1.bf16.msra.mxu0 0
      %3840 = vmatprep.subr.bf16.mxu0 0
      %3841 = vmatpush1.bf16.msra.mxu0 0
      %3842 = vmatprep.subr.bf16.mxu0 0
      %3843 = vmatpush1.bf16.msra.mxu0 0
      %3844 = vmatprep.subr.bf16.mxu0 0
      %3845 = vmatpush1.bf16.msra.mxu0 0
      %3846 = vmatprep.subr.bf16.mxu0 0
      %3847 = vmatpush1.bf16.msra.mxu0 0
      %3848 = vmatprep.subr.bf16.mxu0 0
      %3849 = vmatpush1.bf16.msra.mxu0 0
      %3850 = vmatprep.subr.bf16.mxu0 0
      %3851 = vmatpush1.bf16.msra.mxu0 0
      %3852 = vmatprep.subr.bf16.mxu0 0
      %3853 = vmatpush1.bf16.msra.mxu0 0
      %3854 = vmatprep.mubr.bf16.mxu0 0
      %3855 = vmatmul.mubr.bf16.gmra.mrb[0].mxu0 %v3799
      %v3856 = vpop.f32.mrb[0].mxu0
      %v3857 = vadd.f32 0.0, %v3856
      %v3858 = vpop.f32.mrb[0].mxu0
      %v3859 = vpop.f32.mrb[0].mxu0
      %v3860 = vadd.f32 0.0, %v3859
      %v3861 = vpop.f32.mrb[0].mxu0
      %3862 = vmatprep.mubr.bf16.mxu0 0
      %3863 = vmatmul.mubr.bf16.gmra.mrb[0].mxu0 %v3802
      %v3864 = vpop.f32.mrb[0].mxu0
      %v3865 = vadd.f32 0.0, %v3864
      %v3866 = vpop.f32.mrb[0].mxu0
      %v3867 = vpop.f32.mrb[0].mxu0
      %v3868 = vadd.f32 0.0, %v3867
      %v3869 = vpop.f32.mrb[0].mxu0
      %3870 = vmatprep.mubr.bf16.mxu0 0
      %3871 = vmatmul.mubr.bf16.gmra.mrb[0].mxu0 %v3805
      %v3872 = vpop.f32.mrb[0].mxu0
      %v3873 = vadd.f32 0.0, %v3872
      %v3874 = vpop.f32.mrb[0].mxu0
      %v3875 = vpop.f32.mrb[0].mxu0
      %v3876 = vadd.f32 0.0, %v3875
      %v3877 = vpop.f32.mrb[0].mxu0
      %3878 = vmatprep.mubr.bf16.mxu0 0
      %3879 = vmatmul.mubr.bf16.gmra.mrb[0].mxu0 %v3808
      %v3880 = vpop.f32.mrb[0].mxu0
      %v3881 = vadd.f32 0.0, %v3880
      %v3882 = vpop.f32.mrb[0].mxu0
      %v3883 = vpop.f32.mrb[0].mxu0
      %v3884 = vadd.f32 0.0, %v3883
      %v3885 = vpop.f32.mrb[0].mxu0
      %3886 = vmatprep.mubr.bf16.mxu0 0
      %3887 = vmatmul.mubr.bf16.gmra.mrb[0].mxu0 %v3811
      %v3888 = vpop.f32.mrb[0].mxu0
      %v3889 = vadd.f32 0.0, %v3888
      %v3890 = vpop.f32.mrb[0].mxu0
      %v3891 = vpop.f32.mrb[0].mxu0
      %v3892 = vadd.f32 0.0, %v3891
      %v3893 = vpop.f32.mrb[0].mxu0
      %3894 = vmatprep.mubr.bf16.mxu0 0
      %3895 = vmatmul.mubr.bf16.gmra.mrb[0].mxu0 %v3814
      %v3896 = vpop.f32.mrb[0].mxu0
      %v3897 = vadd.f32 0.0, %v3896
      %v3898 = vpop.f32.mrb[0].mxu0
      %v3899 = vpop.f32.mrb[0].mxu0
      %v3900 = vadd.f32 0.0, %v3899
      %v3901 = vpop.f32.mrb[0].mxu0
      %3902 = vmatprep.mubr.bf16.mxu0 0
      %3903 = vmatmul.mubr.bf16.gmra.mrb[0].mxu0 %v3817
      %v3904 = vpop.f32.mrb[0].mxu0
      %v3905 = vadd.f32 0.0, %v3904
      %v3906 = vpop.f32.mrb[0].mxu0
      %v3907 = vpop.f32.mrb[0].mxu0
      %v3908 = vadd.f32 0.0, %v3907
      %v3909 = vpop.f32.mrb[0].mxu0
      %3910 = vmatprep.mubr.bf16.mxu0 0
      %3911 = vmatmul.mubr.bf16.gmra.mrb[0].mxu0 %v3820
      %v3912 = vpop.f32.mrb[0].mxu0
      %v3913 = vadd.f32 0.0, %v3912
      %v3914 = vpop.f32.mrb[0].mxu0
      %v3915 = vpop.f32.mrb[0].mxu0
      %v3916 = vadd.f32 0.0, %v3915
      %v3917 = vpop.f32.mrb[0].mxu0
      %3918 = vdwg.mxu0
      %3935 = vrot.lane.b32.xlu0 %v3857, 32
      %v3936 = vpop.permute.xlu0 %3935
      %3937 = vrot.lane.b32.xlu0 %v3860, 32
      %v3938 = vpop.permute.xlu0 %3937
      %3939 = vrot.lane.b32.xlu0 %v3865, 32
      %v3940 = vpop.permute.xlu0 %3939
      %3941 = vrot.lane.b32.xlu0 %v3868, 32
      %v3942 = vpop.permute.xlu0 %3941
      %3943 = vrot.lane.b32.xlu0 %v3873, 32
      %v3944 = vpop.permute.xlu0 %3943
      %3945 = vrot.lane.b32.xlu0 %v3876, 32
      %v3946 = vpop.permute.xlu0 %3945
      %3947 = vrot.lane.b32.xlu0 %v3881, 32
      %v3948 = vpop.permute.xlu0 %3947
      %3949 = vrot.lane.b32.xlu0 %v3884, 32
      %v3950 = vpop.permute.xlu0 %3949
      %3951 = vrot.lane.b32.xlu0 %v3889, 32
      %v3952 = vpop.permute.xlu0 %3951
      %3953 = vrot.lane.b32.xlu0 %v3892, 32
      %v3954 = vpop.permute.xlu0 %3953
      %3955 = vrot.lane.b32.xlu0 %v3897, 32
      %v3956 = vpop.permute.xlu0 %3955
      %3957 = vrot.lane.b32.xlu0 %v3900, 32
      %v3958 = vpop.permute.xlu0 %3957
      %3959 = vrot.lane.b32.xlu0 %v3905, 32
      %v3960 = vpop.permute.xlu0 %3959
      %3961 = vrot.lane.b32.xlu0 %v3908, 32
      %v3962 = vpop.permute.xlu0 %3961
      %3963 = vrot.lane.b32.xlu0 %v3913, 32
      %v3964 = vpop.permute.xlu0 %3963
      %3965 = vrot.lane.b32.xlu0 %v3916, 32
      %v3966 = vpop.permute.xlu0 %3965
      %v3983 = vadd.f32 %v3326, %v3936
      %v3984 = vadd.f32 %v3327, %v3938
      %v3985 = vadd.f32 %v3328, %v3940
      %v3986 = vadd.f32 %v3329, %v3942
      %v3987 = vadd.f32 %v3330, %v3944
      %v3988 = vadd.f32 %v3331, %v3946
      %v3989 = vadd.f32 %v3332, %v3948
      %v3990 = vadd.f32 %v3333, %v3950
      %v3991 = vadd.f32 %v3334, %v3952
      %v3992 = vadd.f32 %v3335, %v3954
      %v3993 = vadd.f32 %v3336, %v3956
      %v3994 = vadd.f32 %v3337, %v3958
      %v3995 = vadd.f32 %v3338, %v3960
      %v3996 = vadd.f32 %v3339, %v3962
      %v3997 = vadd.f32 %v3340, %v3964
      %v3998 = vadd.f32 %v3341, %v3966
      %v3999 = vld [vmem:[#allocation5 + $0x4] sm:$0xf]
      %v4000 = vld [vmem:[#allocation5 + $0x8] sm:$0xf]
      %v4001 = vld [vmem:[#allocation5 + $0xc] sm:$0xf]
      %v4002 = vld [vmem:[#allocation5 + $0x10] sm:$0xf]
      %v4003 = vld [vmem:[#allocation5 + $0x14] sm:$0xf]
      %v4004 = vld [vmem:[#allocation5 + $0x18] sm:$0xf]
      %v4005 = vld [vmem:[#allocation5 + $0x1c] sm:$0xf]
      %v4006 = vld [vmem:[#allocation5 + $0x20] sm:$0xf]
      %v4007 = vld [vmem:[#allocation5 + $0x24] sm:$0xf]
      %v4008 = vld [vmem:[#allocation5 + $0x28] sm:$0xf]
      %v4009 = vld [vmem:[#allocation5 + $0x2c] sm:$0xf]
      %v4010 = vld [vmem:[#allocation5 + $0x30] sm:$0xf]
      %v4011 = vld [vmem:[#allocation5 + $0x34] sm:$0xf]
      %v4012 = vld [vmem:[#allocation5 + $0x38] sm:$0xf]
      %v4013 = vld [vmem:[#allocation5 + $0x3c] sm:$0xf]
      %v4014 = vld [vmem:[#allocation5 + $0x40] sm:$0xf]
      %v4015 = vld [vmem:[#allocation5 + $0x44] sm:$0x1]
      %s4016 = scalar_lea.vmem %s3, 64
      %v4017 = vld [vmem:[%s4016] sm:$0xf]
      %v4018 = vld [vmem:[%s4016 + $0x4] sm:$0xf]
      %v4019 = vld [vmem:[%s4016 + $0x8] sm:$0xf]
      %v4020 = vld [vmem:[%s4016 + $0xc] sm:$0xf]
      %v4021 = vld [vmem:[%s4016 + $0x10] sm:$0xf]
      %v4022 = vld [vmem:[%s4016 + $0x14] sm:$0xf]
      %v4023 = vld [vmem:[%s4016 + $0x18] sm:$0xf]
      %v4024 = vld [vmem:[%s4016 + $0x1c] sm:$0xf]
      %v4025 = vld [vmem:[%s4016 + $0x20] sm:$0xf]
      %v4026 = vld [vmem:[%s4016 + $0x24] sm:$0xf]
      %v4027 = vld [vmem:[%s4016 + $0x28] sm:$0xf]
      %v4028 = vld [vmem:[%s4016 + $0x2c] sm:$0xf]
      %v4029 = vld [vmem:[%s4016 + $0x30] sm:$0xf]
      %v4030 = vld [vmem:[%s4016 + $0x34] sm:$0xf]
      %v4031 = vld [vmem:[%s4016 + $0x38] sm:$0xf]
      %v4032 = vld [vmem:[%s4016 + $0x3c] sm:$0xf]
      %v4050 = vunpack.c.l.b16 %v3999
      %v4051 = vunpack.c.l.b16 %v4000
      %v4052 = vunpack.c.l.b16 %v4001
      %v4053 = vunpack.c.l.b16 %v4002
      %v4054 = vunpack.c.l.b16 %v4003
      %v4055 = vunpack.c.l.b16 %v4004
      %v4056 = vunpack.c.l.b16 %v4005
      %v4057 = vunpack.c.l.b16 %v4006
      %v4058 = vunpack.c.l.b16 %v4007
      %v4059 = vunpack.c.l.b16 %v4008
      %v4060 = vunpack.c.l.b16 %v4009
      %v4061 = vunpack.c.l.b16 %v4010
      %v4062 = vunpack.c.l.b16 %v4011
      %v4063 = vunpack.c.l.b16 %v4012
      %v4064 = vunpack.c.l.b16 %v4013
      %v4065 = vunpack.c.l.b16 %v4014
      %v4066 = vunpack.c.l.b16 %v4015
      %v4067 = vpack.c.b16 %v4051, %v4050
      %v4068 = vpack.c.b16 %v4053, %v4052
      %v4069 = vpack.c.b16 %v4055, %v4054
      %v4070 = vpack.c.b16 %v4057, %v4056
      %v4071 = vpack.c.b16 %v4059, %v4058
      %v4072 = vpack.c.b16 %v4061, %v4060
      %v4073 = vpack.c.b16 %v4063, %v4062
      %v4074 = vpack.c.b16 %v4065, %v4064
      %v4075 = vpack.c.b16 %v4066, %v4066
      %v4077 = vshrl.u32 %v4067, 16
      %v4079 = vshll.u32 %v4067, 16
      %v4081 = vrot.slane %v4079, 1
      %v4082 = vor.u32 %v4077, %v4081
      %v4084 = vshll.u32 %v4068, 16
      %v4086 = vrot.slane %v4084, 1
      %v4087 = vsel %vm724, %v4082, %v4086
      %v4088 = vshrl.u32 %v4068, 16
      %v4090 = vor.u32 %v4088, %v4086
      %v4092 = vshll.u32 %v4069, 16
      %v4094 = vrot.slane %v4092, 1
      %v4095 = vsel %vm724, %v4090, %v4094
      %v4096 = vshrl.u32 %v4069, 16
      %v4098 = vor.u32 %v4096, %v4094
      %v4100 = vshll.u32 %v4070, 16
      %v4102 = vrot.slane %v4100, 1
      %v4103 = vsel %vm724, %v4098, %v4102
      %v4104 = vshrl.u32 %v4070, 16
      %v4106 = vor.u32 %v4104, %v4102
      %v4108 = vshll.u32 %v4071, 16
      %v4110 = vrot.slane %v4108, 1
      %v4111 = vsel %vm724, %v4106, %v4110
      %v4112 = vshrl.u32 %v4071, 16
      %v4114 = vor.u32 %v4112, %v4110
      %v4116 = vshll.u32 %v4072, 16
      %v4118 = vrot.slane %v4116, 1
      %v4119 = vsel %vm724, %v4114, %v4118
      %v4120 = vshrl.u32 %v4072, 16
      %v4122 = vor.u32 %v4120, %v4118
      %v4124 = vshll.u32 %v4073, 16
      %v4126 = vrot.slane %v4124, 1
      %v4127 = vsel %vm724, %v4122, %v4126
      %v4128 = vshrl.u32 %v4073, 16
      %v4130 = vor.u32 %v4128, %v4126
      %v4132 = vshll.u32 %v4074, 16
      %v4134 = vrot.slane %v4132, 1
      %v4135 = vsel %vm724, %v4130, %v4134
      %v4136 = vshrl.u32 %v4074, 16
      %v4138 = vor.u32 %v4136, %v4134
      %v4140 = vshll.u32 %v4075, 16
      %v4142 = vrot.slane %v4140, 1
      %v4143 = vsel %vm724, %v4138, %v4142
      %v4168 = vunpack.c.l.b16 %v4017
      %v4169 = vunpack.c.l.b16 %v4018
      %v4170 = vunpack.c.l.b16 %v4019
      %v4171 = vunpack.c.l.b16 %v4020
      %v4172 = vunpack.c.l.b16 %v4021
      %v4173 = vunpack.c.l.b16 %v4022
      %v4174 = vunpack.c.l.b16 %v4023
      %v4175 = vunpack.c.l.b16 %v4024
      %v4176 = vunpack.c.l.b16 %v4025
      %v4177 = vunpack.c.l.b16 %v4026
      %v4178 = vunpack.c.l.b16 %v4027
      %v4179 = vunpack.c.l.b16 %v4028
      %v4180 = vunpack.c.l.b16 %v4029
      %v4181 = vunpack.c.l.b16 %v4030
      %v4182 = vunpack.c.l.b16 %v4031
      %v4183 = vunpack.c.l.b16 %v4032
      %v4184 = vpack.c.b16 %v4169, %v4168
      %v4185 = vpack.c.b16 %v4171, %v4170
      %v4186 = vpack.c.b16 %v4173, %v4172
      %v4187 = vpack.c.b16 %v4175, %v4174
      %v4188 = vpack.c.b16 %v4177, %v4176
      %v4189 = vpack.c.b16 %v4179, %v4178
      %v4190 = vpack.c.b16 %v4181, %v4180
      %v4191 = vpack.c.b16 %v4183, %v4182
      %4200 = vmatprep.subr.bf16.mxu0 0
      %4201 = vmatpush1.bf16.msra.mxu0 %v4184
      %4202 = vmatprep.subr.bf16.mxu0 0
      %4203 = vmatpush1.bf16.msra.mxu0 %v4185
      %4204 = vmatprep.subr.bf16.mxu0 0
      %4205 = vmatpush1.bf16.msra.mxu0 %v4186
      %4206 = vmatprep.subr.bf16.mxu0 0
      %4207 = vmatpush1.bf16.msra.mxu0 %v4187
      %4208 = vmatprep.subr.bf16.mxu0 0
      %4209 = vmatpush1.bf16.msra.mxu0 %v4188
      %4210 = vmatprep.subr.bf16.mxu0 0
      %4211 = vmatpush1.bf16.msra.mxu0 %v4189
      %4212 = vmatprep.subr.bf16.mxu0 0
      %4213 = vmatpush1.bf16.msra.mxu0 %v4190
      %4214 = vmatprep.subr.bf16.mxu0 0
      %4215 = vmatpush1.bf16.msra.mxu0 %v4191
      %4216 = vmatprep.subr.bf16.mxu0 0
      %4217 = vmatpush1.bf16.msra.mxu0 0
      %4218 = vmatprep.subr.bf16.mxu0 0
      %4219 = vmatpush1.bf16.msra.mxu0 0
      %4220 = vmatprep.subr.bf16.mxu0 0
      %4221 = vmatpush1.bf16.msra.mxu0 0
      %4222 = vmatprep.subr.bf16.mxu0 0
      %4223 = vmatpush1.bf16.msra.mxu0 0
      %4224 = vmatprep.subr.bf16.mxu0 0
      %4225 = vmatpush1.bf16.msra.mxu0 0
      %4226 = vmatprep.subr.bf16.mxu0 0
      %4227 = vmatpush1.bf16.msra.mxu0 0
      %4228 = vmatprep.subr.bf16.mxu0 0
      %4229 = vmatpush1.bf16.msra.mxu0 0
      %4230 = vmatprep.subr.bf16.mxu0 0
      %4231 = vmatpush1.bf16.msra.mxu0 0
      %4232 = vmatprep.mubr.bf16.mxu0 0
      %4233 = vmatmul.mubr.bf16.gmra.mrb[0].mxu0 %v4087
      %v4234 = vpop.f32.mrb[0].mxu0
      %v4235 = vadd.f32 0.0, %v4234
      %v4236 = vpop.f32.mrb[0].mxu0
      %v4237 = vpop.f32.mrb[0].mxu0
      %v4238 = vadd.f32 0.0, %v4237
      %v4239 = vpop.f32.mrb[0].mxu0
      %4240 = vmatprep.mubr.bf16.mxu0 0
      %4241 = vmatmul.mubr.bf16.gmra.mrb[0].mxu0 %v4095
      %v4242 = vpop.f32.mrb[0].mxu0
      %v4243 = vadd.f32 0.0, %v4242
      %v4244 = vpop.f32.mrb[0].mxu0
      %v4245 = vpop.f32.mrb[0].mxu0
      %v4246 = vadd.f32 0.0, %v4245
      %v4247 = vpop.f32.mrb[0].mxu0
      %4248 = vmatprep.mubr.bf16.mxu0 0
      %4249 = vmatmul.mubr.bf16.gmra.mrb[0].mxu0 %v4103
      %v4250 = vpop.f32.mrb[0].mxu0
      %v4251 = vadd.f32 0.0, %v4250
      %v4252 = vpop.f32.mrb[0].mxu0
      %v4253 = vpop.f32.mrb[0].mxu0
      %v4254 = vadd.f32 0.0, %v4253
      %v4255 = vpop.f32.mrb[0].mxu0
      %4256 = vmatprep.mubr.bf16.mxu0 0
      %4257 = vmatmul.mubr.bf16.gmra.mrb[0].mxu0 %v4111
      %v4258 = vpop.f32.mrb[0].mxu0
      %v4259 = vadd.f32 0.0, %v4258
      %v4260 = vpop.f32.mrb[0].mxu0
      %v4261 = vpop.f32.mrb[0].mxu0
      %v4262 = vadd.f32 0.0, %v4261
      %v4263 = vpop.f32.mrb[0].mxu0
      %4264 = vmatprep.mubr.bf16.mxu0 0
      %4265 = vmatmul.mubr.bf16.gmra.mrb[0].mxu0 %v4119
      %v4266 = vpop.f32.mrb[0].mxu0
      %v4267 = vadd.f32 0.0, %v4266
      %v4268 = vpop.f32.mrb[0].mxu0
      %v4269 = vpop.f32.mrb[0].mxu0
      %v4270 = vadd.f32 0.0, %v4269
      %v4271 = vpop.f32.mrb[0].mxu0
      %4272 = vmatprep.mubr.bf16.mxu0 0
      %4273 = vmatmul.mubr.bf16.gmra.mrb[0].mxu0 %v4127
      %v4274 = vpop.f32.mrb[0].mxu0
      %v4275 = vadd.f32 0.0, %v4274
      %v4276 = vpop.f32.mrb[0].mxu0
      %v4277 = vpop.f32.mrb[0].mxu0
      %v4278 = vadd.f32 0.0, %v4277
      %v4279 = vpop.f32.mrb[0].mxu0
      %4280 = vmatprep.mubr.bf16.mxu0 0
      %4281 = vmatmul.mubr.bf16.gmra.mrb[0].mxu0 %v4135
      %v4282 = vpop.f32.mrb[0].mxu0
      %v4283 = vadd.f32 0.0, %v4282
      %v4284 = vpop.f32.mrb[0].mxu0
      %v4285 = vpop.f32.mrb[0].mxu0
      %v4286 = vadd.f32 0.0, %v4285
      %v4287 = vpop.f32.mrb[0].mxu0
      %4288 = vmatprep.mubr.bf16.mxu0 0
      %4289 = vmatmul.mubr.bf16.gmra.mrb[0].mxu0 %v4143
      %v4290 = vpop.f32.mrb[0].mxu0
      %v4291 = vadd.f32 0.0, %v4290
      %v4292 = vpop.f32.mrb[0].mxu0
      %v4293 = vpop.f32.mrb[0].mxu0
      %v4294 = vadd.f32 0.0, %v4293
      %v4295 = vpop.f32.mrb[0].mxu0
      %4296 = vdwg.mxu0
      %v4297 = vadd.f32 %v3607, %v4235
      %v4298 = vadd.f32 %v3608, %v4238
      %v4299 = vadd.f32 %v3609, %v4243
      %v4300 = vadd.f32 %v3610, %v4246
      %v4301 = vadd.f32 %v3611, %v4251
      %v4302 = vadd.f32 %v3612, %v4254
      %v4303 = vadd.f32 %v3613, %v4259
      %v4304 = vadd.f32 %v3614, %v4262
      %v4305 = vadd.f32 %v3615, %v4267
      %v4306 = vadd.f32 %v3616, %v4270
      %v4307 = vadd.f32 %v3617, %v4275
      %v4308 = vadd.f32 %v3618, %v4278
      %v4309 = vadd.f32 %v3619, %v4283
      %v4310 = vadd.f32 %v3620, %v4286
      %v4311 = vadd.f32 %v3621, %v4291
      %v4312 = vadd.f32 %v3622, %v4294
      %v4313 = vadd.f32 %v3983, %v4235
      %v4314 = vadd.f32 %v3984, %v4238
      %v4315 = vadd.f32 %v3985, %v4243
      %v4316 = vadd.f32 %v3986, %v4246
      %v4317 = vadd.f32 %v3987, %v4251
      %v4318 = vadd.f32 %v3988, %v4254
      %v4319 = vadd.f32 %v3989, %v4259
      %v4320 = vadd.f32 %v3990, %v4262
      %v4321 = vadd.f32 %v3991, %v4267
      %v4322 = vadd.f32 %v3992, %v4270
      %v4323 = vadd.f32 %v3993, %v4275
      %v4324 = vadd.f32 %v3994, %v4278
      %v4325 = vadd.f32 %v3995, %v4283
      %v4326 = vadd.f32 %v3996, %v4286
      %v4327 = vadd.f32 %v3997, %v4291
      %v4328 = vadd.f32 %v3998, %v4294
      %v4329 = vld [vmem:[#allocation5 + $0x40] sm:$0xf]
      %v4330 = vsel %vm647, 0, %v3030
      %v4331 = vsel %vm648, 0, %v3031
      %v4332 = vsel %vm649, 0, %v3032
      %v4333 = vsel %vm650, 0, %v3033
      %v4334 = vsel %vm651, 0, %v3034
      %v4335 = vsel %vm652, 0, %v3035
      %v4336 = vsel %vm653, 0, %v3036
      %v4337 = vsel %vm654, 0, %v3037
      %v4338 = vsel %vm3374, 0, %v3038
      %v4339 = vsel %vm3375, 0, %v3039
      %v4340 = vsel %vm3376, 0, %v3040
      %v4341 = vsel %vm3377, 0, %v3041
      %v4342 = vsel %vm3378, 0, %v3042
      %v4343 = vsel %vm3379, 0, %v3043
      %v4344 = vsel %vm3380, 0, %v3044
      %v4345 = vsel %vm3381, 0, %v4329
      %s4346 = scalar_lea.vmem %s4, 32
      %v4347 = vld [vmem:[%s4346] sm:$0xf]
      %v4348 = vld [vmem:[%s4346 + $0x4] sm:$0xf]
      %v4349 = vld [vmem:[%s4346 + $0x8] sm:$0xf]
      %v4350 = vld [vmem:[%s4346 + $0xc] sm:$0xf]
      %v4351 = vld [vmem:[%s4346 + $0x10] sm:$0xf]
      %v4352 = vld [vmem:[%s4346 + $0x14] sm:$0xf]
      %v4353 = vld [vmem:[%s4346 + $0x18] sm:$0xf]
      %v4354 = vld [vmem:[%s4346 + $0x1c] sm:$0xf]
      %v4371 = vunpack.c.l.b16 %v4330
      %v4372 = vunpack.c.l.b16 %v4331
      %v4373 = vunpack.c.l.b16 %v4332
      %v4374 = vunpack.c.l.b16 %v4333
      %v4375 = vunpack.c.l.b16 %v4334
      %v4376 = vunpack.c.l.b16 %v4335
      %v4377 = vunpack.c.l.b16 %v4336
      %v4378 = vunpack.c.l.b16 %v4337
      %v4379 = vunpack.c.l.b16 %v4338
      %v4380 = vunpack.c.l.b16 %v4339
      %v4381 = vunpack.c.l.b16 %v4340
      %v4382 = vunpack.c.l.b16 %v4341
      %v4383 = vunpack.c.l.b16 %v4342
      %v4384 = vunpack.c.l.b16 %v4343
      %v4385 = vunpack.c.l.b16 %v4344
      %v4386 = vunpack.c.l.b16 %v4345
      %v4387 = vpack.c.b16 %v4372, %v4371
      %v4388 = vpack.c.b16 %v4374, %v4373
      %v4389 = vpack.c.b16 %v4376, %v4375
      %v4390 = vpack.c.b16 %v4378, %v4377
      %v4391 = vpack.c.b16 %v4380, %v4379
      %v4392 = vpack.c.b16 %v4382, %v4381
      %v4393 = vpack.c.b16 %v4384, %v4383
      %v4394 = vpack.c.b16 %v4386, %v4385
      %4395 = vrot.lane.b32.xlu0 %v4387, 64
      %v4396 = vpop.permute.xlu0 %4395
      %4397 = vrot.lane.b32.xlu0 %v4388, 64
      %v4398 = vpop.permute.xlu0 %4397
      %4399 = vrot.lane.b32.xlu0 %v4389, 64
      %v4400 = vpop.permute.xlu0 %4399
      %4401 = vrot.lane.b32.xlu0 %v4390, 64
      %v4402 = vpop.permute.xlu0 %4401
      %4403 = vrot.lane.b32.xlu0 %v4391, 64
      %v4404 = vpop.permute.xlu0 %4403
      %4405 = vrot.lane.b32.xlu0 %v4392, 64
      %v4406 = vpop.permute.xlu0 %4405
      %4407 = vrot.lane.b32.xlu0 %v4393, 64
      %v4408 = vpop.permute.xlu0 %4407
      %4409 = vrot.lane.b32.xlu0 %v4394, 64
      %v4410 = vpop.permute.xlu0 %4409
      %v4419 = vunpack.c.l.b16 %v4347
      %v4420 = vunpack.c.l.b16 %v4348
      %v4421 = vunpack.c.l.b16 %v4349
      %v4422 = vunpack.c.l.b16 %v4350
      %v4423 = vunpack.c.l.b16 %v4351
      %v4424 = vunpack.c.l.b16 %v4352
      %v4425 = vunpack.c.l.b16 %v4353
      %v4426 = vunpack.c.l.b16 %v4354
      %v4427 = vpack.c.b16 %v4420, %v4419
      %v4428 = vpack.c.b16 %v4422, %v4421
      %v4429 = vpack.c.b16 %v4424, %v4423
      %v4430 = vpack.c.b16 %v4426, %v4425
      %v4436 = vsel %vm687, %v4396, 0
      %v4439 = vsel %vm687, %v4398, 0
      %v4442 = vsel %vm687, %v4400, 0
      %v4445 = vsel %vm687, %v4402, 0
      %v4448 = vsel %vm687, %v4404, 0
      %v4451 = vsel %vm687, %v4406, 0
      %v4454 = vsel %vm687, %v4408, 0
      %v4457 = vsel %vm687, %v4410, 0
      %4459 = vmatprep.subr.bf16.mxu0 0
      %4460 = vmatpush1.bf16.msra.mxu0 %v4427
      %4461 = vmatprep.subr.bf16.mxu0 0
      %4462 = vmatpush1.bf16.msra.mxu0 %v4428
      %4463 = vmatprep.subr.bf16.mxu0 0
      %4464 = vmatpush1.bf16.msra.mxu0 %v4429
      %4465 = vmatprep.subr.bf16.mxu0 0
      %4466 = vmatpush1.bf16.msra.mxu0 %v4430
      %4467 = vmatprep.subr.bf16.mxu0 0
      %4468 = vmatpush1.bf16.msra.mxu0 0
      %4469 = vmatprep.subr.bf16.mxu0 0
      %4470 = vmatpush1.bf16.msra.mxu0 0
      %4471 = vmatprep.subr.bf16.mxu0 0
      %4472 = vmatpush1.bf16.msra.mxu0 0
      %4473 = vmatprep.subr.bf16.mxu0 0
      %4474 = vmatpush1.bf16.msra.mxu0 0
      %4475 = vmatprep.subr.bf16.mxu0 0
      %4476 = vmatpush1.bf16.msra.mxu0 0
      %4477 = vmatprep.subr.bf16.mxu0 0
      %4478 = vmatpush1.bf16.msra.mxu0 0
      %4479 = vmatprep.subr.bf16.mxu0 0
      %4480 = vmatpush1.bf16.msra.mxu0 0
      %4481 = vmatprep.subr.bf16.mxu0 0
      %4482 = vmatpush1.bf16.msra.mxu0 0
      %4483 = vmatprep.subr.bf16.mxu0 0
      %4484 = vmatpush1.bf16.msra.mxu0 0
      %4485 = vmatprep.subr.bf16.mxu0 0
      %4486 = vmatpush1.bf16.msra.mxu0 0
      %4487 = vmatprep.subr.bf16.mxu0 0
      %4488 = vmatpush1.bf16.msra.mxu0 0
      %4489 = vmatprep.subr.bf16.mxu0 0
      %4490 = vmatpush1.bf16.msra.mxu0 0
      %4491 = vmatprep.mubr.bf16.mxu0 0
      %4492 = vmatmul.mubr.bf16.gmra.mrb[0].mxu0 %v4436
      %v4493 = vpop.f32.mrb[0].mxu0
      %v4494 = vadd.f32 0.0, %v4493
      %v4495 = vpop.f32.mrb[0].mxu0
      %v4496 = vpop.f32.mrb[0].mxu0
      %v4497 = vadd.f32 0.0, %v4496
      %v4498 = vpop.f32.mrb[0].mxu0
      %4499 = vmatprep.mubr.bf16.mxu0 0
      %4500 = vmatmul.mubr.bf16.gmra.mrb[0].mxu0 %v4439
      %v4501 = vpop.f32.mrb[0].mxu0
      %v4502 = vadd.f32 0.0, %v4501
      %v4503 = vpop.f32.mrb[0].mxu0
      %v4504 = vpop.f32.mrb[0].mxu0
      %v4505 = vadd.f32 0.0, %v4504
      %v4506 = vpop.f32.mrb[0].mxu0
      %4507 = vmatprep.mubr.bf16.mxu0 0
      %4508 = vmatmul.mubr.bf16.gmra.mrb[0].mxu0 %v4442
      %v4509 = vpop.f32.mrb[0].mxu0
      %v4510 = vadd.f32 0.0, %v4509
      %v4511 = vpop.f32.mrb[0].mxu0
      %v4512 = vpop.f32.mrb[0].mxu0
      %v4513 = vadd.f32 0.0, %v4512
      %v4514 = vpop.f32.mrb[0].mxu0
      %4515 = vmatprep.mubr.bf16.mxu0 0
      %4516 = vmatmul.mubr.bf16.gmra.mrb[0].mxu0 %v4445
      %v4517 = vpop.f32.mrb[0].mxu0
      %v4518 = vadd.f32 0.0, %v4517
      %v4519 = vpop.f32.mrb[0].mxu0
      %v4520 = vpop.f32.mrb[0].mxu0
      %v4521 = vadd.f32 0.0, %v4520
      %v4522 = vpop.f32.mrb[0].mxu0
      %4523 = vmatprep.mubr.bf16.mxu0 0
      %4524 = vmatmul.mubr.bf16.gmra.mrb[0].mxu0 %v4448
      %v4525 = vpop.f32.mrb[0].mxu0
      %v4526 = vadd.f32 0.0, %v4525
      %v4527 = vpop.f32.mrb[0].mxu0
      %v4528 = vpop.f32.mrb[0].mxu0
      %v4529 = vadd.f32 0.0, %v4528
      %v4530 = vpop.f32.mrb[0].mxu0
      %4531 = vmatprep.mubr.bf16.mxu0 0
      %4532 = vmatmul.mubr.bf16.gmra.mrb[0].mxu0 %v4451
      %v4533 = vpop.f32.mrb[0].mxu0
      %v4534 = vadd.f32 0.0, %v4533
      %v4535 = vpop.f32.mrb[0].mxu0
      %v4536 = vpop.f32.mrb[0].mxu0
      %v4537 = vadd.f32 0.0, %v4536
      %v4538 = vpop.f32.mrb[0].mxu0
      %4539 = vmatprep.mubr.bf16.mxu0 0
      %4540 = vmatmul.mubr.bf16.gmra.mrb[0].mxu0 %v4454
      %v4541 = vpop.f32.mrb[0].mxu0
      %v4542 = vadd.f32 0.0, %v4541
      %v4543 = vpop.f32.mrb[0].mxu0
      %v4544 = vpop.f32.mrb[0].mxu0
      %v4545 = vadd.f32 0.0, %v4544
      %v4546 = vpop.f32.mrb[0].mxu0
      %4547 = vmatprep.mubr.bf16.mxu0 0
      %4548 = vmatmul.mubr.bf16.gmra.mrb[0].mxu0 %v4457
      %v4549 = vpop.f32.mrb[0].mxu0
      %v4550 = vadd.f32 0.0, %v4549
      %v4551 = vpop.f32.mrb[0].mxu0
      %v4552 = vpop.f32.mrb[0].mxu0
      %v4553 = vadd.f32 0.0, %v4552
      %v4554 = vpop.f32.mrb[0].mxu0
      %4555 = vdwg.mxu0
      %v4556 = vadd.f32 %v4297, %v4494
      %v4557 = vadd.f32 %v4298, %v4497
      %v4558 = vadd.f32 %v4299, %v4502
      %v4559 = vadd.f32 %v4300, %v4505
      %v4560 = vadd.f32 %v4301, %v4510
      %v4561 = vadd.f32 %v4302, %v4513
      %v4562 = vadd.f32 %v4303, %v4518
      %v4563 = vadd.f32 %v4304, %v4521
      %v4564 = vadd.f32 %v4305, %v4526
      %v4565 = vadd.f32 %v4306, %v4529
      %v4566 = vadd.f32 %v4307, %v4534
      %v4567 = vadd.f32 %v4308, %v4537
      %v4568 = vadd.f32 %v4309, %v4542
      %v4569 = vadd.f32 %v4310, %v4545
      %v4570 = vadd.f32 %v4311, %v4550
      %v4571 = vadd.f32 %v4312, %v4553
      %v4572 = vld [vmem:[#allocation5 + $0x4] sm:$0xe]
      %v4573 = vsel %vm845, 0, %v4572
      %v4574 = vsel %vm846, 0, %v4000
      %v4575 = vsel %vm847, 0, %v4001
      %v4576 = vsel %vm848, 0, %v4002
      %v4577 = vsel %vm849, 0, %v4003
      %v4578 = vsel %vm850, 0, %v4004
      %v4579 = vsel %vm851, 0, %v4005
      %v4580 = vsel %vm852, 0, %v4006
      %v4581 = vsel %vm3680, 0, %v4007
      %v4582 = vsel %vm3681, 0, %v4008
      %v4583 = vsel %vm3682, 0, %v4009
      %v4584 = vsel %vm3683, 0, %v4010
      %v4585 = vsel %vm3684, 0, %v4011
      %v4586 = vsel %vm3685, 0, %v4012
      %v4587 = vsel %vm3686, 0, %v4013
      %v4588 = vsel %vm3687, 0, %v4014
      %v4589 = vsel %vm3688, 0, %v4015
      %s4590 = scalar_lea.vmem %s5, 32
      %v4591 = vld [vmem:[%s4590] sm:$0xf]
      %v4592 = vld [vmem:[%s4590 + $0x4] sm:$0xf]
      %v4593 = vld [vmem:[%s4590 + $0x8] sm:$0xf]
      %v4594 = vld [vmem:[%s4590 + $0xc] sm:$0xf]
      %v4595 = vld [vmem:[%s4590 + $0x10] sm:$0xf]
      %v4596 = vld [vmem:[%s4590 + $0x14] sm:$0xf]
      %v4597 = vld [vmem:[%s4590 + $0x18] sm:$0xf]
      %v4598 = vld [vmem:[%s4590 + $0x1c] sm:$0xf]
      %v4616 = vunpack.c.l.b16 %v4573
      %v4617 = vunpack.c.l.b16 %v4574
      %v4618 = vunpack.c.l.b16 %v4575
      %v4619 = vunpack.c.l.b16 %v4576
      %v4620 = vunpack.c.l.b16 %v4577
      %v4621 = vunpack.c.l.b16 %v4578
      %v4622 = vunpack.c.l.b16 %v4579
      %v4623 = vunpack.c.l.b16 %v4580
      %v4624 = vunpack.c.l.b16 %v4581
      %v4625 = vunpack.c.l.b16 %v4582
      %v4626 = vunpack.c.l.b16 %v4583
      %v4627 = vunpack.c.l.b16 %v4584
      %v4628 = vunpack.c.l.b16 %v4585
      %v4629 = vunpack.c.l.b16 %v4586
      %v4630 = vunpack.c.l.b16 %v4587
      %v4631 = vunpack.c.l.b16 %v4588
      %v4632 = vunpack.c.l.b16 %v4589
      %v4633 = vpack.c.b16 %v4617, %v4616
      %v4634 = vpack.c.b16 %v4619, %v4618
      %v4635 = vpack.c.b16 %v4621, %v4620
      %v4636 = vpack.c.b16 %v4623, %v4622
      %v4637 = vpack.c.b16 %v4625, %v4624
      %v4638 = vpack.c.b16 %v4627, %v4626
      %v4639 = vpack.c.b16 %v4629, %v4628
      %v4640 = vpack.c.b16 %v4631, %v4630
      %v4641 = vpack.c.b16 %v4632, %v4632
      %v4642 = vrot.slane %v4633, 1
      %v4643 = vrot.slane %v4634, 1
      %v4644 = vsel %vm886, %v4642, %v4643
      %v4645 = vrot.slane %v4635, 1
      %v4646 = vsel %vm886, %v4643, %v4645
      %v4647 = vrot.slane %v4636, 1
      %v4648 = vsel %vm886, %v4645, %v4647
      %v4649 = vrot.slane %v4637, 1
      %v4650 = vsel %vm886, %v4647, %v4649
      %v4651 = vrot.slane %v4638, 1
      %v4652 = vsel %vm886, %v4649, %v4651
      %v4653 = vrot.slane %v4639, 1
      %v4654 = vsel %vm886, %v4651, %v4653
      %v4655 = vrot.slane %v4640, 1
      %v4656 = vsel %vm886, %v4653, %v4655
      %v4657 = vrot.slane %v4641, 1
      %v4658 = vsel %vm886, %v4655, %v4657
      %v4667 = vunpack.c.l.b16 %v4591
      %v4668 = vunpack.c.l.b16 %v4592
      %v4669 = vunpack.c.l.b16 %v4593
      %v4670 = vunpack.c.l.b16 %v4594
      %v4671 = vunpack.c.l.b16 %v4595
      %v4672 = vunpack.c.l.b16 %v4596
      %v4673 = vunpack.c.l.b16 %v4597
      %v4674 = vunpack.c.l.b16 %v4598
      %v4675 = vpack.c.b16 %v4668, %v4667
      %v4676 = vpack.c.b16 %v4670, %v4669
      %v4677 = vpack.c.b16 %v4672, %v4671
      %v4678 = vpack.c.b16 %v4674, %v4673
      %v4684 = vsel %vm687, %v4644, 0
      %v4687 = vsel %vm687, %v4646, 0
      %v4690 = vsel %vm687, %v4648, 0
      %v4693 = vsel %vm687, %v4650, 0
      %v4696 = vsel %vm687, %v4652, 0
      %v4699 = vsel %vm687, %v4654, 0
      %v4702 = vsel %vm687, %v4656, 0
      %v4705 = vsel %vm687, %v4658, 0
      %4707 = vmatprep.subr.bf16.mxu0 0
      %4708 = vmatpush1.bf16.msra.mxu0 %v4675
      %4709 = vmatprep.subr.bf16.mxu0 0
      %4710 = vmatpush1.bf16.msra.mxu0 %v4676
      %4711 = vmatprep.subr.bf16.mxu0 0
      %4712 = vmatpush1.bf16.msra.mxu0 %v4677
      %4713 = vmatprep.subr.bf16.mxu0 0
      %4714 = vmatpush1.bf16.msra.mxu0 %v4678
      %4715 = vmatprep.subr.bf16.mxu0 0
      %4716 = vmatpush1.bf16.msra.mxu0 0
      %4717 = vmatprep.subr.bf16.mxu0 0
      %4718 = vmatpush1.bf16.msra.mxu0 0
      %4719 = vmatprep.subr.bf16.mxu0 0
      %4720 = vmatpush1.bf16.msra.mxu0 0
      %4721 = vmatprep.subr.bf16.mxu0 0
      %4722 = vmatpush1.bf16.msra.mxu0 0
      %4723 = vmatprep.subr.bf16.mxu0 0
      %4724 = vmatpush1.bf16.msra.mxu0 0
      %4725 = vmatprep.subr.bf16.mxu0 0
      %4726 = vmatpush1.bf16.msra.mxu0 0
      %4727 = vmatprep.subr.bf16.mxu0 0
      %4728 = vmatpush1.bf16.msra.mxu0 0
      %4729 = vmatprep.subr.bf16.mxu0 0
      %4730 = vmatpush1.bf16.msra.mxu0 0
      %4731 = vmatprep.subr.bf16.mxu0 0
      %4732 = vmatpush1.bf16.msra.mxu0 0
      %4733 = vmatprep.subr.bf16.mxu0 0
      %4734 = vmatpush1.bf16.msra.mxu0 0
      %4735 = vmatprep.subr.bf16.mxu0 0
      %4736 = vmatpush1.bf16.msra.mxu0 0
      %4737 = vmatprep.subr.bf16.mxu0 0
      %4738 = vmatpush1.bf16.msra.mxu0 0
      %4739 = vmatprep.mubr.bf16.mxu0 0
      %4740 = vmatmul.mubr.bf16.gmra.mrb[0].mxu0 %v4684
      %v4741 = vpop.f32.mrb[0].mxu0
      %v4742 = vadd.f32 0.0, %v4741
      %v4743 = vpop.f32.mrb[0].mxu0
      %v4744 = vpop.f32.mrb[0].mxu0
      %v4745 = vadd.f32 0.0, %v4744
      %v4746 = vpop.f32.mrb[0].mxu0
      %4747 = vmatprep.mubr.bf16.mxu0 0
      %4748 = vmatmul.mubr.bf16.gmra.mrb[0].mxu0 %v4687
      %v4749 = vpop.f32.mrb[0].mxu0
      %v4750 = vadd.f32 0.0, %v4749
      %v4751 = vpop.f32.mrb[0].mxu0
      %v4752 = vpop.f32.mrb[0].mxu0
      %v4753 = vadd.f32 0.0, %v4752
      %v4754 = vpop.f32.mrb[0].mxu0
      %4755 = vmatprep.mubr.bf16.mxu0 0
      %4756 = vmatmul.mubr.bf16.gmra.mrb[0].mxu0 %v4690
      %v4757 = vpop.f32.mrb[0].mxu0
      %v4758 = vadd.f32 0.0, %v4757
      %v4759 = vpop.f32.mrb[0].mxu0
      %v4760 = vpop.f32.mrb[0].mxu0
      %v4761 = vadd.f32 0.0, %v4760
      %v4762 = vpop.f32.mrb[0].mxu0
      %4763 = vmatprep.mubr.bf16.mxu0 0
      %4764 = vmatmul.mubr.bf16.gmra.mrb[0].mxu0 %v4693
      %v4765 = vpop.f32.mrb[0].mxu0
      %v4766 = vadd.f32 0.0, %v4765
      %v4767 = vpop.f32.mrb[0].mxu0
      %v4768 = vpop.f32.mrb[0].mxu0
      %v4769 = vadd.f32 0.0, %v4768
      %v4770 = vpop.f32.mrb[0].mxu0
      %4771 = vmatprep.mubr.bf16.mxu0 0
      %4772 = vmatmul.mubr.bf16.gmra.mrb[0].mxu0 %v4696
      %v4773 = vpop.f32.mrb[0].mxu0
      %v4774 = vadd.f32 0.0, %v4773
      %v4775 = vpop.f32.mrb[0].mxu0
      %v4776 = vpop.f32.mrb[0].mxu0
      %v4777 = vadd.f32 0.0, %v4776
      %v4778 = vpop.f32.mrb[0].mxu0
      %4779 = vmatprep.mubr.bf16.mxu0 0
      %4780 = vmatmul.mubr.bf16.gmra.mrb[0].mxu0 %v4699
      %v4781 = vpop.f32.mrb[0].mxu0
      %v4782 = vadd.f32 0.0, %v4781
      %v4783 = vpop.f32.mrb[0].mxu0
      %v4784 = vpop.f32.mrb[0].mxu0
      %v4785 = vadd.f32 0.0, %v4784
      %v4786 = vpop.f32.mrb[0].mxu0
      %4787 = vmatprep.mubr.bf16.mxu0 0
      %4788 = vmatmul.mubr.bf16.gmra.mrb[0].mxu0 %v4702
      %v4789 = vpop.f32.mrb[0].mxu0
      %v4790 = vadd.f32 0.0, %v4789
      %v4791 = vpop.f32.mrb[0].mxu0
      %v4792 = vpop.f32.mrb[0].mxu0
      %v4793 = vadd.f32 0.0, %v4792
      %v4794 = vpop.f32.mrb[0].mxu0
      %4795 = vmatprep.mubr.bf16.mxu0 0
      %4796 = vmatmul.mubr.bf16.gmra.mrb[0].mxu0 %v4705
      %v4797 = vpop.f32.mrb[0].mxu0
      %v4798 = vadd.f32 0.0, %v4797
      %v4799 = vpop.f32.mrb[0].mxu0
      %v4800 = vpop.f32.mrb[0].mxu0
      %v4801 = vadd.f32 0.0, %v4800
      %v4802 = vpop.f32.mrb[0].mxu0
      %4803 = vdwg.mxu0
      %4820 = vrot.lane.b32.xlu0 %v4742, 32
      %v4821 = vpop.permute.xlu0 %4820
      %4822 = vrot.lane.b32.xlu0 %v4745, 32
      %v4823 = vpop.permute.xlu0 %4822
      %4824 = vrot.lane.b32.xlu0 %v4750, 32
      %v4825 = vpop.permute.xlu0 %4824
      %4826 = vrot.lane.b32.xlu0 %v4753, 32
      %v4827 = vpop.permute.xlu0 %4826
      %4828 = vrot.lane.b32.xlu0 %v4758, 32
      %v4829 = vpop.permute.xlu0 %4828
      %4830 = vrot.lane.b32.xlu0 %v4761, 32
      %v4831 = vpop.permute.xlu0 %4830
      %4832 = vrot.lane.b32.xlu0 %v4766, 32
      %v4833 = vpop.permute.xlu0 %4832
      %4834 = vrot.lane.b32.xlu0 %v4769, 32
      %v4835 = vpop.permute.xlu0 %4834
      %4836 = vrot.lane.b32.xlu0 %v4774, 32
      %v4837 = vpop.permute.xlu0 %4836
      %4838 = vrot.lane.b32.xlu0 %v4777, 32
      %v4839 = vpop.permute.xlu0 %4838
      %4840 = vrot.lane.b32.xlu0 %v4782, 32
      %v4841 = vpop.permute.xlu0 %4840
      %4842 = vrot.lane.b32.xlu0 %v4785, 32
      %v4843 = vpop.permute.xlu0 %4842
      %4844 = vrot.lane.b32.xlu0 %v4790, 32
      %v4845 = vpop.permute.xlu0 %4844
      %4846 = vrot.lane.b32.xlu0 %v4793, 32
      %v4847 = vpop.permute.xlu0 %4846
      %4848 = vrot.lane.b32.xlu0 %v4798, 32
      %v4849 = vpop.permute.xlu0 %4848
      %4850 = vrot.lane.b32.xlu0 %v4801, 32
      %v4851 = vpop.permute.xlu0 %4850
      %v4868 = vadd.f32 %v4313, %v4821
      %v4869 = vadd.f32 %v4314, %v4823
      %v4870 = vadd.f32 %v4315, %v4825
      %v4871 = vadd.f32 %v4316, %v4827
      %v4872 = vadd.f32 %v4317, %v4829
      %v4873 = vadd.f32 %v4318, %v4831
      %v4874 = vadd.f32 %v4319, %v4833
      %v4875 = vadd.f32 %v4320, %v4835
      %v4876 = vadd.f32 %v4321, %v4837
      %v4877 = vadd.f32 %v4322, %v4839
      %v4878 = vadd.f32 %v4323, %v4841
      %v4879 = vadd.f32 %v4324, %v4843
      %v4880 = vadd.f32 %v4325, %v4845
      %v4881 = vadd.f32 %v4326, %v4847
      %v4882 = vadd.f32 %v4327, %v4849
      %v4883 = vadd.f32 %v4328, %v4851
      %v4884 = vld [vmem:[#allocation5 + $0x8] sm:$0xf]
      %v4885 = vld [vmem:[#allocation5 + $0xc] sm:$0xf]
      %v4886 = vld [vmem:[#allocation5 + $0x10] sm:$0xf]
      %v4887 = vld [vmem:[#allocation5 + $0x14] sm:$0xf]
      %v4888 = vld [vmem:[#allocation5 + $0x18] sm:$0xf]
      %v4889 = vld [vmem:[#allocation5 + $0x1c] sm:$0xf]
      %v4890 = vld [vmem:[#allocation5 + $0x20] sm:$0xf]
      %v4891 = vld [vmem:[#allocation5 + $0x24] sm:$0xf]
      %v4892 = vld [vmem:[#allocation5 + $0x28] sm:$0xf]
      %v4893 = vld [vmem:[#allocation5 + $0x2c] sm:$0xf]
      %v4894 = vld [vmem:[#allocation5 + $0x30] sm:$0xf]
      %v4895 = vld [vmem:[#allocation5 + $0x34] sm:$0xf]
      %v4896 = vld [vmem:[#allocation5 + $0x38] sm:$0xf]
      %v4897 = vld [vmem:[#allocation5 + $0x3c] sm:$0xf]
      %v4898 = vld [vmem:[#allocation5 + $0x40] sm:$0xf]
      %v4899 = vld [vmem:[#allocation5 + $0x44] sm:$0xf]
      %v4900 = vld [vmem:[#allocation5 + $0x48] sm:$0x1]
      %s4901 = scalar_lea.vmem %s3, 128
      %v4902 = vld [vmem:[%s4901] sm:$0xf]
      %v4903 = vld [vmem:[%s4901 + $0x4] sm:$0xf]
      %v4904 = vld [vmem:[%s4901 + $0x8] sm:$0xf]
      %v4905 = vld [vmem:[%s4901 + $0xc] sm:$0xf]
      %v4906 = vld [vmem:[%s4901 + $0x10] sm:$0xf]
      %v4907 = vld [vmem:[%s4901 + $0x14] sm:$0xf]
      %v4908 = vld [vmem:[%s4901 + $0x18] sm:$0xf]
      %v4909 = vld [vmem:[%s4901 + $0x1c] sm:$0xf]
      %v4910 = vld [vmem:[%s4901 + $0x20] sm:$0xf]
      %v4911 = vld [vmem:[%s4901 + $0x24] sm:$0xf]
      %v4912 = vld [vmem:[%s4901 + $0x28] sm:$0xf]
      %v4913 = vld [vmem:[%s4901 + $0x2c] sm:$0xf]
      %v4914 = vld [vmem:[%s4901 + $0x30] sm:$0xf]
      %v4915 = vld [vmem:[%s4901 + $0x34] sm:$0xf]
      %v4916 = vld [vmem:[%s4901 + $0x38] sm:$0xf]
      %v4917 = vld [vmem:[%s4901 + $0x3c] sm:$0xf]
      %v4935 = vunpack.c.l.b16 %v4884
      %v4936 = vunpack.c.l.b16 %v4885
      %v4937 = vunpack.c.l.b16 %v4886
      %v4938 = vunpack.c.l.b16 %v4887
      %v4939 = vunpack.c.l.b16 %v4888
      %v4940 = vunpack.c.l.b16 %v4889
      %v4941 = vunpack.c.l.b16 %v4890
      %v4942 = vunpack.c.l.b16 %v4891
      %v4943 = vunpack.c.l.b16 %v4892
      %v4944 = vunpack.c.l.b16 %v4893
      %v4945 = vunpack.c.l.b16 %v4894
      %v4946 = vunpack.c.l.b16 %v4895
      %v4947 = vunpack.c.l.b16 %v4896
      %v4948 = vunpack.c.l.b16 %v4897
      %v4949 = vunpack.c.l.b16 %v4898
      %v4950 = vunpack.c.l.b16 %v4899
      %v4951 = vunpack.c.l.b16 %v4900
      %v4952 = vpack.c.b16 %v4936, %v4935
      %v4953 = vpack.c.b16 %v4938, %v4937
      %v4954 = vpack.c.b16 %v4940, %v4939
      %v4955 = vpack.c.b16 %v4942, %v4941
      %v4956 = vpack.c.b16 %v4944, %v4943
      %v4957 = vpack.c.b16 %v4946, %v4945
      %v4958 = vpack.c.b16 %v4948, %v4947
      %v4959 = vpack.c.b16 %v4950, %v4949
      %v4960 = vpack.c.b16 %v4951, %v4951
      %v4962 = vshrl.u32 %v4952, 16
      %v4964 = vshll.u32 %v4952, 16
      %v4966 = vrot.slane %v4964, 1
      %v4967 = vor.u32 %v4962, %v4966
      %v4969 = vshll.u32 %v4953, 16
      %v4971 = vrot.slane %v4969, 1
      %v4972 = vsel %vm724, %v4967, %v4971
      %v4973 = vshrl.u32 %v4953, 16
      %v4975 = vor.u32 %v4973, %v4971
      %v4977 = vshll.u32 %v4954, 16
      %v4979 = vrot.slane %v4977, 1
      %v4980 = vsel %vm724, %v4975, %v4979
      %v4981 = vshrl.u32 %v4954, 16
      %v4983 = vor.u32 %v4981, %v4979
      %v4985 = vshll.u32 %v4955, 16
      %v4987 = vrot.slane %v4985, 1
      %v4988 = vsel %vm724, %v4983, %v4987
      %v4989 = vshrl.u32 %v4955, 16
      %v4991 = vor.u32 %v4989, %v4987
      %v4993 = vshll.u32 %v4956, 16
      %v4995 = vrot.slane %v4993, 1
      %v4996 = vsel %vm724, %v4991, %v4995
      %v4997 = vshrl.u32 %v4956, 16
      %v4999 = vor.u32 %v4997, %v4995
      %v5001 = vshll.u32 %v4957, 16
      %v5003 = vrot.slane %v5001, 1
      %v5004 = vsel %vm724, %v4999, %v5003
      %v5005 = vshrl.u32 %v4957, 16
      %v5007 = vor.u32 %v5005, %v5003
      %v5009 = vshll.u32 %v4958, 16
      %v5011 = vrot.slane %v5009, 1
      %v5012 = vsel %vm724, %v5007, %v5011
      %v5013 = vshrl.u32 %v4958, 16
      %v5015 = vor.u32 %v5013, %v5011
      %v5017 = vshll.u32 %v4959, 16
      %v5019 = vrot.slane %v5017, 1
      %v5020 = vsel %vm724, %v5015, %v5019
      %v5021 = vshrl.u32 %v4959, 16
      %v5023 = vor.u32 %v5021, %v5019
      %v5025 = vshll.u32 %v4960, 16
      %v5027 = vrot.slane %v5025, 1
      %v5028 = vsel %vm724, %v5023, %v5027
      %v5053 = vunpack.c.l.b16 %v4902
      %v5054 = vunpack.c.l.b16 %v4903
      %v5055 = vunpack.c.l.b16 %v4904
      %v5056 = vunpack.c.l.b16 %v4905
      %v5057 = vunpack.c.l.b16 %v4906
      %v5058 = vunpack.c.l.b16 %v4907
      %v5059 = vunpack.c.l.b16 %v4908
      %v5060 = vunpack.c.l.b16 %v4909
      %v5061 = vunpack.c.l.b16 %v4910
      %v5062 = vunpack.c.l.b16 %v4911
      %v5063 = vunpack.c.l.b16 %v4912
      %v5064 = vunpack.c.l.b16 %v4913
      %v5065 = vunpack.c.l.b16 %v4914
      %v5066 = vunpack.c.l.b16 %v4915
      %v5067 = vunpack.c.l.b16 %v4916
      %v5068 = vunpack.c.l.b16 %v4917
      %v5069 = vpack.c.b16 %v5054, %v5053
      %v5070 = vpack.c.b16 %v5056, %v5055
      %v5071 = vpack.c.b16 %v5058, %v5057
      %v5072 = vpack.c.b16 %v5060, %v5059
      %v5073 = vpack.c.b16 %v5062, %v5061
      %v5074 = vpack.c.b16 %v5064, %v5063
      %v5075 = vpack.c.b16 %v5066, %v5065
      %v5076 = vpack.c.b16 %v5068, %v5067
      %5085 = vmatprep.subr.bf16.mxu0 0
      %5086 = vmatpush1.bf16.msra.mxu0 %v5069
      %5087 = vmatprep.subr.bf16.mxu0 0
      %5088 = vmatpush1.bf16.msra.mxu0 %v5070
      %5089 = vmatprep.subr.bf16.mxu0 0
      %5090 = vmatpush1.bf16.msra.mxu0 %v5071
      %5091 = vmatprep.subr.bf16.mxu0 0
      %5092 = vmatpush1.bf16.msra.mxu0 %v5072
      %5093 = vmatprep.subr.bf16.mxu0 0
      %5094 = vmatpush1.bf16.msra.mxu0 %v5073
      %5095 = vmatprep.subr.bf16.mxu0 0
      %5096 = vmatpush1.bf16.msra.mxu0 %v5074
      %5097 = vmatprep.subr.bf16.mxu0 0
      %5098 = vmatpush1.bf16.msra.mxu0 %v5075
      %5099 = vmatprep.subr.bf16.mxu0 0
      %5100 = vmatpush1.bf16.msra.mxu0 %v5076
      %5101 = vmatprep.subr.bf16.mxu0 0
      %5102 = vmatpush1.bf16.msra.mxu0 0
      %5103 = vmatprep.subr.bf16.mxu0 0
      %5104 = vmatpush1.bf16.msra.mxu0 0
      %5105 = vmatprep.subr.bf16.mxu0 0
      %5106 = vmatpush1.bf16.msra.mxu0 0
      %5107 = vmatprep.subr.bf16.mxu0 0
      %5108 = vmatpush1.bf16.msra.mxu0 0
      %5109 = vmatprep.subr.bf16.mxu0 0
      %5110 = vmatpush1.bf16.msra.mxu0 0
      %5111 = vmatprep.subr.bf16.mxu0 0
      %5112 = vmatpush1.bf16.msra.mxu0 0
      %5113 = vmatprep.subr.bf16.mxu0 0
      %5114 = vmatpush1.bf16.msra.mxu0 0
      %5115 = vmatprep.subr.bf16.mxu0 0
      %5116 = vmatpush1.bf16.msra.mxu0 0
      %5117 = vmatprep.mubr.bf16.mxu0 0
      %5118 = vmatmul.mubr.bf16.gmra.mrb[0].mxu0 %v4972
      %v5119 = vpop.f32.mrb[0].mxu0
      %v5120 = vadd.f32 0.0, %v5119
      %v5121 = vpop.f32.mrb[0].mxu0
      %v5122 = vpop.f32.mrb[0].mxu0
      %v5123 = vadd.f32 0.0, %v5122
      %v5124 = vpop.f32.mrb[0].mxu0
      %5125 = vmatprep.mubr.bf16.mxu0 0
      %5126 = vmatmul.mubr.bf16.gmra.mrb[0].mxu0 %v4980
      %v5127 = vpop.f32.mrb[0].mxu0
      %v5128 = vadd.f32 0.0, %v5127
      %v5129 = vpop.f32.mrb[0].mxu0
      %v5130 = vpop.f32.mrb[0].mxu0
      %v5131 = vadd.f32 0.0, %v5130
      %v5132 = vpop.f32.mrb[0].mxu0
      %5133 = vmatprep.mubr.bf16.mxu0 0
      %5134 = vmatmul.mubr.bf16.gmra.mrb[0].mxu0 %v4988
      %v5135 = vpop.f32.mrb[0].mxu0
      %v5136 = vadd.f32 0.0, %v5135
      %v5137 = vpop.f32.mrb[0].mxu0
      %v5138 = vpop.f32.mrb[0].mxu0
      %v5139 = vadd.f32 0.0, %v5138
      %v5140 = vpop.f32.mrb[0].mxu0
      %5141 = vmatprep.mubr.bf16.mxu0 0
      %5142 = vmatmul.mubr.bf16.gmra.mrb[0].mxu0 %v4996
      %v5143 = vpop.f32.mrb[0].mxu0
      %v5144 = vadd.f32 0.0, %v5143
      %v5145 = vpop.f32.mrb[0].mxu0
      %v5146 = vpop.f32.mrb[0].mxu0
      %v5147 = vadd.f32 0.0, %v5146
      %v5148 = vpop.f32.mrb[0].mxu0
      %5149 = vmatprep.mubr.bf16.mxu0 0
      %5150 = vmatmul.mubr.bf16.gmra.mrb[0].mxu0 %v5004
      %v5151 = vpop.f32.mrb[0].mxu0
      %v5152 = vadd.f32 0.0, %v5151
      %v5153 = vpop.f32.mrb[0].mxu0
      %v5154 = vpop.f32.mrb[0].mxu0
      %v5155 = vadd.f32 0.0, %v5154
      %v5156 = vpop.f32.mrb[0].mxu0
      %5157 = vmatprep.mubr.bf16.mxu0 0
      %5158 = vmatmul.mubr.bf16.gmra.mrb[0].mxu0 %v5012
      %v5159 = vpop.f32.mrb[0].mxu0
      %v5160 = vadd.f32 0.0, %v5159
      %v5161 = vpop.f32.mrb[0].mxu0
      %v5162 = vpop.f32.mrb[0].mxu0
      %v5163 = vadd.f32 0.0, %v5162
      %v5164 = vpop.f32.mrb[0].mxu0
      %5165 = vmatprep.mubr.bf16.mxu0 0
      %5166 = vmatmul.mubr.bf16.gmra.mrb[0].mxu0 %v5020
      %v5167 = vpop.f32.mrb[0].mxu0
      %v5168 = vadd.f32 0.0, %v5167
      %v5169 = vpop.f32.mrb[0].mxu0
      %v5170 = vpop.f32.mrb[0].mxu0
      %v5171 = vadd.f32 0.0, %v5170
      %v5172 = vpop.f32.mrb[0].mxu0
      %5173 = vmatprep.mubr.bf16.mxu0 0
      %5174 = vmatmul.mubr.bf16.gmra.mrb[0].mxu0 %v5028
      %v5175 = vpop.f32.mrb[0].mxu0
      %v5176 = vadd.f32 0.0, %v5175
      %v5177 = vpop.f32.mrb[0].mxu0
      %v5178 = vpop.f32.mrb[0].mxu0
      %v5179 = vadd.f32 0.0, %v5178
      %v5180 = vpop.f32.mrb[0].mxu0
      %5181 = vdwg.mxu0
      %v5182 = vadd.f32 %v4556, %v5120
      %v5183 = vadd.f32 %v4557, %v5123
      %v5184 = vadd.f32 %v4558, %v5128
      %v5185 = vadd.f32 %v4559, %v5131
      %v5186 = vadd.f32 %v4560, %v5136
      %v5187 = vadd.f32 %v4561, %v5139
      %v5188 = vadd.f32 %v4562, %v5144
      %v5189 = vadd.f32 %v4563, %v5147
      %v5190 = vadd.f32 %v4564, %v5152
      %v5191 = vadd.f32 %v4565, %v5155
      %v5192 = vadd.f32 %v4566, %v5160
      %v5193 = vadd.f32 %v4567, %v5163
      %v5194 = vadd.f32 %v4568, %v5168
      %v5195 = vadd.f32 %v4569, %v5171
      %v5196 = vadd.f32 %v4570, %v5176
      %v5197 = vadd.f32 %v4571, %v5179
      %v5198 = vadd.f32 %v4868, %v5120
      %v5199 = vadd.f32 %v4869, %v5123
      %v5200 = vadd.f32 %v4870, %v5128
      %v5201 = vadd.f32 %v4871, %v5131
      %v5202 = vadd.f32 %v4872, %v5136
      %v5203 = vadd.f32 %v4873, %v5139
      %v5204 = vadd.f32 %v4874, %v5144
      %v5205 = vadd.f32 %v4875, %v5147
      %v5206 = vadd.f32 %v4876, %v5152
      %v5207 = vadd.f32 %v4877, %v5155
      %v5208 = vadd.f32 %v4878, %v5160
      %v5209 = vadd.f32 %v4879, %v5163
      %v5210 = vadd.f32 %v4880, %v5168
      %v5211 = vadd.f32 %v4881, %v5171
      %v5212 = vadd.f32 %v4882, %v5176
      %v5213 = vadd.f32 %v4883, %v5179
      %v5214 = vld [vmem:[#allocation5 + $0x44] sm:$0xf]
      %v5215 = vsel %vm647, 0, %v4000
      %v5216 = vsel %vm648, 0, %v4001
      %v5217 = vsel %vm649, 0, %v4002
      %v5218 = vsel %vm650, 0, %v4003
      %v5219 = vsel %vm651, 0, %v4004
      %v5220 = vsel %vm652, 0, %v4005
      %v5221 = vsel %vm653, 0, %v4006
      %v5222 = vsel %vm654, 0, %v4007
      %v5223 = vsel %vm3374, 0, %v4008
      %v5224 = vsel %vm3375, 0, %v4009
      %v5225 = vsel %vm3376, 0, %v4010
      %v5226 = vsel %vm3377, 0, %v4011
      %v5227 = vsel %vm3378, 0, %v4012
      %v5228 = vsel %vm3379, 0, %v4013
      %v5229 = vsel %vm3380, 0, %v4014
      %v5230 = vsel %vm3381, 0, %v5214
      %s5231 = scalar_lea.vmem %s4, 64
      %v5232 = vld [vmem:[%s5231] sm:$0xf]
      %v5233 = vld [vmem:[%s5231 + $0x4] sm:$0xf]
      %v5234 = vld [vmem:[%s5231 + $0x8] sm:$0xf]
      %v5235 = vld [vmem:[%s5231 + $0xc] sm:$0xf]
      %v5236 = vld [vmem:[%s5231 + $0x10] sm:$0xf]
      %v5237 = vld [vmem:[%s5231 + $0x14] sm:$0xf]
      %v5238 = vld [vmem:[%s5231 + $0x18] sm:$0xf]
      %v5239 = vld [vmem:[%s5231 + $0x1c] sm:$0xf]
      %v5256 = vunpack.c.l.b16 %v5215
      %v5257 = vunpack.c.l.b16 %v5216
      %v5258 = vunpack.c.l.b16 %v5217
      %v5259 = vunpack.c.l.b16 %v5218
      %v5260 = vunpack.c.l.b16 %v5219
      %v5261 = vunpack.c.l.b16 %v5220
      %v5262 = vunpack.c.l.b16 %v5221
      %v5263 = vunpack.c.l.b16 %v5222
      %v5264 = vunpack.c.l.b16 %v5223
      %v5265 = vunpack.c.l.b16 %v5224
      %v5266 = vunpack.c.l.b16 %v5225
      %v5267 = vunpack.c.l.b16 %v5226
      %v5268 = vunpack.c.l.b16 %v5227
      %v5269 = vunpack.c.l.b16 %v5228
      %v5270 = vunpack.c.l.b16 %v5229
      %v5271 = vunpack.c.l.b16 %v5230
      %v5272 = vpack.c.b16 %v5257, %v5256
      %v5273 = vpack.c.b16 %v5259, %v5258
      %v5274 = vpack.c.b16 %v5261, %v5260
      %v5275 = vpack.c.b16 %v5263, %v5262
      %v5276 = vpack.c.b16 %v5265, %v5264
      %v5277 = vpack.c.b16 %v5267, %v5266
      %v5278 = vpack.c.b16 %v5269, %v5268
      %v5279 = vpack.c.b16 %v5271, %v5270
      %5280 = vrot.lane.b32.xlu0 %v5272, 64
      %v5281 = vpop.permute.xlu0 %5280
      %5282 = vrot.lane.b32.xlu0 %v5273, 64
      %v5283 = vpop.permute.xlu0 %5282
      %5284 = vrot.lane.b32.xlu0 %v5274, 64
      %v5285 = vpop.permute.xlu0 %5284
      %5286 = vrot.lane.b32.xlu0 %v5275, 64
      %v5287 = vpop.permute.xlu0 %5286
      %5288 = vrot.lane.b32.xlu0 %v5276, 64
      %v5289 = vpop.permute.xlu0 %5288
      %5290 = vrot.lane.b32.xlu0 %v5277, 64
      %v5291 = vpop.permute.xlu0 %5290
      %5292 = vrot.lane.b32.xlu0 %v5278, 64
      %v5293 = vpop.permute.xlu0 %5292
      %5294 = vrot.lane.b32.xlu0 %v5279, 64
      %v5295 = vpop.permute.xlu0 %5294
      %v5304 = vunpack.c.l.b16 %v5232
      %v5305 = vunpack.c.l.b16 %v5233
      %v5306 = vunpack.c.l.b16 %v5234
      %v5307 = vunpack.c.l.b16 %v5235
      %v5308 = vunpack.c.l.b16 %v5236
      %v5309 = vunpack.c.l.b16 %v5237
      %v5310 = vunpack.c.l.b16 %v5238
      %v5311 = vunpack.c.l.b16 %v5239
      %v5312 = vpack.c.b16 %v5305, %v5304
      %v5313 = vpack.c.b16 %v5307, %v5306
      %v5314 = vpack.c.b16 %v5309, %v5308
      %v5315 = vpack.c.b16 %v5311, %v5310
      %v5321 = vsel %vm687, %v5281, 0
      %v5324 = vsel %vm687, %v5283, 0
      %v5327 = vsel %vm687, %v5285, 0
      %v5330 = vsel %vm687, %v5287, 0
      %v5333 = vsel %vm687, %v5289, 0
      %v5336 = vsel %vm687, %v5291, 0
      %v5339 = vsel %vm687, %v5293, 0
      %v5342 = vsel %vm687, %v5295, 0
      %5344 = vmatprep.subr.bf16.mxu0 0
      %5345 = vmatpush1.bf16.msra.mxu0 %v5312
      %5346 = vmatprep.subr.bf16.mxu0 0
      %5347 = vmatpush1.bf16.msra.mxu0 %v5313
      %5348 = vmatprep.subr.bf16.mxu0 0
      %5349 = vmatpush1.bf16.msra.mxu0 %v5314
      %5350 = vmatprep.subr.bf16.mxu0 0
      %5351 = vmatpush1.bf16.msra.mxu0 %v5315
      %5352 = vmatprep.subr.bf16.mxu0 0
      %5353 = vmatpush1.bf16.msra.mxu0 0
      %5354 = vmatprep.subr.bf16.mxu0 0
      %5355 = vmatpush1.bf16.msra.mxu0 0
      %5356 = vmatprep.subr.bf16.mxu0 0
      %5357 = vmatpush1.bf16.msra.mxu0 0
      %5358 = vmatprep.subr.bf16.mxu0 0
      %5359 = vmatpush1.bf16.msra.mxu0 0
      %5360 = vmatprep.subr.bf16.mxu0 0
      %5361 = vmatpush1.bf16.msra.mxu0 0
      %5362 = vmatprep.subr.bf16.mxu0 0
      %5363 = vmatpush1.bf16.msra.mxu0 0
      %5364 = vmatprep.subr.bf16.mxu0 0
      %5365 = vmatpush1.bf16.msra.mxu0 0
      %5366 = vmatprep.subr.bf16.mxu0 0
      %5367 = vmatpush1.bf16.msra.mxu0 0
      %5368 = vmatprep.subr.bf16.mxu0 0
      %5369 = vmatpush1.bf16.msra.mxu0 0
      %5370 = vmatprep.subr.bf16.mxu0 0
      %5371 = vmatpush1.bf16.msra.mxu0 0
      %5372 = vmatprep.subr.bf16.mxu0 0
      %5373 = vmatpush1.bf16.msra.mxu0 0
      %5374 = vmatprep.subr.bf16.mxu0 0
      %5375 = vmatpush1.bf16.msra.mxu0 0
      %5376 = vmatprep.mubr.bf16.mxu0 0
      %5377 = vmatmul.mubr.bf16.gmra.mrb[0].mxu0 %v5321
      %v5378 = vpop.f32.mrb[0].mxu0
      %v5379 = vadd.f32 0.0, %v5378
      %v5380 = vpop.f32.mrb[0].mxu0
      %v5381 = vpop.f32.mrb[0].mxu0
      %v5382 = vadd.f32 0.0, %v5381
      %v5383 = vpop.f32.mrb[0].mxu0
      %5384 = vmatprep.mubr.bf16.mxu0 0
      %5385 = vmatmul.mubr.bf16.gmra.mrb[0].mxu0 %v5324
      %v5386 = vpop.f32.mrb[0].mxu0
      %v5387 = vadd.f32 0.0, %v5386
      %v5388 = vpop.f32.mrb[0].mxu0
      %v5389 = vpop.f32.mrb[0].mxu0
      %v5390 = vadd.f32 0.0, %v5389
      %v5391 = vpop.f32.mrb[0].mxu0
      %5392 = vmatprep.mubr.bf16.mxu0 0
      %5393 = vmatmul.mubr.bf16.gmra.mrb[0].mxu0 %v5327
      %v5394 = vpop.f32.mrb[0].mxu0
      %v5395 = vadd.f32 0.0, %v5394
      %v5396 = vpop.f32.mrb[0].mxu0
      %v5397 = vpop.f32.mrb[0].mxu0
      %v5398 = vadd.f32 0.0, %v5397
      %v5399 = vpop.f32.mrb[0].mxu0
      %5400 = vmatprep.mubr.bf16.mxu0 0
      %5401 = vmatmul.mubr.bf16.gmra.mrb[0].mxu0 %v5330
      %v5402 = vpop.f32.mrb[0].mxu0
      %v5403 = vadd.f32 0.0, %v5402
      %v5404 = vpop.f32.mrb[0].mxu0
      %v5405 = vpop.f32.mrb[0].mxu0
      %v5406 = vadd.f32 0.0, %v5405
      %v5407 = vpop.f32.mrb[0].mxu0
      %5408 = vmatprep.mubr.bf16.mxu0 0
      %5409 = vmatmul.mubr.bf16.gmra.mrb[0].mxu0 %v5333
      %v5410 = vpop.f32.mrb[0].mxu0
      %v5411 = vadd.f32 0.0, %v5410
      %v5412 = vpop.f32.mrb[0].mxu0
      %v5413 = vpop.f32.mrb[0].mxu0
      %v5414 = vadd.f32 0.0, %v5413
      %v5415 = vpop.f32.mrb[0].mxu0
      %5416 = vmatprep.mubr.bf16.mxu0 0
      %5417 = vmatmul.mubr.bf16.gmra.mrb[0].mxu0 %v5336
      %v5418 = vpop.f32.mrb[0].mxu0
      %v5419 = vadd.f32 0.0, %v5418
      %v5420 = vpop.f32.mrb[0].mxu0
      %v5421 = vpop.f32.mrb[0].mxu0
      %v5422 = vadd.f32 0.0, %v5421
      %v5423 = vpop.f32.mrb[0].mxu0
      %5424 = vmatprep.mubr.bf16.mxu0 0
      %5425 = vmatmul.mubr.bf16.gmra.mrb[0].mxu0 %v5339
      %v5426 = vpop.f32.mrb[0].mxu0
      %v5427 = vadd.f32 0.0, %v5426
      %v5428 = vpop.f32.mrb[0].mxu0
      %v5429 = vpop.f32.mrb[0].mxu0
      %v5430 = vadd.f32 0.0, %v5429
      %v5431 = vpop.f32.mrb[0].mxu0
      %5432 = vmatprep.mubr.bf16.mxu0 0
      %5433 = vmatmul.mubr.bf16.gmra.mrb[0].mxu0 %v5342
      %v5434 = vpop.f32.mrb[0].mxu0
      %v5435 = vadd.f32 0.0, %v5434
      %v5436 = vpop.f32.mrb[0].mxu0
      %v5437 = vpop.f32.mrb[0].mxu0
      %v5438 = vadd.f32 0.0, %v5437
      %v5439 = vpop.f32.mrb[0].mxu0
      %5440 = vdwg.mxu0
      %v5441 = vadd.f32 %v5182, %v5379
      %v5442 = vadd.f32 %v5183, %v5382
      %v5443 = vadd.f32 %v5184, %v5387
      %v5444 = vadd.f32 %v5185, %v5390
      %v5445 = vadd.f32 %v5186, %v5395
      %v5446 = vadd.f32 %v5187, %v5398
      %v5447 = vadd.f32 %v5188, %v5403
      %v5448 = vadd.f32 %v5189, %v5406
      %v5449 = vadd.f32 %v5190, %v5411
      %v5450 = vadd.f32 %v5191, %v5414
      %v5451 = vadd.f32 %v5192, %v5419
      %v5452 = vadd.f32 %v5193, %v5422
      %v5453 = vadd.f32 %v5194, %v5427
      %v5454 = vadd.f32 %v5195, %v5430
      %v5455 = vadd.f32 %v5196, %v5435
      %v5456 = vadd.f32 %v5197, %v5438
      %v5457 = vld [vmem:[#allocation5 + $0x8] sm:$0xe]
      %v5458 = vsel %vm845, 0, %v5457
      %v5459 = vsel %vm846, 0, %v4885
      %v5460 = vsel %vm847, 0, %v4886
      %v5461 = vsel %vm848, 0, %v4887
      %v5462 = vsel %vm849, 0, %v4888
      %v5463 = vsel %vm850, 0, %v4889
      %v5464 = vsel %vm851, 0, %v4890
      %v5465 = vsel %vm852, 0, %v4891
      %v5466 = vsel %vm3680, 0, %v4892
      %v5467 = vsel %vm3681, 0, %v4893
      %v5468 = vsel %vm3682, 0, %v4894
      %v5469 = vsel %vm3683, 0, %v4895
      %v5470 = vsel %vm3684, 0, %v4896
      %v5471 = vsel %vm3685, 0, %v4897
      %v5472 = vsel %vm3686, 0, %v4898
      %v5473 = vsel %vm3687, 0, %v4899
      %v5474 = vsel %vm3688, 0, %v4900
      %s5475 = scalar_lea.vmem %s5, 64
      %v5476 = vld [vmem:[%s5475] sm:$0xf]
      %v5477 = vld [vmem:[%s5475 + $0x4] sm:$0xf]
      %v5478 = vld [vmem:[%s5475 + $0x8] sm:$0xf]
      %v5479 = vld [vmem:[%s5475 + $0xc] sm:$0xf]
      %v5480 = vld [vmem:[%s5475 + $0x10] sm:$0xf]
      %v5481 = vld [vmem:[%s5475 + $0x14] sm:$0xf]
      %v5482 = vld [vmem:[%s5475 + $0x18] sm:$0xf]
      %v5483 = vld [vmem:[%s5475 + $0x1c] sm:$0xf]
      %v5501 = vunpack.c.l.b16 %v5458
      %v5502 = vunpack.c.l.b16 %v5459
      %v5503 = vunpack.c.l.b16 %v5460
      %v5504 = vunpack.c.l.b16 %v5461
      %v5505 = vunpack.c.l.b16 %v5462
      %v5506 = vunpack.c.l.b16 %v5463
      %v5507 = vunpack.c.l.b16 %v5464
      %v5508 = vunpack.c.l.b16 %v5465
      %v5509 = vunpack.c.l.b16 %v5466
      %v5510 = vunpack.c.l.b16 %v5467
      %v5511 = vunpack.c.l.b16 %v5468
      %v5512 = vunpack.c.l.b16 %v5469
      %v5513 = vunpack.c.l.b16 %v5470
      %v5514 = vunpack.c.l.b16 %v5471
      %v5515 = vunpack.c.l.b16 %v5472
      %v5516 = vunpack.c.l.b16 %v5473
      %v5517 = vunpack.c.l.b16 %v5474
      %v5518 = vpack.c.b16 %v5502, %v5501
      %v5519 = vpack.c.b16 %v5504, %v5503
      %v5520 = vpack.c.b16 %v5506, %v5505
      %v5521 = vpack.c.b16 %v5508, %v5507
      %v5522 = vpack.c.b16 %v5510, %v5509
      %v5523 = vpack.c.b16 %v5512, %v5511
      %v5524 = vpack.c.b16 %v5514, %v5513
      %v5525 = vpack.c.b16 %v5516, %v5515
      %v5526 = vpack.c.b16 %v5517, %v5517
      %v5527 = vrot.slane %v5518, 1
      %v5528 = vrot.slane %v5519, 1
      %v5529 = vsel %vm886, %v5527, %v5528
      %v5530 = vrot.slane %v5520, 1
      %v5531 = vsel %vm886, %v5528, %v5530
      %v5532 = vrot.slane %v5521, 1
      %v5533 = vsel %vm886, %v5530, %v5532
      %v5534 = vrot.slane %v5522, 1
      %v5535 = vsel %vm886, %v5532, %v5534
      %v5536 = vrot.slane %v5523, 1
      %v5537 = vsel %vm886, %v5534, %v5536
      %v5538 = vrot.slane %v5524, 1
      %v5539 = vsel %vm886, %v5536, %v5538
      %v5540 = vrot.slane %v5525, 1
      %v5541 = vsel %vm886, %v5538, %v5540
      %v5542 = vrot.slane %v5526, 1
      %v5543 = vsel %vm886, %v5540, %v5542
      %v5552 = vunpack.c.l.b16 %v5476
      %v5553 = vunpack.c.l.b16 %v5477
      %v5554 = vunpack.c.l.b16 %v5478
      %v5555 = vunpack.c.l.b16 %v5479
      %v5556 = vunpack.c.l.b16 %v5480
      %v5557 = vunpack.c.l.b16 %v5481
      %v5558 = vunpack.c.l.b16 %v5482
      %v5559 = vunpack.c.l.b16 %v5483
      %v5560 = vpack.c.b16 %v5553, %v5552
      %v5561 = vpack.c.b16 %v5555, %v5554
      %v5562 = vpack.c.b16 %v5557, %v5556
      %v5563 = vpack.c.b16 %v5559, %v5558
      %v5569 = vsel %vm687, %v5529, 0
      %v5572 = vsel %vm687, %v5531, 0
      %v5575 = vsel %vm687, %v5533, 0
      %v5578 = vsel %vm687, %v5535, 0
      %v5581 = vsel %vm687, %v5537, 0
      %v5584 = vsel %vm687, %v5539, 0
      %v5587 = vsel %vm687, %v5541, 0
      %v5590 = vsel %vm687, %v5543, 0
      %5592 = vmatprep.subr.bf16.mxu0 0
      %5593 = vmatpush1.bf16.msra.mxu0 %v5560
      %5594 = vmatprep.subr.bf16.mxu0 0
      %5595 = vmatpush1.bf16.msra.mxu0 %v5561
      %5596 = vmatprep.subr.bf16.mxu0 0
      %5597 = vmatpush1.bf16.msra.mxu0 %v5562
      %5598 = vmatprep.subr.bf16.mxu0 0
      %5599 = vmatpush1.bf16.msra.mxu0 %v5563
      %5600 = vmatprep.subr.bf16.mxu0 0
      %5601 = vmatpush1.bf16.msra.mxu0 0
      %5602 = vmatprep.subr.bf16.mxu0 0
      %5603 = vmatpush1.bf16.msra.mxu0 0
      %5604 = vmatprep.subr.bf16.mxu0 0
      %5605 = vmatpush1.bf16.msra.mxu0 0
      %5606 = vmatprep.subr.bf16.mxu0 0
      %5607 = vmatpush1.bf16.msra.mxu0 0
      %5608 = vmatprep.subr.bf16.mxu0 0
      %5609 = vmatpush1.bf16.msra.mxu0 0
      %5610 = vmatprep.subr.bf16.mxu0 0
      %5611 = vmatpush1.bf16.msra.mxu0 0
      %5612 = vmatprep.subr.bf16.mxu0 0
      %5613 = vmatpush1.bf16.msra.mxu0 0
      %5614 = vmatprep.subr.bf16.mxu0 0
      %5615 = vmatpush1.bf16.msra.mxu0 0
      %5616 = vmatprep.subr.bf16.mxu0 0
      %5617 = vmatpush1.bf16.msra.mxu0 0
      %5618 = vmatprep.subr.bf16.mxu0 0
      %5619 = vmatpush1.bf16.msra.mxu0 0
      %5620 = vmatprep.subr.bf16.mxu0 0
      %5621 = vmatpush1.bf16.msra.mxu0 0
      %5622 = vmatprep.subr.bf16.mxu0 0
      %5623 = vmatpush1.bf16.msra.mxu0 0
      %5624 = vmatprep.mubr.bf16.mxu0 0
      %5625 = vmatmul.mubr.bf16.gmra.mrb[0].mxu0 %v5569
      %v5626 = vpop.f32.mrb[0].mxu0
      %v5627 = vadd.f32 0.0, %v5626
      %v5628 = vpop.f32.mrb[0].mxu0
      %v5629 = vpop.f32.mrb[0].mxu0
      %v5630 = vadd.f32 0.0, %v5629
      %v5631 = vpop.f32.mrb[0].mxu0
      %5632 = vmatprep.mubr.bf16.mxu0 0
      %5633 = vmatmul.mubr.bf16.gmra.mrb[0].mxu0 %v5572
      %v5634 = vpop.f32.mrb[0].mxu0
      %v5635 = vadd.f32 0.0, %v5634
      %v5636 = vpop.f32.mrb[0].mxu0
      %v5637 = vpop.f32.mrb[0].mxu0
      %v5638 = vadd.f32 0.0, %v5637
      %v5639 = vpop.f32.mrb[0].mxu0
      %5640 = vmatprep.mubr.bf16.mxu0 0
      %5641 = vmatmul.mubr.bf16.gmra.mrb[0].mxu0 %v5575
      %v5642 = vpop.f32.mrb[0].mxu0
      %v5643 = vadd.f32 0.0, %v5642
      %v5644 = vpop.f32.mrb[0].mxu0
      %v5645 = vpop.f32.mrb[0].mxu0
      %v5646 = vadd.f32 0.0, %v5645
      %v5647 = vpop.f32.mrb[0].mxu0
      %5648 = vmatprep.mubr.bf16.mxu0 0
      %5649 = vmatmul.mubr.bf16.gmra.mrb[0].mxu0 %v5578
      %v5650 = vpop.f32.mrb[0].mxu0
      %v5651 = vadd.f32 0.0, %v5650
      %v5652 = vpop.f32.mrb[0].mxu0
      %v5653 = vpop.f32.mrb[0].mxu0
      %v5654 = vadd.f32 0.0, %v5653
      %v5655 = vpop.f32.mrb[0].mxu0
      %5656 = vmatprep.mubr.bf16.mxu0 0
      %5657 = vmatmul.mubr.bf16.gmra.mrb[0].mxu0 %v5581
      %v5658 = vpop.f32.mrb[0].mxu0
      %v5659 = vadd.f32 0.0, %v5658
      %v5660 = vpop.f32.mrb[0].mxu0
      %v5661 = vpop.f32.mrb[0].mxu0
      %v5662 = vadd.f32 0.0, %v5661
      %v5663 = vpop.f32.mrb[0].mxu0
      %5664 = vmatprep.mubr.bf16.mxu0 0
      %5665 = vmatmul.mubr.bf16.gmra.mrb[0].mxu0 %v5584
      %v5666 = vpop.f32.mrb[0].mxu0
      %v5667 = vadd.f32 0.0, %v5666
      %v5668 = vpop.f32.mrb[0].mxu0
      %v5669 = vpop.f32.mrb[0].mxu0
      %v5670 = vadd.f32 0.0, %v5669
      %v5671 = vpop.f32.mrb[0].mxu0
      %5672 = vmatprep.mubr.bf16.mxu0 0
      %5673 = vmatmul.mubr.bf16.gmra.mrb[0].mxu0 %v5587
      %v5674 = vpop.f32.mrb[0].mxu0
      %v5675 = vadd.f32 0.0, %v5674
      %v5676 = vpop.f32.mrb[0].mxu0
      %v5677 = vpop.f32.mrb[0].mxu0
      %v5678 = vadd.f32 0.0, %v5677
      %v5679 = vpop.f32.mrb[0].mxu0
      %5680 = vmatprep.mubr.bf16.mxu0 0
      %5681 = vmatmul.mubr.bf16.gmra.mrb[0].mxu0 %v5590
      %v5682 = vpop.f32.mrb[0].mxu0
      %v5683 = vadd.f32 0.0, %v5682
      %v5684 = vpop.f32.mrb[0].mxu0
      %v5685 = vpop.f32.mrb[0].mxu0
      %v5686 = vadd.f32 0.0, %v5685
      %v5687 = vpop.f32.mrb[0].mxu0
      %5688 = vdwg.mxu0
      %5705 = vrot.lane.b32.xlu0 %v5627, 32
      %v5706 = vpop.permute.xlu0 %5705
      %5707 = vrot.lane.b32.xlu0 %v5630, 32
      %v5708 = vpop.permute.xlu0 %5707
      %5709 = vrot.lane.b32.xlu0 %v5635, 32
      %v5710 = vpop.permute.xlu0 %5709
      %5711 = vrot.lane.b32.xlu0 %v5638, 32
      %v5712 = vpop.permute.xlu0 %5711
      %5713 = vrot.lane.b32.xlu0 %v5643, 32
      %v5714 = vpop.permute.xlu0 %5713
      %5715 = vrot.lane.b32.xlu0 %v5646, 32
      %v5716 = vpop.permute.xlu0 %5715
      %5717 = vrot.lane.b32.xlu0 %v5651, 32
      %v5718 = vpop.permute.xlu0 %5717
      %5719 = vrot.lane.b32.xlu0 %v5654, 32
      %v5720 = vpop.permute.xlu0 %5719
      %5721 = vrot.lane.b32.xlu0 %v5659, 32
      %v5722 = vpop.permute.xlu0 %5721
      %5723 = vrot.lane.b32.xlu0 %v5662, 32
      %v5724 = vpop.permute.xlu0 %5723
      %5725 = vrot.lane.b32.xlu0 %v5667, 32
      %v5726 = vpop.permute.xlu0 %5725
      %5727 = vrot.lane.b32.xlu0 %v5670, 32
      %v5728 = vpop.permute.xlu0 %5727
      %5729 = vrot.lane.b32.xlu0 %v5675, 32
      %v5730 = vpop.permute.xlu0 %5729
      %5731 = vrot.lane.b32.xlu0 %v5678, 32
      %v5732 = vpop.permute.xlu0 %5731
      %5733 = vrot.lane.b32.xlu0 %v5683, 32
      %v5734 = vpop.permute.xlu0 %5733
      %5735 = vrot.lane.b32.xlu0 %v5686, 32
      %v5736 = vpop.permute.xlu0 %5735
      %v5753 = vadd.f32 %v5198, %v5706
      %v5754 = vadd.f32 %v5199, %v5708
      %v5755 = vadd.f32 %v5200, %v5710
      %v5756 = vadd.f32 %v5201, %v5712
      %v5757 = vadd.f32 %v5202, %v5714
      %v5758 = vadd.f32 %v5203, %v5716
      %v5759 = vadd.f32 %v5204, %v5718
      %v5760 = vadd.f32 %v5205, %v5720
      %v5761 = vadd.f32 %v5206, %v5722
      %v5762 = vadd.f32 %v5207, %v5724
      %v5763 = vadd.f32 %v5208, %v5726
      %v5764 = vadd.f32 %v5209, %v5728
      %v5765 = vadd.f32 %v5210, %v5730
      %v5766 = vadd.f32 %v5211, %v5732
      %v5767 = vadd.f32 %v5212, %v5734
      %v5768 = vadd.f32 %v5213, %v5736
      %v5769 = vld [vmem:[%s8] sm:$0x1]
      %v5771 = vlaneseq
      %v5772 = vshrl.u32 %v5771, 7
      %v5773 = vsub.s32 0, %v5772
      %v5774 = vrot.slane %v5769, %v5773
      %v5776 = vmul.f32 %v5441, %v5774
      %v5777 = vmul.f32 %v5442, %v5774
      %v5778 = vmul.f32 %v5443, %v5774
      %v5779 = vmul.f32 %v5444, %v5774
      %v5780 = vmul.f32 %v5445, %v5774
      %v5781 = vmul.f32 %v5446, %v5774
      %v5782 = vmul.f32 %v5447, %v5774
      %v5783 = vmul.f32 %v5448, %v5774
      %v5784 = vmul.f32 %v5449, %v5774
      %v5785 = vmul.f32 %v5450, %v5774
      %v5786 = vmul.f32 %v5451, %v5774
      %v5787 = vmul.f32 %v5452, %v5774
      %v5788 = vmul.f32 %v5453, %v5774
      %v5789 = vmul.f32 %v5454, %v5774
      %v5790 = vmul.f32 %v5455, %v5774
      %v5791 = vmul.f32 %v5456, %v5774
      %v5792 = vld [vmem:[%s9] sm:$0x1]
      %v5794 = vlaneseq
      %v5795 = vshrl.u32 %v5794, 7
      %v5796 = vsub.s32 0, %v5795
      %v5797 = vrot.slane %v5792, %v5796
      %v5799 = vadd.f32 %v5776, %v5797
      %v5800 = vadd.f32 %v5777, %v5797
      %v5801 = vadd.f32 %v5778, %v5797
      %v5802 = vadd.f32 %v5779, %v5797
      %v5803 = vadd.f32 %v5780, %v5797
      %v5804 = vadd.f32 %v5781, %v5797
      %v5805 = vadd.f32 %v5782, %v5797
      %v5806 = vadd.f32 %v5783, %v5797
      %v5807 = vadd.f32 %v5784, %v5797
      %v5808 = vadd.f32 %v5785, %v5797
      %v5809 = vadd.f32 %v5786, %v5797
      %v5810 = vadd.f32 %v5787, %v5797
      %v5811 = vadd.f32 %v5788, %v5797
      %v5812 = vadd.f32 %v5789, %v5797
      %v5813 = vadd.f32 %v5790, %v5797
      %v5814 = vadd.f32 %v5791, %v5797
      %v5815 = vmax.f32 %v5799, 0.0
      %v5816 = vmax.f32 %v5800, 0.0
      %v5817 = vmax.f32 %v5801, 0.0
      %v5818 = vmax.f32 %v5802, 0.0
      %v5819 = vmax.f32 %v5803, 0.0
      %v5820 = vmax.f32 %v5804, 0.0
      %v5821 = vmax.f32 %v5805, 0.0
      %v5822 = vmax.f32 %v5806, 0.0
      %v5823 = vmax.f32 %v5807, 0.0
      %v5824 = vmax.f32 %v5808, 0.0
      %v5825 = vmax.f32 %v5809, 0.0
      %v5826 = vmax.f32 %v5810, 0.0
      %v5827 = vmax.f32 %v5811, 0.0
      %v5828 = vmax.f32 %v5812, 0.0
      %v5829 = vmax.f32 %v5813, 0.0
      %v5830 = vmax.f32 %v5814, 0.0
      %5831 = vrot.lane.b32.xlu0 %v5774, 32
      %v5832 = vpop.permute.xlu0 %5831
      %v5834 = vmul.f32 %v5753, %v5832
      %v5835 = vmul.f32 %v5754, %v5832
      %v5836 = vmul.f32 %v5755, %v5832
      %v5837 = vmul.f32 %v5756, %v5832
      %v5838 = vmul.f32 %v5757, %v5832
      %v5839 = vmul.f32 %v5758, %v5832
      %v5840 = vmul.f32 %v5759, %v5832
      %v5841 = vmul.f32 %v5760, %v5832
      %v5842 = vmul.f32 %v5761, %v5832
      %v5843 = vmul.f32 %v5762, %v5832
      %v5844 = vmul.f32 %v5763, %v5832
      %v5845 = vmul.f32 %v5764, %v5832
      %v5846 = vmul.f32 %v5765, %v5832
      %v5847 = vmul.f32 %v5766, %v5832
      %v5848 = vmul.f32 %v5767, %v5832
      %v5849 = vmul.f32 %v5768, %v5832
      %5850 = vrot.lane.b32.xlu0 %v5797, 32
      %v5851 = vpop.permute.xlu0 %5850
      %v5853 = vadd.f32 %v5834, %v5851
      %v5854 = vadd.f32 %v5835, %v5851
      %v5855 = vadd.f32 %v5836, %v5851
      %v5856 = vadd.f32 %v5837, %v5851
      %v5857 = vadd.f32 %v5838, %v5851
      %v5858 = vadd.f32 %v5839, %v5851
      %v5859 = vadd.f32 %v5840, %v5851
      %v5860 = vadd.f32 %v5841, %v5851
      %v5861 = vadd.f32 %v5842, %v5851
      %v5862 = vadd.f32 %v5843, %v5851
      %v5863 = vadd.f32 %v5844, %v5851
      %v5864 = vadd.f32 %v5845, %v5851
      %v5865 = vadd.f32 %v5846, %v5851
      %v5866 = vadd.f32 %v5847, %v5851
      %v5867 = vadd.f32 %v5848, %v5851
      %v5868 = vadd.f32 %v5849, %v5851
      %v5869 = vmax.f32 %v5853, 0.0
      %v5870 = vmax.f32 %v5854, 0.0
      %v5871 = vmax.f32 %v5855, 0.0
      %v5872 = vmax.f32 %v5856, 0.0
      %v5873 = vmax.f32 %v5857, 0.0
      %v5874 = vmax.f32 %v5858, 0.0
      %v5875 = vmax.f32 %v5859, 0.0
      %v5876 = vmax.f32 %v5860, 0.0
      %v5877 = vmax.f32 %v5861, 0.0
      %v5878 = vmax.f32 %v5862, 0.0
      %v5879 = vmax.f32 %v5863, 0.0
      %v5880 = vmax.f32 %v5864, 0.0
      %v5881 = vmax.f32 %v5865, 0.0
      %v5882 = vmax.f32 %v5866, 0.0
      %v5883 = vmax.f32 %v5867, 0.0
      %v5884 = vmax.f32 %v5868, 0.0
      %v5885 = vsel %vm1837, %v5815, %v5869
      %v5886 = vsel %vm1837, %v5816, %v5870
      %v5887 = vsel %vm1837, %v5817, %v5871
      %v5888 = vsel %vm1837, %v5818, %v5872
      %v5889 = vsel %vm1837, %v5819, %v5873
      %v5890 = vsel %vm1837, %v5820, %v5874
      %v5891 = vsel %vm1837, %v5821, %v5875
      %v5892 = vsel %vm1837, %v5822, %v5876
      %v5893 = vsel %vm1837, %v5823, %v5877
      %v5894 = vsel %vm1837, %v5824, %v5878
      %v5895 = vsel %vm1837, %v5825, %v5879
      %v5896 = vsel %vm1837, %v5826, %v5880
      %v5897 = vsel %vm1837, %v5827, %v5881
      %v5898 = vsel %vm1837, %v5828, %v5882
      %v5899 = vsel %vm1837, %v5829, %v5883
      %v5900 = vsel %vm1837, %v5830, %v5884
      %v5901 = vpack.c.bf16 %v5886, %v5885
      %v5902 = vpack.c.bf16 %v5888, %v5887
      %v5903 = vpack.c.bf16 %v5890, %v5889
      %v5904 = vpack.c.bf16 %v5892, %v5891
      %v5905 = vpack.c.bf16 %v5894, %v5893
      %v5906 = vpack.c.bf16 %v5896, %v5895
      %v5907 = vpack.c.bf16 %v5898, %v5897
      %v5908 = vpack.c.bf16 %v5900, %v5899
      %v5917 = vunpack.c.l.b16 %v5901
      %v5918 = vunpack.c.h.b16 %v5901
      %v5919 = vunpack.c.l.b16 %v5902
      %v5920 = vunpack.c.h.b16 %v5902
      %v5921 = vunpack.c.l.b16 %v5903
      %v5922 = vunpack.c.h.b16 %v5903
      %v5923 = vunpack.c.l.b16 %v5904
      %v5924 = vunpack.c.h.b16 %v5904
      %v5925 = vunpack.c.l.b16 %v5905
      %v5926 = vunpack.c.h.b16 %v5905
      %v5927 = vunpack.c.l.b16 %v5906
      %v5928 = vunpack.c.h.b16 %v5906
      %v5929 = vunpack.c.l.b16 %v5907
      %v5930 = vunpack.c.h.b16 %v5907
      %v5931 = vunpack.c.l.b16 %v5908
      %v5932 = vunpack.c.h.b16 %v5908
      %v5933 = vpack.c.b16 %v5917, %v5917
      %v5934 = vpack.c.b16 %v5918, %v5918
      %v5935 = vpack.c.b16 %v5919, %v5919
      %v5936 = vpack.c.b16 %v5920, %v5920
      %v5937 = vpack.c.b16 %v5921, %v5921
      %v5938 = vpack.c.b16 %v5922, %v5922
      %v5939 = vpack.c.b16 %v5923, %v5923
      %v5940 = vpack.c.b16 %v5924, %v5924
      %v5941 = vpack.c.b16 %v5925, %v5925
      %v5942 = vpack.c.b16 %v5926, %v5926
      %v5943 = vpack.c.b16 %v5927, %v5927
      %v5944 = vpack.c.b16 %v5928, %v5928
      %v5945 = vpack.c.b16 %v5929, %v5929
      %v5946 = vpack.c.b16 %v5930, %v5930
      %v5947 = vpack.c.b16 %v5931, %v5931
      %v5948 = vpack.c.b16 %v5932, %v5932
      %5965 = vst.msk [vmem:[%s379] sm:$0xf] %vm383, %v5933
      %5966 = vst.msk [vmem:[%s379 + $0x4] sm:$0xf] %vm383, %v5934
      %5967 = vst.msk [vmem:[%s379 + $0x8] sm:$0xf] %vm383, %v5935
      %5968 = vst.msk [vmem:[%s379 + $0xc] sm:$0xf] %vm383, %v5936
      %5969 = vst.msk [vmem:[%s379 + $0x10] sm:$0xf] %vm383, %v5937
      %5970 = vst.msk [vmem:[%s379 + $0x14] sm:$0xf] %vm383, %v5938
      %5971 = vst.msk [vmem:[%s379 + $0x18] sm:$0xf] %vm383, %v5939
      %5972 = vst.msk [vmem:[%s379 + $0x1c] sm:$0xf] %vm383, %v5940
      %5973 = vst.msk [vmem:[%s379 + $0x20] sm:$0xf] %vm383, %v5941
      %5974 = vst.msk [vmem:[%s379 + $0x24] sm:$0xf] %vm383, %v5942
      %5975 = vst.msk [vmem:[%s379 + $0x28] sm:$0xf] %vm383, %v5943
      %5976 = vst.msk [vmem:[%s379 + $0x2c] sm:$0xf] %vm383, %v5944
      %5977 = vst.msk [vmem:[%s379 + $0x30] sm:$0xf] %vm383, %v5945
      %5978 = vst.msk [vmem:[%s379 + $0x34] sm:$0xf] %vm383, %v5946
      %5979 = vst.msk [vmem:[%s379 + $0x38] sm:$0xf] %vm383, %v5947
      %5980 = vst.msk [vmem:[%s379 + $0x3c] sm:$0xf] %vm383, %v5948
      %p5981 = scmp.lt.s32.totalorder %s21, 1
      %s5982 = scalar_select %p5981, %s21, 1
      %s5983 = smul.addr %s5982, 16
      %s5984 = smul.addr %s5983, 4
      %s5985 = scalar_lea.vmem %s10, %s5984
      // Predicated region
      $region61: #{tpu_custom_call.1} parent=59 // pred_check
        %p5986 = pneg %p259
      $region62: #{tpu_custom_call.1} parent=59 // pred_check_branch
        %5988 = sbr.rel (%p5986) target = $region64
      $region63: #{tpu_custom_call.1} parent=59 // pred_region
        _
      $region64: #{tpu_custom_call.1} parent=59 // pred_fallthru
        _
    $region60: #{tpu_custom_call.1} parent=5 // pred_fallthru
      _
    %p5989 = scmp.le.s32.totalorder 2, %s16
    // Predicated region
    $region65: #{tpu_custom_call.1} parent=5 // pred_check
      %p5990 = pneg %p5989
    $region66: #{tpu_custom_call.1} parent=5 // pred_check_branch
      %5992 = sbr.rel (%p5990) target = $region68
    $region67: #{tpu_custom_call.1} parent=5 // pred_region
      %s5993 = ssub.s32 %s16, 2
      // Predicated region
      $region69: #{tpu_custom_call.1} parent=67 // pred_check
        %p5994 = pneg %p265
      $region70: #{tpu_custom_call.1} parent=67 // pred_check_branch
        %5996 = sbr.rel (%p5994) target = $region72
      $region71: #{tpu_custom_call.1} parent=67 // pred_region
        %p5997 = scmp.lt.s32.totalorder %s22, 1
        %s5998 = scalar_select %p5997, %s22, 1
        %s5999 = smul.addr %s5998, 16
        %s6000 = smul.addr %s5999, 4
        %s6001 = scalar_lea.vmem %s10, %s6000
      $region72: #{tpu_custom_call.1} parent=67 // pred_fallthru
        _
    $region68: #{tpu_custom_call.1} parent=5 // pred_fallthru
      _
  $region6: #{tpu_custom_call.1} parent=0 // loop_footer
    %s20 = sadd.s32 1, %s16
  $region7: #{tpu_custom_call.1} parent=0 // loop_footer_branch
    %15 = sbr.rel target = $region3
  $region8: #{tpu_custom_call.1} parent=0 // loop_exit
    _

</llo_original>
